<compile_context>
chip_gen: v6e
topology: v6e:2x2x1
jax: 0.10.0
libtpu: 0.0.40
codegen_flags: <defaults>
</compile_context>

<pallas_src>
import jax
import jax.numpy as jnp
import numpy as np
from jax.experimental import pallas as pl
from jax.experimental.pallas import tpu as pltpu

# Smallest shapes consistent with the module:
#   groups=32 in layer2 -> outchannels//2 must be a multiple of 32 -> outchannels = 64
#   CBAM ratio=16       -> hidden = 64 // 16 = 4
#   shortcut=False      -> inchannels == outchannels, stride == 1
N, H, W = 2, 8, 8
CIN = COUT = 64
CMID = COUT // 2           # 32
CR = COUT // 16            # 4
P = N * H * W              # 128
HW = H * W                 # 64
EPS = 1e-5


def block_kernel(x_ref, w1_ref, shift_ref, w3_ref, wc1_ref, wc2_ref, msa_ref,
                 par_ref, sapar_ref, o_ref):
    bf16 = jnp.bfloat16

    def bn(z, g, b):
        # training-mode BN, centered (two-term) variance; z - mu is reused.
        mu = jnp.mean(z, axis=0, keepdims=True)
        d = z - mu
        var = jnp.mean(d * d, axis=0, keepdims=True)
        return d * jax.lax.rsqrt(var + EPS) * g + b

    def sigmoid(v):
        # exp on the EUP + approx reciprocal on the EUP -> VALU stays free
        return pl.reciprocal(1.0 + jnp.exp(-v), approx=True)

    # ---- layer1: 1x1 conv (64->32) -> BN -> ReLU : one MXU matmul ----------
    h1 = jnp.dot(x_ref[...].astype(bf16), w1_ref[...],
                 preferred_element_type=jnp.float32)                  # (P, CMID)
    h1 = jnp.maximum(bn(h1, par_ref[0:1, :CMID], par_ref[1:2, :CMID]), 0.0)

    # ---- layer2: depthwise 3x3 conv (groups=32, pad=1) --------------------
    # Nine accumulating MXU matmuls with precomputed spatial shift matrices:
    #   h2 = sum_k (S_k @ h1) * w2[k, :]     (per-channel tap weights)
    h1b = h1.astype(bf16)
    h2 = jnp.zeros((P, CMID), jnp.float32)
    for k in range(9):                       # static unroll, shift_ref[k] static
        h2 = h2 + (jnp.dot(shift_ref[k], h1b,
                           preferred_element_type=jnp.float32)
                   * par_ref[6 + k:7 + k, :CMID])
    h2 = jnp.maximum(bn(h2, par_ref[2:3, :CMID], par_ref[3:4, :CMID]), 0.0)

    # ---- layer3: 1x1 conv (32->64) -> BN -> ReLU --------------------------
    h3 = jnp.dot(h2.astype(bf16), w3_ref[...],
                 preferred_element_type=jnp.float32)                  # (P, COUT)
    h3 = jnp.maximum(bn(h3, par_ref[4:5, :COUT], par_ref[5:6, :COUT]), 0.0)

    # ---- CBAM channel attention (avg & max FC paths batched into one matmul) -
    h3n = h3.reshape(N, HW, COUT)
    pooled = jnp.concatenate([jnp.mean(h3n, axis=1),
                              jnp.max(h3n, axis=1)], axis=0)          # (2N, COUT)
    hid = jnp.maximum(jnp.dot(pooled.astype(bf16), wc1_ref[...],
                              preferred_element_type=jnp.float32), 0.0)
    fco = jnp.dot(hid.astype(bf16), wc2_ref[...],
                  preferred_element_type=jnp.float32)                 # (2N, COUT)
    ca = sigmoid(fco[:N] + fco[N:])                                   # (N, COUT)
    h4 = h3n * ca[:, None, :]                                         # (N, HW, COUT)

    # ---- CBAM spatial attention: 7x7 conv (pad=3) folded into ONE matmul ---
    spin = jnp.concatenate([jnp.max(h4, axis=-1),     # ChannelPool ch 0: max
                            jnp.mean(h4, axis=-1)],   # ChannelPool ch 1: mean
                           axis=1)                    # (N, 2*HW)
    sp = jnp.dot(spin.astype(bf16), msa_ref[...],
                 preferred_element_type=jnp.float32)                  # (N, HW)
    # BatchNorm2d(1), training mode: stats over all N*H*W positions
    mu = jnp.mean(sp, keepdims=True)
    d = sp - mu
    var = jnp.mean(d * d, keepdims=True)
    sa = sigmoid(d * jax.lax.rsqrt(var + EPS) * sapar_ref[0] + sapar_ref[1])
    h5 = (h4 * sa[:, :, None]).reshape(P, COUT)

    # ---- residual add (shortcut=False); NO final ReLU ----------------------
    # x is re-read here (cheap VMEM load) instead of being held live all along.
    o_ref[...] = h5 + x_ref[...]


def _shift_matrices():
    """Nine (P, P) 0/1 matrices: S_k[p_out, p_in] selects the (ky,kx) tap of
    the zero-padded 3x3 depthwise conv for the flattened (n, y, x) index."""
    S = np.zeros((9, P, P), np.float32)
    for n in range(N):
        for y in range(H):
            for x in range(W):
                po = (n * H + y) * W + x
                for ky in range(3):
                    for kx in range(3):
                        yi, xi = y + ky - 1, x + kx - 1
                        if 0 <= yi < H and 0 <= xi < W:
                            S[ky * 3 + kx, po, (n * H + yi) * W + xi] = 1.0
    return S


def block_pallas(x_nchw, W1, b1, g1, be1, W2, b2, g2, be2, W3, b3, g3, be3,
                 Wc1, Wc2, Wsa, bsa, gsa, besa):
    """Inputs in PyTorch layouts (NCHW activations, OIHW conv weights,
    (out,in) Linear weights). Returns the block output in NCHW.
    Note: conv biases b1/b2/b3/bsa cancel exactly under training-mode BN and
    are therefore not sent to the kernel."""
    del b1, b2, b3, bsa  # exact cancellation under batch-stat BN
    bf16 = jnp.bfloat16
    x2d = jnp.transpose(x_nchw, (0, 2, 3, 1)).reshape(P, CIN)

    # 1x1 convs -> (Cin, Cout) matmul weights (bf16 operands, f32 accumulation)
    w1m = W1[:, :, 0, 0].T.astype(bf16)                               # (CIN, CMID)
    w3m = W3[:, :, 0, 0].T.astype(bf16)                               # (CMID, COUT)
    # depthwise 3x3 conv -> nine bf16 spatial shift matrices (MXU shuffle)
    shiftm = jnp.asarray(_shift_matrices(), bf16)                     # (9, P, P)
    # channel-attention Linear layers (torch Linear: y = x @ W.T)
    wc1t = Wc1.T.astype(bf16)                                         # (COUT, CR)
    wc2t = Wc2.T.astype(bf16)                                         # (CR, COUT)
    # 7x7 spatial-attention conv (padding=3) as a dense (2*HW, HW) scatter matrix:
    # rows [0:HW] act on the channel-max map, rows [HW:2HW] on the channel-mean map.
    idx = np.arange(H)
    k = idx[:, None] - idx[None, :] + 3            # tap index k[in_pos, out_pos]
    valid = ((k >= 0) & (k < 7)).astype(np.float32)
    kc = np.clip(k, 0, 6)
    msa = Wsa[0][:, kc[:, None, :, None], kc[None, :, None, :]]       # (2,Hi,Wi,Ho,Wo)
    msa = msa * (valid[:, None, :, None] * valid[None, :, None, :])[None]
    msa = msa.reshape(2 * HW, HW).astype(bf16)

    # all small per-channel params packed into ONE (16,128) f32 VMEM operand:
    #   rows 0-5: g1,be1,g2,be2,g3,be3 ; rows 6-14: depthwise tap weights (9,CMID)
    par = jnp.zeros((16, 128), jnp.float32)
    par = par.at[0, :CMID].set(g1).at[1, :CMID].set(be1)
    par = par.at[2, :CMID].set(g2).at[3, :CMID].set(be2)
    par = par.at[4, :COUT].set(g3).at[5, :COUT].set(be3)
    par = par.at[6:15, :CMID].set(W2.reshape(CMID, 9).T)
    # spatial-BN scalars in SMEM: [gamma, beta]
    sapar = jnp.concatenate([gsa, besa]).astype(jnp.float32)          # (2,)

    vmem = pl.BlockSpec(memory_space=pltpu.MemorySpace.VMEM)
    smem = pl.BlockSpec(memory_space=pltpu.MemorySpace.SMEM)

    out2d = pl.pallas_call(
        block_kernel,
        out_shape=jax.ShapeDtypeStruct((P, COUT), jnp.float32),
        in_specs=[vmem] * 8 + [smem],
        out_specs=vmem,
    )(x2d, w1m, shiftm, w3m, wc1t, wc2t, msa, par, sapar)

    return jnp.transpose(out2d.reshape(N, H, W, COUT), (0, 3, 1, 2))


def ref_forward(x, W1, b1, g1, be1, W2, b2, g2, be2, W3, b3, g3, be3,
                Wc1, Wc2, Wsa, bsa, gsa, besa):
    """Pure-JAX (f32) reference mirroring the PyTorch `block` forward."""
    def conv(z, w, b, pad, groups=1):
        out = jax.lax.conv_general_dilated(
            z, w, (1, 1), ((pad, pad), (pad, pad)),
            dimension_numbers=('NCHW', 'OIHW', 'NCHW'),
            feature_group_count=groups)
        return out + b.reshape(1, -1, 1, 1)

    def bn(z, g, b):
        mu = jnp.mean(z, axis=(0, 2, 3), keepdims=True)
        var = jnp.var(z, axis=(0, 2, 3), keepdims=True)
        return (z - mu) / jnp.sqrt(var + EPS) * g.reshape(1, -1, 1, 1) + b.reshape(1, -1, 1, 1)

    h = jax.nn.relu(bn(conv(x, W1, b1, 0), g1, be1))
    h = jax.nn.relu(bn(conv(h, W2, b2, 1, groups=CMID), g2, be2))
    h = jax.nn.relu(bn(conv(h, W3, b3, 0), g3, be3))
    # channel attention
    avg = jnp.mean(h, axis=(2, 3))
    mx = jnp.max(h, axis=(2, 3))
    fc = lambda v: jax.nn.relu(v @ Wc1.T) @ Wc2.T
    ca = jax.nn.sigmoid(fc(avg) + fc(mx))
    h = h * ca[:, :, None, None]
    # spatial attention (ChannelPool = cat[max, mean])
    s = jnp.concatenate([jnp.max(h, axis=1, keepdims=True),
                         jnp.mean(h, axis=1, keepdims=True)], axis=1)
    sa = jax.nn.sigmoid(bn(conv(s, Wsa, bsa, 3), gsa, besa))
    h = h * sa
    return h + x


if __name__ == "__main__":
    key = jax.random.PRNGKey(0)
    ks = jax.random.split(key, 19)
    x   = jax.random.normal(ks[0], (N, CIN, H, W), jnp.float32)
    W1  = jax.random.normal(ks[1], (CMID, CIN, 1, 1), jnp.float32) * 0.1
    b1  = jax.random.normal(ks[2], (CMID,), jnp.float32) * 0.1
    g1  = 1.0 + 0.1 * jax.random.normal(ks[3], (CMID,), jnp.float32)
    be1 = 0.1 * jax.random.normal(ks[4], (CMID,), jnp.float32)
    W2  = jax.random.normal(ks[5], (CMID, 1, 3, 3), jnp.float32) * 0.1   # groups=32
    b2  = jax.random.normal(ks[6], (CMID,), jnp.float32) * 0.1
    g2  = 1.0 + 0.1 * jax.random.normal(ks[7], (CMID,), jnp.float32)
    be2 = 0.1 * jax.random.normal(ks[8], (CMID,), jnp.float32)
    W3  = jax.random.normal(ks[9], (COUT, CMID, 1, 1), jnp.float32) * 0.1
    b3  = jax.random.normal(ks[10], (COUT,), jnp.float32) * 0.1
    g3  = 1.0 + 0.1 * jax.random.normal(ks[11], (COUT,), jnp.float32)
    be3 = 0.1 * jax.random.normal(ks[12], (COUT,), jnp.float32)
    Wc1 = jax.random.normal(ks[13], (CR, COUT), jnp.float32) * 0.1       # Linear(64->4)
    Wc2 = jax.random.normal(ks[14], (COUT, CR), jnp.float32) * 0.1       # Linear(4->64)
    Wsa = jax.random.normal(ks[15], (1, 2, 7, 7), jnp.float32) * 0.1     # 7x7 conv
    bsa = jax.random.normal(ks[16], (1,), jnp.float32) * 0.1
    gsa = 1.0 + 0.1 * jax.random.normal(ks[17], (1,), jnp.float32)
    besa = 0.1 * jax.random.normal(ks[18], (1,), jnp.float32)

    out = block_pallas(x, W1, b1, g1, be1, W2, b2, g2, be2, W3, b3, g3, be3,
                       Wc1, Wc2, Wsa, bsa, gsa, besa)
    out = jax.block_until_ready(out)

    ref = jax.block_until_ready(
        ref_forward(x, W1, b1, g1, be1, W2, b2, g2, be2, W3, b3, g3, be3,
                    Wc1, Wc2, Wsa, bsa, gsa, besa))

    # bf16 MXU operands (f32 accumulation) vs a pure-f32 reference -> bf16-level tolerance.
    np.testing.assert_allclose(np.asarray(out), np.asarray(ref), rtol=2e-2, atol=3e-2)

    print("KERNEL_OK")
</pallas_src>

<mosaic_0001>
module attributes {stable_mosaic.version = 11 : i64} {
  func.func @block_kernel(%arg0: memref<128x64xf32, #tpu.memory_space<vmem>>, %arg1: memref<64x32xbf16, #tpu.memory_space<vmem>>, %arg2: memref<9x128x128xbf16, #tpu.memory_space<vmem>>, %arg3: memref<32x64xbf16, #tpu.memory_space<vmem>>, %arg4: memref<64x4xbf16, #tpu.memory_space<vmem>>, %arg5: memref<4x64xbf16, #tpu.memory_space<vmem>>, %arg6: memref<128x64xbf16, #tpu.memory_space<vmem>>, %arg7: memref<16x128xf32, #tpu.memory_space<vmem>>, %arg8: memref<2xf32, #tpu.memory_space<smem>>, %arg9: memref<128x64xf32, #tpu.memory_space<vmem>>) attributes {dimension_semantics = [], scalar_prefetch = 0 : i64, scratch_operands = 0 : i64, tpu.core_type = #tpu.core_type<tc>} {
    %c0 = arith.constant 0 : index
    %c0_0 = arith.constant 0 : index
    %0 = vector.load %arg0[%c0, %c0_0] : memref<128x64xf32, #tpu.memory_space<vmem>>, vector<128x64xf32>
    %1 = arith.truncf %0 : vector<128x64xf32> to vector<128x64xbf16>
    %c0_1 = arith.constant 0 : index
    %c0_2 = arith.constant 0 : index
    %2 = vector.load %arg1[%c0_1, %c0_2] : memref<64x32xbf16, #tpu.memory_space<vmem>>, vector<64x32xbf16>
    %cst = arith.constant dense<0.000000e+00> : vector<128x32xf32>
    %3 = tpu.matmul %1, %2, %cst {dimension_numbers = #tpu.dot_dimension_numbers<[1], [0], [0], [1], [0, 0, 1, 1], [], []>} : vector<128x64xbf16>, vector<64x32xbf16>, vector<128x32xf32> -> vector<128x32xf32>
    %c0_3 = arith.constant 0 : index
    %c0_4 = arith.constant 0 : index
    %4 = vector.load %arg7[%c0_3, %c0_4] : memref<16x128xf32, #tpu.memory_space<vmem>>, vector<1x32xf32>
    %c1 = arith.constant 1 : index
    %c0_5 = arith.constant 0 : index
    %5 = vector.load %arg7[%c1, %c0_5] : memref<16x128xf32, #tpu.memory_space<vmem>>, vector<1x32xf32>
    %cst_6 = arith.constant dense<0.000000e+00> : vector<32xf32>
    %6 = vector.multi_reduction <add>, %3, %cst_6 [0] : vector<128x32xf32> to vector<32xf32>
    %7 = vector.shape_cast %6 : vector<32xf32> to vector<1x32xf32>
    %cst_7 = arith.constant 1.280000e+02 : f32
    %8 = vector.broadcast %cst_7 : f32 to vector<1x32xf32>
    %9 = arith.divf %7, %8 : vector<1x32xf32>
    %10 = vector.broadcast %9 : vector<1x32xf32> to vector<128x32xf32>
    %11 = arith.subf %3, %10 : vector<128x32xf32>
    %12 = arith.mulf %11, %11 : vector<128x32xf32>
    %cst_8 = arith.constant dense<0.000000e+00> : vector<32xf32>
    %13 = vector.multi_reduction <add>, %12, %cst_8 [0] : vector<128x32xf32> to vector<32xf32>
    %14 = vector.shape_cast %13 : vector<32xf32> to vector<1x32xf32>
    %cst_9 = arith.constant 1.280000e+02 : f32
    %15 = vector.broadcast %cst_9 : f32 to vector<1x32xf32>
    %16 = arith.divf %14, %15 : vector<1x32xf32>
    %cst_10 = arith.constant 9.99999974E-6 : f32
    %17 = vector.broadcast %cst_10 : f32 to vector<1x32xf32>
    %18 = arith.addf %16, %17 : vector<1x32xf32>
    %19 = math.rsqrt %18 : vector<1x32xf32>
    %20 = vector.broadcast %19 : vector<1x32xf32> to vector<128x32xf32>
    %21 = arith.mulf %11, %20 : vector<128x32xf32>
    %22 = vector.broadcast %4 : vector<1x32xf32> to vector<128x32xf32>
    %23 = arith.mulf %21, %22 : vector<128x32xf32>
    %24 = vector.broadcast %5 : vector<1x32xf32> to vector<128x32xf32>
    %25 = arith.addf %23, %24 : vector<128x32xf32>
    %cst_11 = arith.constant 0.000000e+00 : f32
    %26 = vector.broadcast %cst_11 : f32 to vector<128x32xf32>
    %27 = arith.maximumf %25, %26 : vector<128x32xf32>
    %28 = arith.truncf %27 : vector<128x32xf32> to vector<128x32xbf16>
    %cst_12 = arith.constant 0.000000e+00 : f32
    %29 = vector.broadcast %cst_12 : f32 to vector<128x32xf32>
    %c0_13 = arith.constant 0 : index
    %c0_14 = arith.constant 0 : index
    %c0_15 = arith.constant 0 : index
    %30 = vector.load %arg2[%c0_13, %c0_14, %c0_15] : memref<9x128x128xbf16, #tpu.memory_space<vmem>>, vector<1x128x128xbf16>
    %31 = vector.shape_cast %30 : vector<1x128x128xbf16> to vector<128x128xbf16>
    %cst_16 = arith.constant dense<0.000000e+00> : vector<128x32xf32>
    %32 = tpu.matmul %31, %28, %cst_16 {dimension_numbers = #tpu.dot_dimension_numbers<[1], [0], [0], [1], [0, 0, 1, 1], [], []>} : vector<128x128xbf16>, vector<128x32xbf16>, vector<128x32xf32> -> vector<128x32xf32>
    %c6 = arith.constant 6 : index
    %c0_17 = arith.constant 0 : index
    %33 = vector.load %arg7[%c6, %c0_17] : memref<16x128xf32, #tpu.memory_space<vmem>>, vector<1x32xf32>
    %34 = vector.broadcast %33 : vector<1x32xf32> to vector<128x32xf32>
    %35 = arith.mulf %32, %34 : vector<128x32xf32>
    %36 = arith.addf %29, %35 : vector<128x32xf32>
    %c1_18 = arith.constant 1 : index
    %c0_19 = arith.constant 0 : index
    %c0_20 = arith.constant 0 : index
    %37 = vector.load %arg2[%c1_18, %c0_19, %c0_20] : memref<9x128x128xbf16, #tpu.memory_space<vmem>>, vector<1x128x128xbf16>
    %38 = vector.shape_cast %37 : vector<1x128x128xbf16> to vector<128x128xbf16>
    %cst_21 = arith.constant dense<0.000000e+00> : vector<128x32xf32>
    %39 = tpu.matmul %38, %28, %cst_21 {dimension_numbers = #tpu.dot_dimension_numbers<[1], [0], [0], [1], [0, 0, 1, 1], [], []>} : vector<128x128xbf16>, vector<128x32xbf16>, vector<128x32xf32> -> vector<128x32xf32>
    %c7 = arith.constant 7 : index
    %c0_22 = arith.constant 0 : index
    %40 = vector.load %arg7[%c7, %c0_22] : memref<16x128xf32, #tpu.memory_space<vmem>>, vector<1x32xf32>
    %41 = vector.broadcast %40 : vector<1x32xf32> to vector<128x32xf32>
    %42 = arith.mulf %39, %41 : vector<128x32xf32>
    %43 = arith.addf %36, %42 : vector<128x32xf32>
    %c2 = arith.constant 2 : index
    %c0_23 = arith.constant 0 : index
    %c0_24 = arith.constant 0 : index
    %44 = vector.load %arg2[%c2, %c0_23, %c0_24] : memref<9x128x128xbf16, #tpu.memory_space<vmem>>, vector<1x128x128xbf16>
    %45 = vector.shape_cast %44 : vector<1x128x128xbf16> to vector<128x128xbf16>
    %cst_25 = arith.constant dense<0.000000e+00> : vector<128x32xf32>
    %46 = tpu.matmul %45, %28, %cst_25 {dimension_numbers = #tpu.dot_dimension_numbers<[1], [0], [0], [1], [0, 0, 1, 1], [], []>} : vector<128x128xbf16>, vector<128x32xbf16>, vector<128x32xf32> -> vector<128x32xf32>
    %c8 = arith.constant 8 : index
    %c0_26 = arith.constant 0 : index
    %47 = vector.load %arg7[%c8, %c0_26] : memref<16x128xf32, #tpu.memory_space<vmem>>, vector<1x32xf32>
    %48 = vector.broadcast %47 : vector<1x32xf32> to vector<128x32xf32>
    %49 = arith.mulf %46, %48 : vector<128x32xf32>
    %50 = arith.addf %43, %49 : vector<128x32xf32>
    %c3 = arith.constant 3 : index
    %c0_27 = arith.constant 0 : index
    %c0_28 = arith.constant 0 : index
    %51 = vector.load %arg2[%c3, %c0_27, %c0_28] : memref<9x128x128xbf16, #tpu.memory_space<vmem>>, vector<1x128x128xbf16>
    %52 = vector.shape_cast %51 : vector<1x128x128xbf16> to vector<128x128xbf16>
    %cst_29 = arith.constant dense<0.000000e+00> : vector<128x32xf32>
    %53 = tpu.matmul %52, %28, %cst_29 {dimension_numbers = #tpu.dot_dimension_numbers<[1], [0], [0], [1], [0, 0, 1, 1], [], []>} : vector<128x128xbf16>, vector<128x32xbf16>, vector<128x32xf32> -> vector<128x32xf32>
    %c9 = arith.constant 9 : index
    %c0_30 = arith.constant 0 : index
    %54 = vector.load %arg7[%c9, %c0_30] : memref<16x128xf32, #tpu.memory_space<vmem>>, vector<1x32xf32>
    %55 = vector.broadcast %54 : vector<1x32xf32> to vector<128x32xf32>
    %56 = arith.mulf %53, %55 : vector<128x32xf32>
    %57 = arith.addf %50, %56 : vector<128x32xf32>
    %c4 = arith.constant 4 : index
    %c0_31 = arith.constant 0 : index
    %c0_32 = arith.constant 0 : index
    %58 = vector.load %arg2[%c4, %c0_31, %c0_32] : memref<9x128x128xbf16, #tpu.memory_space<vmem>>, vector<1x128x128xbf16>
    %59 = vector.shape_cast %58 : vector<1x128x128xbf16> to vector<128x128xbf16>
    %cst_33 = arith.constant dense<0.000000e+00> : vector<128x32xf32>
    %60 = tpu.matmul %59, %28, %cst_33 {dimension_numbers = #tpu.dot_dimension_numbers<[1], [0], [0], [1], [0, 0, 1, 1], [], []>} : vector<128x128xbf16>, vector<128x32xbf16>, vector<128x32xf32> -> vector<128x32xf32>
    %c10 = arith.constant 10 : index
    %c0_34 = arith.constant 0 : index
    %61 = vector.load %arg7[%c10, %c0_34] : memref<16x128xf32, #tpu.memory_space<vmem>>, vector<1x32xf32>
    %62 = vector.broadcast %61 : vector<1x32xf32> to vector<128x32xf32>
    %63 = arith.mulf %60, %62 : vector<128x32xf32>
    %64 = arith.addf %57, %63 : vector<128x32xf32>
    %c5 = arith.constant 5 : index
    %c0_35 = arith.constant 0 : index
    %c0_36 = arith.constant 0 : index
    %65 = vector.load %arg2[%c5, %c0_35, %c0_36] : memref<9x128x128xbf16, #tpu.memory_space<vmem>>, vector<1x128x128xbf16>
    %66 = vector.shape_cast %65 : vector<1x128x128xbf16> to vector<128x128xbf16>
    %cst_37 = arith.constant dense<0.000000e+00> : vector<128x32xf32>
    %67 = tpu.matmul %66, %28, %cst_37 {dimension_numbers = #tpu.dot_dimension_numbers<[1], [0], [0], [1], [0, 0, 1, 1], [], []>} : vector<128x128xbf16>, vector<128x32xbf16>, vector<128x32xf32> -> vector<128x32xf32>
    %c11 = arith.constant 11 : index
    %c0_38 = arith.constant 0 : index
    %68 = vector.load %arg7[%c11, %c0_38] : memref<16x128xf32, #tpu.memory_space<vmem>>, vector<1x32xf32>
    %69 = vector.broadcast %68 : vector<1x32xf32> to vector<128x32xf32>
    %70 = arith.mulf %67, %69 : vector<128x32xf32>
    %71 = arith.addf %64, %70 : vector<128x32xf32>
    %c6_39 = arith.constant 6 : index
    %c0_40 = arith.constant 0 : index
    %c0_41 = arith.constant 0 : index
    %72 = vector.load %arg2[%c6_39, %c0_40, %c0_41] : memref<9x128x128xbf16, #tpu.memory_space<vmem>>, vector<1x128x128xbf16>
    %73 = vector.shape_cast %72 : vector<1x128x128xbf16> to vector<128x128xbf16>
    %cst_42 = arith.constant dense<0.000000e+00> : vector<128x32xf32>
    %74 = tpu.matmul %73, %28, %cst_42 {dimension_numbers = #tpu.dot_dimension_numbers<[1], [0], [0], [1], [0, 0, 1, 1], [], []>} : vector<128x128xbf16>, vector<128x32xbf16>, vector<128x32xf32> -> vector<128x32xf32>
    %c12 = arith.constant 12 : index
    %c0_43 = arith.constant 0 : index
    %75 = vector.load %arg7[%c12, %c0_43] : memref<16x128xf32, #tpu.memory_space<vmem>>, vector<1x32xf32>
    %76 = vector.broadcast %75 : vector<1x32xf32> to vector<128x32xf32>
    %77 = arith.mulf %74, %76 : vector<128x32xf32>
    %78 = arith.addf %71, %77 : vector<128x32xf32>
    %c7_44 = arith.constant 7 : index
    %c0_45 = arith.constant 0 : index
    %c0_46 = arith.constant 0 : index
    %79 = vector.load %arg2[%c7_44, %c0_45, %c0_46] : memref<9x128x128xbf16, #tpu.memory_space<vmem>>, vector<1x128x128xbf16>
    %80 = vector.shape_cast %79 : vector<1x128x128xbf16> to vector<128x128xbf16>
    %cst_47 = arith.constant dense<0.000000e+00> : vector<128x32xf32>
    %81 = tpu.matmul %80, %28, %cst_47 {dimension_numbers = #tpu.dot_dimension_numbers<[1], [0], [0], [1], [0, 0, 1, 1], [], []>} : vector<128x128xbf16>, vector<128x32xbf16>, vector<128x32xf32> -> vector<128x32xf32>
    %c13 = arith.constant 13 : index
    %c0_48 = arith.constant 0 : index
    %82 = vector.load %arg7[%c13, %c0_48] : memref<16x128xf32, #tpu.memory_space<vmem>>, vector<1x32xf32>
    %83 = vector.broadcast %82 : vector<1x32xf32> to vector<128x32xf32>
    %84 = arith.mulf %81, %83 : vector<128x32xf32>
    %85 = arith.addf %78, %84 : vector<128x32xf32>
    %c8_49 = arith.constant 8 : index
    %c0_50 = arith.constant 0 : index
    %c0_51 = arith.constant 0 : index
    %86 = vector.load %arg2[%c8_49, %c0_50, %c0_51] : memref<9x128x128xbf16, #tpu.memory_space<vmem>>, vector<1x128x128xbf16>
    %87 = vector.shape_cast %86 : vector<1x128x128xbf16> to vector<128x128xbf16>
    %cst_52 = arith.constant dense<0.000000e+00> : vector<128x32xf32>
    %88 = tpu.matmul %87, %28, %cst_52 {dimension_numbers = #tpu.dot_dimension_numbers<[1], [0], [0], [1], [0, 0, 1, 1], [], []>} : vector<128x128xbf16>, vector<128x32xbf16>, vector<128x32xf32> -> vector<128x32xf32>
    %c14 = arith.constant 14 : index
    %c0_53 = arith.constant 0 : index
    %89 = vector.load %arg7[%c14, %c0_53] : memref<16x128xf32, #tpu.memory_space<vmem>>, vector<1x32xf32>
    %90 = vector.broadcast %89 : vector<1x32xf32> to vector<128x32xf32>
    %91 = arith.mulf %88, %90 : vector<128x32xf32>
    %92 = arith.addf %85, %91 : vector<128x32xf32>
    %c2_54 = arith.constant 2 : index
    %c0_55 = arith.constant 0 : index
    %93 = vector.load %arg7[%c2_54, %c0_55] : memref<16x128xf32, #tpu.memory_space<vmem>>, vector<1x32xf32>
    %c3_56 = arith.constant 3 : index
    %c0_57 = arith.constant 0 : index
    %94 = vector.load %arg7[%c3_56, %c0_57] : memref<16x128xf32, #tpu.memory_space<vmem>>, vector<1x32xf32>
    %cst_58 = arith.constant dense<0.000000e+00> : vector<32xf32>
    %95 = vector.multi_reduction <add>, %92, %cst_58 [0] : vector<128x32xf32> to vector<32xf32>
    %96 = vector.shape_cast %95 : vector<32xf32> to vector<1x32xf32>
    %cst_59 = arith.constant 1.280000e+02 : f32
    %97 = vector.broadcast %cst_59 : f32 to vector<1x32xf32>
    %98 = arith.divf %96, %97 : vector<1x32xf32>
    %99 = vector.broadcast %98 : vector<1x32xf32> to vector<128x32xf32>
    %100 = arith.subf %92, %99 : vector<128x32xf32>
    %101 = arith.mulf %100, %100 : vector<128x32xf32>
    %cst_60 = arith.constant dense<0.000000e+00> : vector<32xf32>
    %102 = vector.multi_reduction <add>, %101, %cst_60 [0] : vector<128x32xf32> to vector<32xf32>
    %103 = vector.shape_cast %102 : vector<32xf32> to vector<1x32xf32>
    %cst_61 = arith.constant 1.280000e+02 : f32
    %104 = vector.broadcast %cst_61 : f32 to vector<1x32xf32>
    %105 = arith.divf %103, %104 : vector<1x32xf32>
    %cst_62 = arith.constant 9.99999974E-6 : f32
    %106 = vector.broadcast %cst_62 : f32 to vector<1x32xf32>
    %107 = arith.addf %105, %106 : vector<1x32xf32>
    %108 = math.rsqrt %107 : vector<1x32xf32>
    %109 = vector.broadcast %108 : vector<1x32xf32> to vector<128x32xf32>
    %110 = arith.mulf %100, %109 : vector<128x32xf32>
    %111 = vector.broadcast %93 : vector<1x32xf32> to vector<128x32xf32>
    %112 = arith.mulf %110, %111 : vector<128x32xf32>
    %113 = vector.broadcast %94 : vector<1x32xf32> to vector<128x32xf32>
    %114 = arith.addf %112, %113 : vector<128x32xf32>
    %cst_63 = arith.constant 0.000000e+00 : f32
    %115 = vector.broadcast %cst_63 : f32 to vector<128x32xf32>
    %116 = arith.maximumf %114, %115 : vector<128x32xf32>
    %117 = arith.truncf %116 : vector<128x32xf32> to vector<128x32xbf16>
    %c0_64 = arith.constant 0 : index
    %c0_65 = arith.constant 0 : index
    %118 = vector.load %arg3[%c0_64, %c0_65] : memref<32x64xbf16, #tpu.memory_space<vmem>>, vector<32x64xbf16>
    %cst_66 = arith.constant dense<0.000000e+00> : vector<128x64xf32>
    %119 = tpu.matmul %117, %118, %cst_66 {dimension_numbers = #tpu.dot_dimension_numbers<[1], [0], [0], [1], [0, 0, 1, 1], [], []>} : vector<128x32xbf16>, vector<32x64xbf16>, vector<128x64xf32> -> vector<128x64xf32>
    %c4_67 = arith.constant 4 : index
    %c0_68 = arith.constant 0 : index
    %120 = vector.load %arg7[%c4_67, %c0_68] : memref<16x128xf32, #tpu.memory_space<vmem>>, vector<1x64xf32>
    %c5_69 = arith.constant 5 : index
    %c0_70 = arith.constant 0 : index
    %121 = vector.load %arg7[%c5_69, %c0_70] : memref<16x128xf32, #tpu.memory_space<vmem>>, vector<1x64xf32>
    %cst_71 = arith.constant dense<0.000000e+00> : vector<64xf32>
    %122 = vector.multi_reduction <add>, %119, %cst_71 [0] : vector<128x64xf32> to vector<64xf32>
    %123 = vector.shape_cast %122 : vector<64xf32> to vector<1x64xf32>
    %cst_72 = arith.constant 1.280000e+02 : f32
    %124 = vector.broadcast %cst_72 : f32 to vector<1x64xf32>
    %125 = arith.divf %123, %124 : vector<1x64xf32>
    %126 = vector.broadcast %125 : vector<1x64xf32> to vector<128x64xf32>
    %127 = arith.subf %119, %126 : vector<128x64xf32>
    %128 = arith.mulf %127, %127 : vector<128x64xf32>
    %cst_73 = arith.constant dense<0.000000e+00> : vector<64xf32>
    %129 = vector.multi_reduction <add>, %128, %cst_73 [0] : vector<128x64xf32> to vector<64xf32>
    %130 = vector.shape_cast %129 : vector<64xf32> to vector<1x64xf32>
    %cst_74 = arith.constant 1.280000e+02 : f32
    %131 = vector.broadcast %cst_74 : f32 to vector<1x64xf32>
    %132 = arith.divf %130, %131 : vector<1x64xf32>
    %cst_75 = arith.constant 9.99999974E-6 : f32
    %133 = vector.broadcast %cst_75 : f32 to vector<1x64xf32>
    %134 = arith.addf %132, %133 : vector<1x64xf32>
    %135 = math.rsqrt %134 : vector<1x64xf32>
    %136 = vector.broadcast %135 : vector<1x64xf32> to vector<128x64xf32>
    %137 = arith.mulf %127, %136 : vector<128x64xf32>
    %138 = vector.broadcast %120 : vector<1x64xf32> to vector<128x64xf32>
    %139 = arith.mulf %137, %138 : vector<128x64xf32>
    %140 = vector.broadcast %121 : vector<1x64xf32> to vector<128x64xf32>
    %141 = arith.addf %139, %140 : vector<128x64xf32>
    %cst_76 = arith.constant 0.000000e+00 : f32
    %142 = vector.broadcast %cst_76 : f32 to vector<128x64xf32>
    %143 = arith.maximumf %141, %142 : vector<128x64xf32>
    %144 = vector.shape_cast %143 : vector<128x64xf32> to vector<2x64x64xf32>
    %cst_77 = arith.constant dense<0.000000e+00> : vector<2x64xf32>
    %145 = vector.multi_reduction <add>, %144, %cst_77 [1] : vector<2x64x64xf32> to vector<2x64xf32>
    %cst_78 = arith.constant 6.400000e+01 : f32
    %146 = vector.broadcast %cst_78 : f32 to vector<2x64xf32>
    %147 = arith.divf %145, %146 : vector<2x64xf32>
    %cst_79 = arith.constant dense<0xFF800000> : vector<2x64xf32>
    %148 = vector.multi_reduction <maximumf>, %144, %cst_79 [1] : vector<2x64x64xf32> to vector<2x64xf32>
    %149 = tpu.concatenate %147, %148 in 0 : vector<2x64xf32>, vector<2x64xf32> -> vector<4x64xf32>
    %150 = arith.truncf %149 : vector<4x64xf32> to vector<4x64xbf16>
    %c0_80 = arith.constant 0 : index
    %c0_81 = arith.constant 0 : index
    %151 = vector.load %arg4[%c0_80, %c0_81] : memref<64x4xbf16, #tpu.memory_space<vmem>>, vector<64x4xbf16>
    %cst_82 = arith.constant dense<0.000000e+00> : vector<4x4xf32>
    %152 = tpu.matmul %150, %151, %cst_82 {dimension_numbers = #tpu.dot_dimension_numbers<[1], [0], [0], [1], [0, 0, 1, 1], [], []>} : vector<4x64xbf16>, vector<64x4xbf16>, vector<4x4xf32> -> vector<4x4xf32>
    %cst_83 = arith.constant 0.000000e+00 : f32
    %153 = vector.broadcast %cst_83 : f32 to vector<4x4xf32>
    %154 = arith.maximumf %152, %153 : vector<4x4xf32>
    %155 = arith.truncf %154 : vector<4x4xf32> to vector<4x4xbf16>
    %c0_84 = arith.constant 0 : index
    %c0_85 = arith.constant 0 : index
    %156 = vector.load %arg5[%c0_84, %c0_85] : memref<4x64xbf16, #tpu.memory_space<vmem>>, vector<4x64xbf16>
    %cst_86 = arith.constant dense<0.000000e+00> : vector<4x64xf32>
    %157 = tpu.matmul %155, %156, %cst_86 {dimension_numbers = #tpu.dot_dimension_numbers<[1], [0], [0], [1], [0, 0, 1, 1], [], []>} : vector<4x4xbf16>, vector<4x64xbf16>, vector<4x64xf32> -> vector<4x64xf32>
    %158 = vector.extract_strided_slice %157 {offsets = [0, 0], sizes = [2, 64], strides = [1, 1]} : vector<4x64xf32> to vector<2x64xf32>
    %159 = vector.extract_strided_slice %157 {offsets = [2, 0], sizes = [2, 64], strides = [1, 1]} : vector<4x64xf32> to vector<2x64xf32>
    %160 = arith.addf %158, %159 : vector<2x64xf32>
    %cst_87 = arith.constant 0.000000e+00 : f32
    %161 = vector.broadcast %cst_87 : f32 to vector<2x64xf32>
    %162 = arith.subf %161, %160 : vector<2x64xf32>
    %163 = math.exp %162 : vector<2x64xf32>
    %cst_88 = arith.constant 1.000000e+00 : f32
    %164 = vector.broadcast %cst_88 : f32 to vector<2x64xf32>
    %165 = arith.addf %164, %163 : vector<2x64xf32>
    %166 = tpu.reciprocal %165 {approx = true} : vector<2x64xf32> -> vector<2x64xf32>
    %167 = vector.shape_cast %166 : vector<2x64xf32> to vector<2x1x64xf32>
    %168 = vector.broadcast %167 : vector<2x1x64xf32> to vector<2x64x64xf32>
    %169 = arith.mulf %144, %168 : vector<2x64x64xf32>
    %cst_89 = arith.constant dense<0xFF800000> : vector<2x64xf32>
    %170 = vector.multi_reduction <maximumf>, %169, %cst_89 [2] : vector<2x64x64xf32> to vector<2x64xf32>
    %cst_90 = arith.constant dense<0.000000e+00> : vector<2x64xf32>
    %171 = vector.multi_reduction <add>, %169, %cst_90 [2] : vector<2x64x64xf32> to vector<2x64xf32>
    %cst_91 = arith.constant 6.400000e+01 : f32
    %172 = vector.broadcast %cst_91 : f32 to vector<2x64xf32>
    %173 = arith.divf %171, %172 : vector<2x64xf32>
    %174 = tpu.concatenate %170, %173 in 1 : vector<2x64xf32>, vector<2x64xf32> -> vector<2x128xf32>
    %175 = arith.truncf %174 : vector<2x128xf32> to vector<2x128xbf16>
    %c0_92 = arith.constant 0 : index
    %c0_93 = arith.constant 0 : index
    %176 = vector.load %arg6[%c0_92, %c0_93] : memref<128x64xbf16, #tpu.memory_space<vmem>>, vector<128x64xbf16>
    %cst_94 = arith.constant dense<0.000000e+00> : vector<2x64xf32>
    %177 = tpu.matmul %175, %176, %cst_94 {dimension_numbers = #tpu.dot_dimension_numbers<[1], [0], [0], [1], [0, 0, 1, 1], [], []>} : vector<2x128xbf16>, vector<128x64xbf16>, vector<2x64xf32> -> vector<2x64xf32>
    %178 = vector.shape_cast %177 : vector<2x64xf32> to vector<1x2x64xf32>
    %cst_95 = arith.constant dense<0.000000e+00> : vector<1xf32>
    %179 = vector.multi_reduction <add>, %178, %cst_95 [1, 2] : vector<1x2x64xf32> to vector<1xf32>
    %180 = vector.shape_cast %179 : vector<1xf32> to vector<1x1x1xf32>
    %181 = vector.extract %180[0, 0, 0] : f32 from vector<1x1x1xf32>
    %182 = vector.broadcast %181 : f32 to vector<1x1xf32>
    %cst_96 = arith.constant 1.280000e+02 : f32
    %183 = vector.broadcast %cst_96 : f32 to vector<1x1xf32>
    %184 = arith.divf %182, %183 : vector<1x1xf32>
    %185 = vector.broadcast %184 : vector<1x1xf32> to vector<2x64xf32>
    %186 = arith.subf %177, %185 : vector<2x64xf32>
    %187 = arith.mulf %186, %186 : vector<2x64xf32>
    %188 = vector.shape_cast %187 : vector<2x64xf32> to vector<1x2x64xf32>
    %cst_97 = arith.constant dense<0.000000e+00> : vector<1xf32>
    %189 = vector.multi_reduction <add>, %188, %cst_97 [1, 2] : vector<1x2x64xf32> to vector<1xf32>
    %190 = vector.shape_cast %189 : vector<1xf32> to vector<1x1x1xf32>
    %191 = vector.extract %190[0, 0, 0] : f32 from vector<1x1x1xf32>
    %192 = vector.broadcast %191 : f32 to vector<1x1xf32>
    %cst_98 = arith.constant 1.280000e+02 : f32
    %193 = vector.broadcast %cst_98 : f32 to vector<1x1xf32>
    %194 = arith.divf %192, %193 : vector<1x1xf32>
    %cst_99 = arith.constant 9.99999974E-6 : f32
    %195 = vector.broadcast %cst_99 : f32 to vector<1x1xf32>
    %196 = arith.addf %194, %195 : vector<1x1xf32>
    %197 = math.rsqrt %196 : vector<1x1xf32>
    %198 = vector.broadcast %197 : vector<1x1xf32> to vector<2x64xf32>
    %199 = arith.mulf %186, %198 : vector<2x64xf32>
    %c0_100 = arith.constant 0 : index
    %200 = memref.load %arg8[%c0_100] : memref<2xf32, #tpu.memory_space<smem>>
    %201 = vector.broadcast %200 : f32 to vector<2x64xf32>
    %202 = arith.mulf %199, %201 : vector<2x64xf32>
    %c1_101 = arith.constant 1 : index
    %203 = memref.load %arg8[%c1_101] : memref<2xf32, #tpu.memory_space<smem>>
    %204 = vector.broadcast %203 : f32 to vector<2x64xf32>
    %205 = arith.addf %202, %204 : vector<2x64xf32>
    %cst_102 = arith.constant 0.000000e+00 : f32
    %206 = vector.broadcast %cst_102 : f32 to vector<2x64xf32>
    %207 = arith.subf %206, %205 : vector<2x64xf32>
    %208 = math.exp %207 : vector<2x64xf32>
    %cst_103 = arith.constant 1.000000e+00 : f32
    %209 = vector.broadcast %cst_103 : f32 to vector<2x64xf32>
    %210 = arith.addf %209, %208 : vector<2x64xf32>
    %211 = tpu.reciprocal %210 {approx = true} : vector<2x64xf32> -> vector<2x64xf32>
    %212 = vector.shape_cast %211 : vector<2x64xf32> to vector<2x64x1xf32>
    %213 = vector.broadcast %212 : vector<2x64x1xf32> to vector<2x64x64xf32>
    %214 = arith.mulf %169, %213 : vector<2x64x64xf32>
    %215 = vector.shape_cast %214 : vector<2x64x64xf32> to vector<128x64xf32>
    %c0_104 = arith.constant 0 : index
    %c0_105 = arith.constant 0 : index
    %216 = vector.load %arg0[%c0_104, %c0_105] : memref<128x64xf32, #tpu.memory_space<vmem>>, vector<128x64xf32>
    %217 = arith.addf %215, %216 : vector<128x64xf32>
    %c0_106 = arith.constant 0 : index
    %c0_107 = arith.constant 0 : index
    %218 = vector.load %arg9[%c0_106, %c0_107] : memref<128x64xf32, #tpu.memory_space<vmem>>, vector<128x64xf32>
    tpu.vector_store %arg9[%c0_106, %c0_107], %217 {strides = array<i32>} : memref<128x64xf32, #tpu.memory_space<vmem>>, vector<128x64xf32>,
    return
  }
}

</mosaic_0001>

<llo_original>
// kernel: tpu_custom_call.1
$region0: #{tpu_custom_call.1}
  #allocation0 [shape = 'u32[]', space=smem, size = 0x4, offset = 0x4, fixed_abs, tag = 'smem constant byte address 0x4 - core index']
  #allocation1 [shape = 'u32[144,128]{1,0:T(1,128)}', space=vmem, size = 0x12000, scoped, tag = 'internal scratch']
  %s0 = inlined_call_operand.vmem [shape: f32[128,64], index: 0, kind: input, shape index: {}]
  %s1 = inlined_call_operand.vmem [shape: bf16[64,32], index: 1, kind: input, shape index: {}]
  %s2 = inlined_call_operand.hbm [shape: bf16[9,128,128], index: 2, kind: input, shape index: {}]
  %s3 = inlined_call_operand.vmem [shape: bf16[32,64], index: 3, kind: input, shape index: {}]
  %s4 = inlined_call_operand.vmem [shape: bf16[64,4], index: 4, kind: input, shape index: {}]
  %s5 = inlined_call_operand.vmem [shape: bf16[4,64], index: 5, kind: input, shape index: {}]
  %s6 = inlined_call_operand.vmem [shape: bf16[128,64], index: 6, kind: input, shape index: {}]
  %s7 = inlined_call_operand.vmem [shape: f32[16,128], index: 7, kind: input, shape index: {}]
  %s8 = inlined_call_operand.vmem [shape: f32[2], index: 8, kind: input, shape index: {}]
  %s9 = inlined_call_operand.vmem [shape: f32[128,64], index: 9, kind: output, shape index: {}]
  %s10 = sld [smem:[#allocation0]]
  $region54: #{tpu_custom_call.1} parent=0
    _
  %s12 = ssub.s32 1, %s10
  %s13 = scalar_select 0, %s12, %s10
  $region1: #{tpu_custom_call.1} parent=0
    #allocation2 [shape = 'u8[294912]{0}', space=vmem, size = 0x48000, scoped, tag = 'input window, operand 2, single buffered']
    #allocation3 [shape = 's32[1]{0}', space=sflag, size = 0x4, scoped, tag = 'scoped memory for tpu_custom_call.1']
    #allocation4 [shape = 's32[1]{0}', space=sflag, size = 0x4, scoped, tag = 'scoped memory for tpu_custom_call.1']
    #allocation5 [shape = 'u8[512]{0}', space=smem, size = 0x200, scoped, tag = 'input window, operand 8, single buffered']
    %14 = vsyncpa [#allocation3], 0
    %15 = vsyncpa [#allocation4], 0
    // Predicated region
    $region2: #{tpu_custom_call.1} parent=1 // pred_check
      _
    $region3: #{tpu_custom_call.1} parent=1 // pred_check_branch
      %17 = sbr.rel (0) target = $region5
    $region4: #{tpu_custom_call.1} parent=1 // pred_region
      _
    $region5: #{tpu_custom_call.1} parent=1 // pred_fallthru
      _
    // Predicated region
    $region6: #{tpu_custom_call.1} parent=1 // pred_check
      _
    $region7: #{tpu_custom_call.1} parent=1 // pred_check_branch
      %19 = sbr.rel (0) target = $region9
    $region8: #{tpu_custom_call.1} parent=1 // pred_region
      _
    $region9: #{tpu_custom_call.1} parent=1 // pred_fallthru
      _
    // Predicated region
    $region10: #{tpu_custom_call.1} parent=1 // pred_check
      _
    $region11: #{tpu_custom_call.1} parent=1 // pred_check_branch
      %21 = sbr.rel (0) target = $region13
    $region12: #{tpu_custom_call.1} parent=1 // pred_region
      %s23 = ssub.s32 9216, 9216
      %24 = vsyncadd [#allocation3], %s23
      %s25 = sshll.u32 [#allocation2], 4
      %s26 = int_to_ptr.vmem [resolvable:$true] %s25
      %31 = dma.hbm_to_vmem [thread:$0]  %s2, 9216, %s26, [#allocation3], 64, 64, 4
    $region13: #{tpu_custom_call.1} parent=1 // pred_fallthru
      _
    // Predicated region
    $region14: #{tpu_custom_call.1} parent=1 // pred_check
      _
    $region15: #{tpu_custom_call.1} parent=1 // pred_check_branch
      %33 = sbr.rel (0) target = $region17
    $region16: #{tpu_custom_call.1} parent=1 // pred_region
      _
    $region17: #{tpu_custom_call.1} parent=1 // pred_fallthru
      _
    // Predicated region
    $region18: #{tpu_custom_call.1} parent=1 // pred_check
      _
    $region19: #{tpu_custom_call.1} parent=1 // pred_check_branch
      %35 = sbr.rel (0) target = $region21
    $region20: #{tpu_custom_call.1} parent=1 // pred_region
      _
    $region21: #{tpu_custom_call.1} parent=1 // pred_fallthru
      _
    // Predicated region
    $region22: #{tpu_custom_call.1} parent=1 // pred_check
      _
    $region23: #{tpu_custom_call.1} parent=1 // pred_check_branch
      %37 = sbr.rel (0) target = $region25
    $region24: #{tpu_custom_call.1} parent=1 // pred_region
      _
    $region25: #{tpu_custom_call.1} parent=1 // pred_fallthru
      _
    // Predicated region
    $region26: #{tpu_custom_call.1} parent=1 // pred_check
      _
    $region27: #{tpu_custom_call.1} parent=1 // pred_check_branch
      %39 = sbr.rel (0) target = $region29
    $region28: #{tpu_custom_call.1} parent=1 // pred_region
      _
    $region29: #{tpu_custom_call.1} parent=1 // pred_fallthru
      _
    // Predicated region
    $region30: #{tpu_custom_call.1} parent=1 // pred_check
      _
    $region31: #{tpu_custom_call.1} parent=1 // pred_check_branch
      %41 = sbr.rel (0) target = $region33
    $region32: #{tpu_custom_call.1} parent=1 // pred_region
      _
    $region33: #{tpu_custom_call.1} parent=1 // pred_fallthru
      _
    // Predicated region
    $region34: #{tpu_custom_call.1} parent=1 // pred_check
      _
    $region35: #{tpu_custom_call.1} parent=1 // pred_check_branch
      %43 = sbr.rel (0) target = $region37
    $region36: #{tpu_custom_call.1} parent=1 // pred_region
      %s45 = ssub.s32 16, 16
      %46 = vsyncadd [#allocation4], %s45
      %s48 = sshll.u32 %s8, 4
      %s49 = int_to_ptr.vmem [resolvable:$true] %s48
      %51 = dma.vmem_to_smem %s49, 16, [#allocation5], [#allocation4]
    $region37: #{tpu_custom_call.1} parent=1 // pred_fallthru
      _
    // Predicated region
    $region38: #{tpu_custom_call.1} parent=1 // pred_check
      _
    $region39: #{tpu_custom_call.1} parent=1 // pred_check_branch
      %53 = sbr.rel (0) target = $region41
    $region40: #{tpu_custom_call.1} parent=1 // pred_region
      %54 = dma.done [#allocation3], 9216
    $region41: #{tpu_custom_call.1} parent=1 // pred_fallthru
      _
    // Predicated region
    $region42: #{tpu_custom_call.1} parent=1 // pred_check
      _
    $region43: #{tpu_custom_call.1} parent=1 // pred_check_branch
      %56 = sbr.rel (0) target = $region45
    $region44: #{tpu_custom_call.1} parent=1 // pred_region
      %57 = dma.done [#allocation4], 16
    $region45: #{tpu_custom_call.1} parent=1 // pred_fallthru
      _
    %58 = sfence
    %v60 = vld [vmem:[%s0] sm:$0xff]
    %v61 = vld [vmem:[%s0 + $0x8] sm:$0xff]
    %v62 = vld [vmem:[%s0 + $0x10] sm:$0xff]
    %v63 = vld [vmem:[%s0 + $0x18] sm:$0xff]
    %v64 = vld [vmem:[%s0 + $0x20] sm:$0xff]
    %v65 = vld [vmem:[%s0 + $0x28] sm:$0xff]
    %v66 = vld [vmem:[%s0 + $0x30] sm:$0xff]
    %v67 = vld [vmem:[%s0 + $0x38] sm:$0xff]
    %v68 = vld [vmem:[%s0 + $0x40] sm:$0xff]
    %v69 = vld [vmem:[%s0 + $0x48] sm:$0xff]
    %v70 = vld [vmem:[%s0 + $0x50] sm:$0xff]
    %v71 = vld [vmem:[%s0 + $0x58] sm:$0xff]
    %v72 = vld [vmem:[%s0 + $0x60] sm:$0xff]
    %v73 = vld [vmem:[%s0 + $0x68] sm:$0xff]
    %v74 = vld [vmem:[%s0 + $0x70] sm:$0xff]
    %v75 = vld [vmem:[%s0 + $0x78] sm:$0xff]
    %v76 = vpack.c.bf16 %v61, %v60
    %v77 = vpack.c.bf16 %v63, %v62
    %v78 = vpack.c.bf16 %v65, %v64
    %v79 = vpack.c.bf16 %v67, %v66
    %v80 = vpack.c.bf16 %v69, %v68
    %v81 = vpack.c.bf16 %v71, %v70
    %v82 = vpack.c.bf16 %v73, %v72
    %v83 = vpack.c.bf16 %v75, %v74
    %v84 = vld [vmem:[%s1] sm:$0xf]
    %v85 = vld [vmem:[%s1 + $0x4] sm:$0xf]
    %v86 = vld [vmem:[%s1 + $0x8] sm:$0xf]
    %v87 = vld [vmem:[%s1 + $0xc] sm:$0xf]
    %v88 = vld [vmem:[%s1 + $0x10] sm:$0xf]
    %v89 = vld [vmem:[%s1 + $0x14] sm:$0xf]
    %v90 = vld [vmem:[%s1 + $0x18] sm:$0xf]
    %v91 = vld [vmem:[%s1 + $0x1c] sm:$0xf]
    %v100 = vunpack.c.l.b16 %v84
    %v101 = vunpack.c.l.b16 %v85
    %v102 = vunpack.c.l.b16 %v86
    %v103 = vunpack.c.l.b16 %v87
    %v104 = vunpack.c.l.b16 %v88
    %v105 = vunpack.c.l.b16 %v89
    %v106 = vunpack.c.l.b16 %v90
    %v107 = vunpack.c.l.b16 %v91
    %v108 = vpack.c.b16 %v101, %v100
    %v109 = vpack.c.b16 %v103, %v102
    %v110 = vpack.c.b16 %v105, %v104
    %v111 = vpack.c.b16 %v107, %v106
    %vm116 = vcmask 523264
    %v118 = vsel %vm116, %v76, 0
    %v121 = vsel %vm116, %v77, 0
    %v124 = vsel %vm116, %v78, 0
    %v127 = vsel %vm116, %v79, 0
    %v130 = vsel %vm116, %v80, 0
    %v133 = vsel %vm116, %v81, 0
    %v136 = vsel %vm116, %v82, 0
    %v139 = vsel %vm116, %v83, 0
    %141 = vmatprep.subr.bf16.mxu0 0
    %142 = vmatpush1.bf16.msra.mxu0 0
    %143 = vmatprep.subr.bf16.mxu0 0
    %144 = vmatpush1.bf16.msra.mxu0 0
    %145 = vmatprep.subr.bf16.mxu0 0
    %146 = vmatpush1.bf16.msra.mxu0 0
    %147 = vmatprep.subr.bf16.mxu0 0
    %148 = vmatpush1.bf16.msra.mxu0 0
    %149 = vmatprep.subr.bf16.mxu0 0
    %150 = vmatpush1.bf16.msra.mxu0 %v111
    %151 = vmatprep.subr.bf16.mxu0 0
    %152 = vmatpush1.bf16.msra.mxu0 %v110
    %153 = vmatprep.subr.bf16.mxu0 0
    %154 = vmatpush1.bf16.msra.mxu0 %v109
    %155 = vmatprep.subr.bf16.mxu0 0
    %156 = vmatpush1.bf16.msra.mxu0 %v108
    %157 = vmatprep.subr.bf16.mxu0 0
    %158 = vmatpush2.bf16.msra.mxu0 0
    %159 = vmatprep.subr.bf16.mxu0 0
    %160 = vmatpush2.bf16.msra.mxu0 0
    %161 = vmatprep.subr.bf16.mxu0 0
    %162 = vmatpush2.bf16.msra.mxu0 0
    %163 = vmatprep.subr.bf16.mxu0 0
    %164 = vmatpush2.bf16.msra.mxu0 0
    %165 = vmatprep.subr.bf16.mxu0 0
    %166 = vmatpush2.bf16.msra.mxu0 0
    %167 = vmatprep.subr.bf16.mxu0 0
    %168 = vmatpush2.bf16.msra.mxu0 0
    %169 = vmatprep.subr.bf16.mxu0 0
    %170 = vmatpush2.bf16.msra.mxu0 0
    %171 = vmatprep.subr.bf16.mxu0 0
    %172 = vmatpush2.bf16.msra.mxu0 0
    %173 = vmatprep.mubr.bf16.mxu0 0
    %174 = vmatmul.mubr.bf16.gmra.mxu0 %v118
    %v175 = vpop.f32.mrf.mxu0
    %v176 = vadd.f32 0.0, %v175
    %v177 = vpop.f32.mrf.mxu0
    %v178 = vpop.f32.mrf.mxu0
    %v179 = vadd.f32 0.0, %v178
    %v180 = vpop.f32.mrf.mxu0
    %181 = vmatprep.mubr.bf16.mxu0 0
    %182 = vmatmul.mubr.bf16.gmra.mxu0 %v121
    %v183 = vpop.f32.mrf.mxu0
    %v184 = vadd.f32 0.0, %v183
    %v185 = vpop.f32.mrf.mxu0
    %v186 = vpop.f32.mrf.mxu0
    %v187 = vadd.f32 0.0, %v186
    %v188 = vpop.f32.mrf.mxu0
    %189 = vmatprep.mubr.bf16.mxu0 0
    %190 = vmatmul.mubr.bf16.gmra.mxu0 %v124
    %v191 = vpop.f32.mrf.mxu0
    %v192 = vadd.f32 0.0, %v191
    %v193 = vpop.f32.mrf.mxu0
    %v194 = vpop.f32.mrf.mxu0
    %v195 = vadd.f32 0.0, %v194
    %v196 = vpop.f32.mrf.mxu0
    %197 = vmatprep.mubr.bf16.mxu0 0
    %198 = vmatmul.mubr.bf16.gmra.mxu0 %v127
    %v199 = vpop.f32.mrf.mxu0
    %v200 = vadd.f32 0.0, %v199
    %v201 = vpop.f32.mrf.mxu0
    %v202 = vpop.f32.mrf.mxu0
    %v203 = vadd.f32 0.0, %v202
    %v204 = vpop.f32.mrf.mxu0
    %205 = vmatprep.mubr.bf16.mxu0 0
    %206 = vmatmul.mubr.bf16.gmra.mxu0 %v130
    %v207 = vpop.f32.mrf.mxu0
    %v208 = vadd.f32 0.0, %v207
    %v209 = vpop.f32.mrf.mxu0
    %v210 = vpop.f32.mrf.mxu0
    %v211 = vadd.f32 0.0, %v210
    %v212 = vpop.f32.mrf.mxu0
    %213 = vmatprep.mubr.bf16.mxu0 0
    %214 = vmatmul.mubr.bf16.gmra.mxu0 %v133
    %v215 = vpop.f32.mrf.mxu0
    %v216 = vadd.f32 0.0, %v215
    %v217 = vpop.f32.mrf.mxu0
    %v218 = vpop.f32.mrf.mxu0
    %v219 = vadd.f32 0.0, %v218
    %v220 = vpop.f32.mrf.mxu0
    %221 = vmatprep.mubr.bf16.mxu0 0
    %222 = vmatmul.mubr.bf16.gmra.mxu0 %v136
    %v223 = vpop.f32.mrf.mxu0
    %v224 = vadd.f32 0.0, %v223
    %v225 = vpop.f32.mrf.mxu0
    %v226 = vpop.f32.mrf.mxu0
    %v227 = vadd.f32 0.0, %v226
    %v228 = vpop.f32.mrf.mxu0
    %229 = vmatprep.mubr.bf16.mxu0 0
    %230 = vmatmul.mubr.bf16.gmra.mxu0 %v139
    %v231 = vpop.f32.mrf.mxu0
    %v232 = vadd.f32 0.0, %v231
    %v233 = vpop.f32.mrf.mxu0
    %v234 = vpop.f32.mrf.mxu0
    %v235 = vadd.f32 0.0, %v234
    %v236 = vpop.f32.mrf.mxu0
    %237 = vdwg.mxu0
    %v238 = vld [vmem:[%s7] sm:$0x1]
    %v239 = vld [vmem:[%s7 + $0x1] sm:$0x1]
    %vm240 = vcmask 261120
    %v241 = vsel %vm240, %v176, 0.0
    %v242 = vsel %vm240, %v179, 0.0
    %v243 = vadd.f32 %v241, %v242
    %v244 = vsel %vm240, %v184, 0.0
    %v245 = vadd.f32 %v243, %v244
    %v246 = vsel %vm240, %v187, 0.0
    %v247 = vadd.f32 %v245, %v246
    %v248 = vsel %vm240, %v192, 0.0
    %v249 = vadd.f32 %v247, %v248
    %v250 = vsel %vm240, %v195, 0.0
    %v251 = vadd.f32 %v249, %v250
    %v252 = vsel %vm240, %v200, 0.0
    %v253 = vadd.f32 %v251, %v252
    %v254 = vsel %vm240, %v203, 0.0
    %v255 = vadd.f32 %v253, %v254
    %v256 = vsel %vm240, %v208, 0.0
    %v257 = vadd.f32 %v255, %v256
    %v258 = vsel %vm240, %v211, 0.0
    %v259 = vadd.f32 %v257, %v258
    %v260 = vsel %vm240, %v216, 0.0
    %v261 = vadd.f32 %v259, %v260
    %v262 = vsel %vm240, %v219, 0.0
    %v263 = vadd.f32 %v261, %v262
    %v264 = vsel %vm240, %v224, 0.0
    %v265 = vadd.f32 %v263, %v264
    %v266 = vsel %vm240, %v227, 0.0
    %v267 = vadd.f32 %v265, %v266
    %v268 = vsel %vm240, %v232, 0.0
    %v269 = vadd.f32 %v267, %v268
    %v270 = vsel %vm240, %v235, 0.0
    %v271 = vadd.f32 %v269, %v270
    %v272 = vrot.slane %v271, 4
    %v273 = vadd.f32 %v271, %v272
    %v274 = vrot.slane %v273, 2
    %v275 = vadd.f32 %v273, %v274
    %v276 = vrot.slane %v275, 1
    %v277 = vadd.f32 %v275, %v276
    %v278 = vrcp.pop 128.0
    %v279 = vmul.f32 %v277, %v278
    %v280 = vsub.f32 %v176, %v279
    %v281 = vsub.f32 %v179, %v279
    %v282 = vsub.f32 %v184, %v279
    %v283 = vsub.f32 %v187, %v279
    %v284 = vsub.f32 %v192, %v279
    %v285 = vsub.f32 %v195, %v279
    %v286 = vsub.f32 %v200, %v279
    %v287 = vsub.f32 %v203, %v279
    %v288 = vsub.f32 %v208, %v279
    %v289 = vsub.f32 %v211, %v279
    %v290 = vsub.f32 %v216, %v279
    %v291 = vsub.f32 %v219, %v279
    %v292 = vsub.f32 %v224, %v279
    %v293 = vsub.f32 %v227, %v279
    %v294 = vsub.f32 %v232, %v279
    %v295 = vsub.f32 %v235, %v279
    %v296 = vmul.f32 %v280, %v280
    %v297 = vmul.f32 %v281, %v281
    %v298 = vmul.f32 %v282, %v282
    %v299 = vmul.f32 %v283, %v283
    %v300 = vmul.f32 %v284, %v284
    %v301 = vmul.f32 %v285, %v285
    %v302 = vmul.f32 %v286, %v286
    %v303 = vmul.f32 %v287, %v287
    %v304 = vmul.f32 %v288, %v288
    %v305 = vmul.f32 %v289, %v289
    %v306 = vmul.f32 %v290, %v290
    %v307 = vmul.f32 %v291, %v291
    %v308 = vmul.f32 %v292, %v292
    %v309 = vmul.f32 %v293, %v293
    %v310 = vmul.f32 %v294, %v294
    %v311 = vmul.f32 %v295, %v295
    %v312 = vsel %vm240, %v296, 0.0
    %v313 = vsel %vm240, %v297, 0.0
    %v314 = vadd.f32 %v312, %v313
    %v315 = vsel %vm240, %v298, 0.0
    %v316 = vadd.f32 %v314, %v315
    %v317 = vsel %vm240, %v299, 0.0
    %v318 = vadd.f32 %v316, %v317
    %v319 = vsel %vm240, %v300, 0.0
    %v320 = vadd.f32 %v318, %v319
    %v321 = vsel %vm240, %v301, 0.0
    %v322 = vadd.f32 %v320, %v321
    %v323 = vsel %vm240, %v302, 0.0
    %v324 = vadd.f32 %v322, %v323
    %v325 = vsel %vm240, %v303, 0.0
    %v326 = vadd.f32 %v324, %v325
    %v327 = vsel %vm240, %v304, 0.0
    %v328 = vadd.f32 %v326, %v327
    %v329 = vsel %vm240, %v305, 0.0
    %v330 = vadd.f32 %v328, %v329
    %v331 = vsel %vm240, %v306, 0.0
    %v332 = vadd.f32 %v330, %v331
    %v333 = vsel %vm240, %v307, 0.0
    %v334 = vadd.f32 %v332, %v333
    %v335 = vsel %vm240, %v308, 0.0
    %v336 = vadd.f32 %v334, %v335
    %v337 = vsel %vm240, %v309, 0.0
    %v338 = vadd.f32 %v336, %v337
    %v339 = vsel %vm240, %v310, 0.0
    %v340 = vadd.f32 %v338, %v339
    %v341 = vsel %vm240, %v311, 0.0
    %v342 = vadd.f32 %v340, %v341
    %v343 = vrot.slane %v342, 4
    %v344 = vadd.f32 %v342, %v343
    %v345 = vrot.slane %v344, 2
    %v346 = vadd.f32 %v344, %v345
    %v347 = vrot.slane %v346, 1
    %v348 = vadd.f32 %v346, %v347
    %v349 = vmul.f32 %v348, %v278
    %v350 = vadd.f32 %v349, 1e-05
    %v351 = vrsqrt.pop %v350
    %v352 = vmul.f32 %v280, %v351
    %v353 = vmul.f32 %v281, %v351
    %v354 = vmul.f32 %v282, %v351
    %v355 = vmul.f32 %v283, %v351
    %v356 = vmul.f32 %v284, %v351
    %v357 = vmul.f32 %v285, %v351
    %v358 = vmul.f32 %v286, %v351
    %v359 = vmul.f32 %v287, %v351
    %v360 = vmul.f32 %v288, %v351
    %v361 = vmul.f32 %v289, %v351
    %v362 = vmul.f32 %v290, %v351
    %v363 = vmul.f32 %v291, %v351
    %v364 = vmul.f32 %v292, %v351
    %v365 = vmul.f32 %v293, %v351
    %v366 = vmul.f32 %v294, %v351
    %v367 = vmul.f32 %v295, %v351
    %v368 = vlaneseq
    %v369 = vshrl.u32 %v368, 7
    %v370 = vsub.s32 0, %v369
    %v371 = vrot.slane %v238, %v370
    %v372 = vmul.f32 %v352, %v371
    %v373 = vmul.f32 %v353, %v371
    %v374 = vmul.f32 %v354, %v371
    %v375 = vmul.f32 %v355, %v371
    %v376 = vmul.f32 %v356, %v371
    %v377 = vmul.f32 %v357, %v371
    %v378 = vmul.f32 %v358, %v371
    %v379 = vmul.f32 %v359, %v371
    %v380 = vmul.f32 %v360, %v371
    %v381 = vmul.f32 %v361, %v371
    %v382 = vmul.f32 %v362, %v371
    %v383 = vmul.f32 %v363, %v371
    %v384 = vmul.f32 %v364, %v371
    %v385 = vmul.f32 %v365, %v371
    %v386 = vmul.f32 %v366, %v371
    %v387 = vmul.f32 %v367, %v371
    %v388 = vlaneseq
    %v389 = vshrl.u32 %v388, 7
    %v390 = vsub.s32 0, %v389
    %v391 = vrot.slane %v239, %v390
    %v392 = vadd.f32 %v372, %v391
    %v393 = vadd.f32 %v373, %v391
    %v394 = vadd.f32 %v374, %v391
    %v395 = vadd.f32 %v375, %v391
    %v396 = vadd.f32 %v376, %v391
    %v397 = vadd.f32 %v377, %v391
    %v398 = vadd.f32 %v378, %v391
    %v399 = vadd.f32 %v379, %v391
    %v400 = vadd.f32 %v380, %v391
    %v401 = vadd.f32 %v381, %v391
    %v402 = vadd.f32 %v382, %v391
    %v403 = vadd.f32 %v383, %v391
    %v404 = vadd.f32 %v384, %v391
    %v405 = vadd.f32 %v385, %v391
    %v406 = vadd.f32 %v386, %v391
    %v407 = vadd.f32 %v387, %v391
    %v408 = vmax.f32 %v392, 0.0
    %v409 = vmax.f32 %v393, 0.0
    %v410 = vmax.f32 %v394, 0.0
    %v411 = vmax.f32 %v395, 0.0
    %v412 = vmax.f32 %v396, 0.0
    %v413 = vmax.f32 %v397, 0.0
    %v414 = vmax.f32 %v398, 0.0
    %v415 = vmax.f32 %v399, 0.0
    %v416 = vmax.f32 %v400, 0.0
    %v417 = vmax.f32 %v401, 0.0
    %v418 = vmax.f32 %v402, 0.0
    %v419 = vmax.f32 %v403, 0.0
    %v420 = vmax.f32 %v404, 0.0
    %v421 = vmax.f32 %v405, 0.0
    %v422 = vmax.f32 %v406, 0.0
    %v423 = vmax.f32 %v407, 0.0
    %v424 = vpack.c.bf16 %v409, %v408
    %v425 = vpack.c.bf16 %v411, %v410
    %v426 = vpack.c.bf16 %v413, %v412
    %v427 = vpack.c.bf16 %v415, %v414
    %v428 = vpack.c.bf16 %v417, %v416
    %v429 = vpack.c.bf16 %v419, %v418
    %v430 = vpack.c.bf16 %v421, %v420
    %v431 = vpack.c.bf16 %v423, %v422
    %v432 = vld [vmem:[#allocation2] sm:$0xf]
    %v433 = vld [vmem:[#allocation2 + $0x4] sm:$0xf]
    %v434 = vld [vmem:[#allocation2 + $0x8] sm:$0xf]
    %v435 = vld [vmem:[#allocation2 + $0xc] sm:$0xf]
    %v436 = vld [vmem:[#allocation2 + $0x10] sm:$0xf]
    %v437 = vld [vmem:[#allocation2 + $0x14] sm:$0xf]
    %v438 = vld [vmem:[#allocation2 + $0x18] sm:$0xf]
    %v439 = vld [vmem:[#allocation2 + $0x1c] sm:$0xf]
    %v440 = vld [vmem:[#allocation2 + $0x20] sm:$0xf]
    %v441 = vld [vmem:[#allocation2 + $0x24] sm:$0xf]
    %v442 = vld [vmem:[#allocation2 + $0x28] sm:$0xf]
    %v443 = vld [vmem:[#allocation2 + $0x2c] sm:$0xf]
    %v444 = vld [vmem:[#allocation2 + $0x30] sm:$0xf]
    %v445 = vld [vmem:[#allocation2 + $0x34] sm:$0xf]
    %v446 = vld [vmem:[#allocation2 + $0x38] sm:$0xf]
    %v447 = vld [vmem:[#allocation2 + $0x3c] sm:$0xf]
    %v464 = vunpack.c.l.b16 %v432
    %v465 = vunpack.c.l.b16 %v433
    %v466 = vunpack.c.l.b16 %v434
    %v467 = vunpack.c.l.b16 %v435
    %v468 = vunpack.c.l.b16 %v436
    %v469 = vunpack.c.l.b16 %v437
    %v470 = vunpack.c.l.b16 %v438
    %v471 = vunpack.c.l.b16 %v439
    %v472 = vunpack.c.l.b16 %v440
    %v473 = vunpack.c.l.b16 %v441
    %v474 = vunpack.c.l.b16 %v442
    %v475 = vunpack.c.l.b16 %v443
    %v476 = vunpack.c.l.b16 %v444
    %v477 = vunpack.c.l.b16 %v445
    %v478 = vunpack.c.l.b16 %v446
    %v479 = vunpack.c.l.b16 %v447
    %v480 = vpack.c.b16 %v465, %v464
    %v481 = vpack.c.b16 %v467, %v466
    %v482 = vpack.c.b16 %v469, %v468
    %v483 = vpack.c.b16 %v471, %v470
    %v484 = vpack.c.b16 %v473, %v472
    %v485 = vpack.c.b16 %v475, %v474
    %v486 = vpack.c.b16 %v477, %v476
    %v487 = vpack.c.b16 %v479, %v478
    %496 = vmatprep.subr.bf16.mxu0 0
    %497 = vmatpush1.bf16.msra.mxu0 %v431
    %498 = vmatprep.subr.bf16.mxu0 0
    %499 = vmatpush1.bf16.msra.mxu0 %v430
    %500 = vmatprep.subr.bf16.mxu0 0
    %501 = vmatpush1.bf16.msra.mxu0 %v429
    %502 = vmatprep.subr.bf16.mxu0 0
    %503 = vmatpush1.bf16.msra.mxu0 %v428
    %504 = vmatprep.subr.bf16.mxu0 0
    %505 = vmatpush1.bf16.msra.mxu0 %v427
    %506 = vmatprep.subr.bf16.mxu0 0
    %507 = vmatpush1.bf16.msra.mxu0 %v426
    %508 = vmatprep.subr.bf16.mxu0 0
    %509 = vmatpush1.bf16.msra.mxu0 %v425
    %510 = vmatprep.subr.bf16.mxu0 0
    %511 = vmatpush1.bf16.msra.mxu0 %v424
    %512 = vmatprep.subr.bf16.mxu0 0
    %513 = vmatpush2.bf16.msra.mxu0 0
    %514 = vmatprep.subr.bf16.mxu0 0
    %515 = vmatpush2.bf16.msra.mxu0 0
    %516 = vmatprep.subr.bf16.mxu0 0
    %517 = vmatpush2.bf16.msra.mxu0 0
    %518 = vmatprep.subr.bf16.mxu0 0
    %519 = vmatpush2.bf16.msra.mxu0 0
    %520 = vmatprep.subr.bf16.mxu0 0
    %521 = vmatpush2.bf16.msra.mxu0 0
    %522 = vmatprep.subr.bf16.mxu0 0
    %523 = vmatpush2.bf16.msra.mxu0 0
    %524 = vmatprep.subr.bf16.mxu0 0
    %525 = vmatpush2.bf16.msra.mxu0 0
    %526 = vmatprep.subr.bf16.mxu0 0
    %527 = vmatpush2.bf16.msra.mxu0 0
    %528 = vmatprep.mubr.bf16.mxu0 0
    %529 = vmatmul.mubr.bf16.gmra.mxu0 %v480
    %v530 = vpop.f32.mrf.mxu0
    %v531 = vadd.f32 0.0, %v530
    %v532 = vpop.f32.mrf.mxu0
    %v533 = vpop.f32.mrf.mxu0
    %v534 = vadd.f32 0.0, %v533
    %v535 = vpop.f32.mrf.mxu0
    %536 = vmatprep.mubr.bf16.mxu0 0
    %537 = vmatmul.mubr.bf16.gmra.mxu0 %v481
    %v538 = vpop.f32.mrf.mxu0
    %v539 = vadd.f32 0.0, %v538
    %v540 = vpop.f32.mrf.mxu0
    %v541 = vpop.f32.mrf.mxu0
    %v542 = vadd.f32 0.0, %v541
    %v543 = vpop.f32.mrf.mxu0
    %544 = vmatprep.mubr.bf16.mxu0 0
    %545 = vmatmul.mubr.bf16.gmra.mxu0 %v482
    %v546 = vpop.f32.mrf.mxu0
    %v547 = vadd.f32 0.0, %v546
    %v548 = vpop.f32.mrf.mxu0
    %v549 = vpop.f32.mrf.mxu0
    %v550 = vadd.f32 0.0, %v549
    %v551 = vpop.f32.mrf.mxu0
    %552 = vmatprep.mubr.bf16.mxu0 0
    %553 = vmatmul.mubr.bf16.gmra.mxu0 %v483
    %v554 = vpop.f32.mrf.mxu0
    %v555 = vadd.f32 0.0, %v554
    %v556 = vpop.f32.mrf.mxu0
    %v557 = vpop.f32.mrf.mxu0
    %v558 = vadd.f32 0.0, %v557
    %v559 = vpop.f32.mrf.mxu0
    %560 = vmatprep.mubr.bf16.mxu0 0
    %561 = vmatmul.mubr.bf16.gmra.mxu0 %v484
    %v562 = vpop.f32.mrf.mxu0
    %v563 = vadd.f32 0.0, %v562
    %v564 = vpop.f32.mrf.mxu0
    %v565 = vpop.f32.mrf.mxu0
    %v566 = vadd.f32 0.0, %v565
    %v567 = vpop.f32.mrf.mxu0
    %568 = vmatprep.mubr.bf16.mxu0 0
    %569 = vmatmul.mubr.bf16.gmra.mxu0 %v485
    %v570 = vpop.f32.mrf.mxu0
    %v571 = vadd.f32 0.0, %v570
    %v572 = vpop.f32.mrf.mxu0
    %v573 = vpop.f32.mrf.mxu0
    %v574 = vadd.f32 0.0, %v573
    %v575 = vpop.f32.mrf.mxu0
    %576 = vmatprep.mubr.bf16.mxu0 0
    %577 = vmatmul.mubr.bf16.gmra.mxu0 %v486
    %v578 = vpop.f32.mrf.mxu0
    %v579 = vadd.f32 0.0, %v578
    %v580 = vpop.f32.mrf.mxu0
    %v581 = vpop.f32.mrf.mxu0
    %v582 = vadd.f32 0.0, %v581
    %v583 = vpop.f32.mrf.mxu0
    %584 = vmatprep.mubr.bf16.mxu0 0
    %585 = vmatmul.mubr.bf16.gmra.mxu0 %v487
    %v586 = vpop.f32.mrf.mxu0
    %v587 = vadd.f32 0.0, %v586
    %v588 = vpop.f32.mrf.mxu0
    %v589 = vpop.f32.mrf.mxu0
    %v590 = vadd.f32 0.0, %v589
    %v591 = vpop.f32.mrf.mxu0
    %592 = vdwg.mxu0
    %v593 = vld [vmem:[%s7 + $0x6] sm:$0x1]
    %v594 = vlaneseq
    %v595 = vshrl.u32 %v594, 7
    %v596 = vsub.s32 0, %v595
    %v597 = vrot.slane %v593, %v596
    %v598 = vmul.f32 %v531, %v597
    %v599 = vmul.f32 %v534, %v597
    %v600 = vmul.f32 %v539, %v597
    %v601 = vmul.f32 %v542, %v597
    %v602 = vmul.f32 %v547, %v597
    %v603 = vmul.f32 %v550, %v597
    %v604 = vmul.f32 %v555, %v597
    %v605 = vmul.f32 %v558, %v597
    %v606 = vmul.f32 %v563, %v597
    %v607 = vmul.f32 %v566, %v597
    %v608 = vmul.f32 %v571, %v597
    %v609 = vmul.f32 %v574, %v597
    %v610 = vmul.f32 %v579, %v597
    %v611 = vmul.f32 %v582, %v597
    %v612 = vmul.f32 %v587, %v597
    %v613 = vmul.f32 %v590, %v597
    %v614 = vadd.f32 %v598, 0.0
    %v615 = vadd.f32 %v599, 0.0
    %v616 = vadd.f32 %v600, 0.0
    %v617 = vadd.f32 %v601, 0.0
    %v618 = vadd.f32 %v602, 0.0
    %v619 = vadd.f32 %v603, 0.0
    %v620 = vadd.f32 %v604, 0.0
    %v621 = vadd.f32 %v605, 0.0
    %v622 = vadd.f32 %v606, 0.0
    %v623 = vadd.f32 %v607, 0.0
    %v624 = vadd.f32 %v608, 0.0
    %v625 = vadd.f32 %v609, 0.0
    %v626 = vadd.f32 %v610, 0.0
    %v627 = vadd.f32 %v611, 0.0
    %v628 = vadd.f32 %v612, 0.0
    %v629 = vadd.f32 %v613, 0.0
    %s630 = scalar_lea.vmem [#allocation2], 64
    %v631 = vld [vmem:[%s630] sm:$0xf]
    %v632 = vld [vmem:[%s630 + $0x4] sm:$0xf]
    %v633 = vld [vmem:[%s630 + $0x8] sm:$0xf]
    %v634 = vld [vmem:[%s630 + $0xc] sm:$0xf]
    %v635 = vld [vmem:[%s630 + $0x10] sm:$0xf]
    %v636 = vld [vmem:[%s630 + $0x14] sm:$0xf]
    %v637 = vld [vmem:[%s630 + $0x18] sm:$0xf]
    %v638 = vld [vmem:[%s630 + $0x1c] sm:$0xf]
    %v639 = vld [vmem:[%s630 + $0x20] sm:$0xf]
    %v640 = vld [vmem:[%s630 + $0x24] sm:$0xf]
    %v641 = vld [vmem:[%s630 + $0x28] sm:$0xf]
    %v642 = vld [vmem:[%s630 + $0x2c] sm:$0xf]
    %v643 = vld [vmem:[%s630 + $0x30] sm:$0xf]
    %v644 = vld [vmem:[%s630 + $0x34] sm:$0xf]
    %v645 = vld [vmem:[%s630 + $0x38] sm:$0xf]
    %v646 = vld [vmem:[%s630 + $0x3c] sm:$0xf]
    %v663 = vunpack.c.l.b16 %v631
    %v664 = vunpack.c.l.b16 %v632
    %v665 = vunpack.c.l.b16 %v633
    %v666 = vunpack.c.l.b16 %v634
    %v667 = vunpack.c.l.b16 %v635
    %v668 = vunpack.c.l.b16 %v636
    %v669 = vunpack.c.l.b16 %v637
    %v670 = vunpack.c.l.b16 %v638
    %v671 = vunpack.c.l.b16 %v639
    %v672 = vunpack.c.l.b16 %v640
    %v673 = vunpack.c.l.b16 %v641
    %v674 = vunpack.c.l.b16 %v642
    %v675 = vunpack.c.l.b16 %v643
    %v676 = vunpack.c.l.b16 %v644
    %v677 = vunpack.c.l.b16 %v645
    %v678 = vunpack.c.l.b16 %v646
    %v679 = vpack.c.b16 %v664, %v663
    %v680 = vpack.c.b16 %v666, %v665
    %v681 = vpack.c.b16 %v668, %v667
    %v682 = vpack.c.b16 %v670, %v669
    %v683 = vpack.c.b16 %v672, %v671
    %v684 = vpack.c.b16 %v674, %v673
    %v685 = vpack.c.b16 %v676, %v675
    %v686 = vpack.c.b16 %v678, %v677
    %695 = vmatprep.subr.bf16.mxu0 0
    %696 = vmatpush1.bf16.msra.mxu0 %v431
    %697 = vmatprep.subr.bf16.mxu0 0
    %698 = vmatpush1.bf16.msra.mxu0 %v430
    %699 = vmatprep.subr.bf16.mxu0 0
    %700 = vmatpush1.bf16.msra.mxu0 %v429
    %701 = vmatprep.subr.bf16.mxu0 0
    %702 = vmatpush1.bf16.msra.mxu0 %v428
    %703 = vmatprep.subr.bf16.mxu0 0
    %704 = vmatpush1.bf16.msra.mxu0 %v427
    %705 = vmatprep.subr.bf16.mxu0 0
    %706 = vmatpush1.bf16.msra.mxu0 %v426
    %707 = vmatprep.subr.bf16.mxu0 0
    %708 = vmatpush1.bf16.msra.mxu0 %v425
    %709 = vmatprep.subr.bf16.mxu0 0
    %710 = vmatpush1.bf16.msra.mxu0 %v424
    %711 = vmatprep.subr.bf16.mxu0 0
    %712 = vmatpush2.bf16.msra.mxu0 0
    %713 = vmatprep.subr.bf16.mxu0 0
    %714 = vmatpush2.bf16.msra.mxu0 0
    %715 = vmatprep.subr.bf16.mxu0 0
    %716 = vmatpush2.bf16.msra.mxu0 0
    %717 = vmatprep.subr.bf16.mxu0 0
    %718 = vmatpush2.bf16.msra.mxu0 0
    %719 = vmatprep.subr.bf16.mxu0 0
    %720 = vmatpush2.bf16.msra.mxu0 0
    %721 = vmatprep.subr.bf16.mxu0 0
    %722 = vmatpush2.bf16.msra.mxu0 0
    %723 = vmatprep.subr.bf16.mxu0 0
    %724 = vmatpush2.bf16.msra.mxu0 0
    %725 = vmatprep.subr.bf16.mxu0 0
    %726 = vmatpush2.bf16.msra.mxu0 0
    %727 = vmatprep.mubr.bf16.mxu0 0
    %728 = vmatmul.mubr.bf16.gmra.mxu0 %v679
    %v729 = vpop.f32.mrf.mxu0
    %v730 = vadd.f32 0.0, %v729
    %v731 = vpop.f32.mrf.mxu0
    %v732 = vpop.f32.mrf.mxu0
    %v733 = vadd.f32 0.0, %v732
    %v734 = vpop.f32.mrf.mxu0
    %735 = vmatprep.mubr.bf16.mxu0 0
    %736 = vmatmul.mubr.bf16.gmra.mxu0 %v680
    %v737 = vpop.f32.mrf.mxu0
    %v738 = vadd.f32 0.0, %v737
    %v739 = vpop.f32.mrf.mxu0
    %v740 = vpop.f32.mrf.mxu0
    %v741 = vadd.f32 0.0, %v740
    %v742 = vpop.f32.mrf.mxu0
    %743 = vmatprep.mubr.bf16.mxu0 0
    %744 = vmatmul.mubr.bf16.gmra.mxu0 %v681
    %v745 = vpop.f32.mrf.mxu0
    %v746 = vadd.f32 0.0, %v745
    %v747 = vpop.f32.mrf.mxu0
    %v748 = vpop.f32.mrf.mxu0
    %v749 = vadd.f32 0.0, %v748
    %v750 = vpop.f32.mrf.mxu0
    %751 = vmatprep.mubr.bf16.mxu0 0
    %752 = vmatmul.mubr.bf16.gmra.mxu0 %v682
    %v753 = vpop.f32.mrf.mxu0
    %v754 = vadd.f32 0.0, %v753
    %v755 = vpop.f32.mrf.mxu0
    %v756 = vpop.f32.mrf.mxu0
    %v757 = vadd.f32 0.0, %v756
    %v758 = vpop.f32.mrf.mxu0
    %759 = vmatprep.mubr.bf16.mxu0 0
    %760 = vmatmul.mubr.bf16.gmra.mxu0 %v683
    %v761 = vpop.f32.mrf.mxu0
    %v762 = vadd.f32 0.0, %v761
    %v763 = vpop.f32.mrf.mxu0
    %v764 = vpop.f32.mrf.mxu0
    %v765 = vadd.f32 0.0, %v764
    %v766 = vpop.f32.mrf.mxu0
    %767 = vmatprep.mubr.bf16.mxu0 0
    %768 = vmatmul.mubr.bf16.gmra.mxu0 %v684
    %v769 = vpop.f32.mrf.mxu0
    %v770 = vadd.f32 0.0, %v769
    %v771 = vpop.f32.mrf.mxu0
    %v772 = vpop.f32.mrf.mxu0
    %v773 = vadd.f32 0.0, %v772
    %v774 = vpop.f32.mrf.mxu0
    %775 = vmatprep.mubr.bf16.mxu0 0
    %776 = vmatmul.mubr.bf16.gmra.mxu0 %v685
    %v777 = vpop.f32.mrf.mxu0
    %v778 = vadd.f32 0.0, %v777
    %v779 = vpop.f32.mrf.mxu0
    %v780 = vpop.f32.mrf.mxu0
    %v781 = vadd.f32 0.0, %v780
    %v782 = vpop.f32.mrf.mxu0
    %783 = vmatprep.mubr.bf16.mxu0 0
    %784 = vmatmul.mubr.bf16.gmra.mxu0 %v686
    %v785 = vpop.f32.mrf.mxu0
    %v786 = vadd.f32 0.0, %v785
    %v787 = vpop.f32.mrf.mxu0
    %v788 = vpop.f32.mrf.mxu0
    %v789 = vadd.f32 0.0, %v788
    %v790 = vpop.f32.mrf.mxu0
    %791 = vdwg.mxu0
    %v792 = vld [vmem:[%s7 + $0x7] sm:$0x1]
    %v793 = vlaneseq
    %v794 = vshrl.u32 %v793, 7
    %v795 = vsub.s32 0, %v794
    %v796 = vrot.slane %v792, %v795
    %v797 = vmul.f32 %v730, %v796
    %v798 = vmul.f32 %v733, %v796
    %v799 = vmul.f32 %v738, %v796
    %v800 = vmul.f32 %v741, %v796
    %v801 = vmul.f32 %v746, %v796
    %v802 = vmul.f32 %v749, %v796
    %v803 = vmul.f32 %v754, %v796
    %v804 = vmul.f32 %v757, %v796
    %v805 = vmul.f32 %v762, %v796
    %v806 = vmul.f32 %v765, %v796
    %v807 = vmul.f32 %v770, %v796
    %v808 = vmul.f32 %v773, %v796
    %v809 = vmul.f32 %v778, %v796
    %v810 = vmul.f32 %v781, %v796
    %v811 = vmul.f32 %v786, %v796
    %v812 = vmul.f32 %v789, %v796
    %v813 = vadd.f32 %v614, %v797
    %v814 = vadd.f32 %v615, %v798
    %v815 = vadd.f32 %v616, %v799
    %v816 = vadd.f32 %v617, %v800
    %v817 = vadd.f32 %v618, %v801
    %v818 = vadd.f32 %v619, %v802
    %v819 = vadd.f32 %v620, %v803
    %v820 = vadd.f32 %v621, %v804
    %v821 = vadd.f32 %v622, %v805
    %v822 = vadd.f32 %v623, %v806
    %v823 = vadd.f32 %v624, %v807
    %v824 = vadd.f32 %v625, %v808
    %v825 = vadd.f32 %v626, %v809
    %v826 = vadd.f32 %v627, %v810
    %v827 = vadd.f32 %v628, %v811
    %v828 = vadd.f32 %v629, %v812
    %s829 = scalar_lea.vmem [#allocation2], 128
    %v830 = vld [vmem:[%s829] sm:$0xf]
    %v831 = vld [vmem:[%s829 + $0x4] sm:$0xf]
    %v832 = vld [vmem:[%s829 + $0x8] sm:$0xf]
    %v833 = vld [vmem:[%s829 + $0xc] sm:$0xf]
    %v834 = vld [vmem:[%s829 + $0x10] sm:$0xf]
    %v835 = vld [vmem:[%s829 + $0x14] sm:$0xf]
    %v836 = vld [vmem:[%s829 + $0x18] sm:$0xf]
    %v837 = vld [vmem:[%s829 + $0x1c] sm:$0xf]
    %v838 = vld [vmem:[%s829 + $0x20] sm:$0xf]
    %v839 = vld [vmem:[%s829 + $0x24] sm:$0xf]
    %v840 = vld [vmem:[%s829 + $0x28] sm:$0xf]
    %v841 = vld [vmem:[%s829 + $0x2c] sm:$0xf]
    %v842 = vld [vmem:[%s829 + $0x30] sm:$0xf]
    %v843 = vld [vmem:[%s829 + $0x34] sm:$0xf]
    %v844 = vld [vmem:[%s829 + $0x38] sm:$0xf]
    %v845 = vld [vmem:[%s829 + $0x3c] sm:$0xf]
    %v862 = vunpack.c.l.b16 %v830
    %v863 = vunpack.c.l.b16 %v831
    %v864 = vunpack.c.l.b16 %v832
    %v865 = vunpack.c.l.b16 %v833
    %v866 = vunpack.c.l.b16 %v834
    %v867 = vunpack.c.l.b16 %v835
    %v868 = vunpack.c.l.b16 %v836
    %v869 = vunpack.c.l.b16 %v837
    %v870 = vunpack.c.l.b16 %v838
    %v871 = vunpack.c.l.b16 %v839
    %v872 = vunpack.c.l.b16 %v840
    %v873 = vunpack.c.l.b16 %v841
    %v874 = vunpack.c.l.b16 %v842
    %v875 = vunpack.c.l.b16 %v843
    %v876 = vunpack.c.l.b16 %v844
    %v877 = vunpack.c.l.b16 %v845
    %v878 = vpack.c.b16 %v863, %v862
    %v879 = vpack.c.b16 %v865, %v864
    %v880 = vpack.c.b16 %v867, %v866
    %v881 = vpack.c.b16 %v869, %v868
    %v882 = vpack.c.b16 %v871, %v870
    %v883 = vpack.c.b16 %v873, %v872
    %v884 = vpack.c.b16 %v875, %v874
    %v885 = vpack.c.b16 %v877, %v876
    %894 = vmatprep.subr.bf16.mxu0 0
    %895 = vmatpush1.bf16.msra.mxu0 %v431
    %896 = vmatprep.subr.bf16.mxu0 0
    %897 = vmatpush1.bf16.msra.mxu0 %v430
    %898 = vmatprep.subr.bf16.mxu0 0
    %899 = vmatpush1.bf16.msra.mxu0 %v429
    %900 = vmatprep.subr.bf16.mxu0 0
    %901 = vmatpush1.bf16.msra.mxu0 %v428
    %902 = vmatprep.subr.bf16.mxu0 0
    %903 = vmatpush1.bf16.msra.mxu0 %v427
    %904 = vmatprep.subr.bf16.mxu0 0
    %905 = vmatpush1.bf16.msra.mxu0 %v426
    %906 = vmatprep.subr.bf16.mxu0 0
    %907 = vmatpush1.bf16.msra.mxu0 %v425
    %908 = vmatprep.subr.bf16.mxu0 0
    %909 = vmatpush1.bf16.msra.mxu0 %v424
    %910 = vmatprep.subr.bf16.mxu0 0
    %911 = vmatpush2.bf16.msra.mxu0 0
    %912 = vmatprep.subr.bf16.mxu0 0
    %913 = vmatpush2.bf16.msra.mxu0 0
    %914 = vmatprep.subr.bf16.mxu0 0
    %915 = vmatpush2.bf16.msra.mxu0 0
    %916 = vmatprep.subr.bf16.mxu0 0
    %917 = vmatpush2.bf16.msra.mxu0 0
    %918 = vmatprep.subr.bf16.mxu0 0
    %919 = vmatpush2.bf16.msra.mxu0 0
    %920 = vmatprep.subr.bf16.mxu0 0
    %921 = vmatpush2.bf16.msra.mxu0 0
    %922 = vmatprep.subr.bf16.mxu0 0
    %923 = vmatpush2.bf16.msra.mxu0 0
    %924 = vmatprep.subr.bf16.mxu0 0
    %925 = vmatpush2.bf16.msra.mxu0 0
    %926 = vmatprep.mubr.bf16.mxu0 0
    %927 = vmatmul.mubr.bf16.gmra.mxu0 %v878
    %v928 = vpop.f32.mrf.mxu0
    %v929 = vadd.f32 0.0, %v928
    %v930 = vpop.f32.mrf.mxu0
    %v931 = vpop.f32.mrf.mxu0
    %v932 = vadd.f32 0.0, %v931
    %v933 = vpop.f32.mrf.mxu0
    %934 = vmatprep.mubr.bf16.mxu0 0
    %935 = vmatmul.mubr.bf16.gmra.mxu0 %v879
    %v936 = vpop.f32.mrf.mxu0
    %v937 = vadd.f32 0.0, %v936
    %v938 = vpop.f32.mrf.mxu0
    %v939 = vpop.f32.mrf.mxu0
    %v940 = vadd.f32 0.0, %v939
    %v941 = vpop.f32.mrf.mxu0
    %942 = vmatprep.mubr.bf16.mxu0 0
    %943 = vmatmul.mubr.bf16.gmra.mxu0 %v880
    %v944 = vpop.f32.mrf.mxu0
    %v945 = vadd.f32 0.0, %v944
    %v946 = vpop.f32.mrf.mxu0
    %v947 = vpop.f32.mrf.mxu0
    %v948 = vadd.f32 0.0, %v947
    %v949 = vpop.f32.mrf.mxu0
    %950 = vmatprep.mubr.bf16.mxu0 0
    %951 = vmatmul.mubr.bf16.gmra.mxu0 %v881
    %v952 = vpop.f32.mrf.mxu0
    %v953 = vadd.f32 0.0, %v952
    %v954 = vpop.f32.mrf.mxu0
    %v955 = vpop.f32.mrf.mxu0
    %v956 = vadd.f32 0.0, %v955
    %v957 = vpop.f32.mrf.mxu0
    %958 = vmatprep.mubr.bf16.mxu0 0
    %959 = vmatmul.mubr.bf16.gmra.mxu0 %v882
    %v960 = vpop.f32.mrf.mxu0
    %v961 = vadd.f32 0.0, %v960
    %v962 = vpop.f32.mrf.mxu0
    %v963 = vpop.f32.mrf.mxu0
    %v964 = vadd.f32 0.0, %v963
    %v965 = vpop.f32.mrf.mxu0
    %966 = vmatprep.mubr.bf16.mxu0 0
    %967 = vmatmul.mubr.bf16.gmra.mxu0 %v883
    %v968 = vpop.f32.mrf.mxu0
    %v969 = vadd.f32 0.0, %v968
    %v970 = vpop.f32.mrf.mxu0
    %v971 = vpop.f32.mrf.mxu0
    %v972 = vadd.f32 0.0, %v971
    %v973 = vpop.f32.mrf.mxu0
    %974 = vmatprep.mubr.bf16.mxu0 0
    %975 = vmatmul.mubr.bf16.gmra.mxu0 %v884
    %v976 = vpop.f32.mrf.mxu0
    %v977 = vadd.f32 0.0, %v976
    %v978 = vpop.f32.mrf.mxu0
    %v979 = vpop.f32.mrf.mxu0
    %v980 = vadd.f32 0.0, %v979
    %v981 = vpop.f32.mrf.mxu0
    %982 = vmatprep.mubr.bf16.mxu0 0
    %983 = vmatmul.mubr.bf16.gmra.mxu0 %v885
    %v984 = vpop.f32.mrf.mxu0
    %v985 = vadd.f32 0.0, %v984
    %v986 = vpop.f32.mrf.mxu0
    %v987 = vpop.f32.mrf.mxu0
    %v988 = vadd.f32 0.0, %v987
    %v989 = vpop.f32.mrf.mxu0
    %990 = vdwg.mxu0
    %v991 = vld [vmem:[%s7 + $0x8] sm:$0x1]
    %v992 = vlaneseq
    %v993 = vshrl.u32 %v992, 7
    %v994 = vsub.s32 0, %v993
    %v995 = vrot.slane %v991, %v994
    %v996 = vmul.f32 %v929, %v995
    %v997 = vmul.f32 %v932, %v995
    %v998 = vmul.f32 %v937, %v995
    %v999 = vmul.f32 %v940, %v995
    %v1000 = vmul.f32 %v945, %v995
    %v1001 = vmul.f32 %v948, %v995
    %v1002 = vmul.f32 %v953, %v995
    %v1003 = vmul.f32 %v956, %v995
    %v1004 = vmul.f32 %v961, %v995
    %v1005 = vmul.f32 %v964, %v995
    %v1006 = vmul.f32 %v969, %v995
    %v1007 = vmul.f32 %v972, %v995
    %v1008 = vmul.f32 %v977, %v995
    %v1009 = vmul.f32 %v980, %v995
    %v1010 = vmul.f32 %v985, %v995
    %v1011 = vmul.f32 %v988, %v995
    %v1012 = vadd.f32 %v813, %v996
    %v1013 = vadd.f32 %v814, %v997
    %v1014 = vadd.f32 %v815, %v998
    %v1015 = vadd.f32 %v816, %v999
    %v1016 = vadd.f32 %v817, %v1000
    %v1017 = vadd.f32 %v818, %v1001
    %v1018 = vadd.f32 %v819, %v1002
    %v1019 = vadd.f32 %v820, %v1003
    %v1020 = vadd.f32 %v821, %v1004
    %v1021 = vadd.f32 %v822, %v1005
    %v1022 = vadd.f32 %v823, %v1006
    %v1023 = vadd.f32 %v824, %v1007
    %v1024 = vadd.f32 %v825, %v1008
    %v1025 = vadd.f32 %v826, %v1009
    %v1026 = vadd.f32 %v827, %v1010
    %v1027 = vadd.f32 %v828, %v1011
    %s1028 = scalar_lea.vmem [#allocation2], 192
    %v1029 = vld [vmem:[%s1028] sm:$0xf]
    %v1030 = vld [vmem:[%s1028 + $0x4] sm:$0xf]
    %v1031 = vld [vmem:[%s1028 + $0x8] sm:$0xf]
    %v1032 = vld [vmem:[%s1028 + $0xc] sm:$0xf]
    %v1033 = vld [vmem:[%s1028 + $0x10] sm:$0xf]
    %v1034 = vld [vmem:[%s1028 + $0x14] sm:$0xf]
    %v1035 = vld [vmem:[%s1028 + $0x18] sm:$0xf]
    %v1036 = vld [vmem:[%s1028 + $0x1c] sm:$0xf]
    %v1037 = vld [vmem:[%s1028 + $0x20] sm:$0xf]
    %v1038 = vld [vmem:[%s1028 + $0x24] sm:$0xf]
    %v1039 = vld [vmem:[%s1028 + $0x28] sm:$0xf]
    %v1040 = vld [vmem:[%s1028 + $0x2c] sm:$0xf]
    %v1041 = vld [vmem:[%s1028 + $0x30] sm:$0xf]
    %v1042 = vld [vmem:[%s1028 + $0x34] sm:$0xf]
    %v1043 = vld [vmem:[%s1028 + $0x38] sm:$0xf]
    %v1044 = vld [vmem:[%s1028 + $0x3c] sm:$0xf]
    %v1061 = vunpack.c.l.b16 %v1029
    %v1062 = vunpack.c.l.b16 %v1030
    %v1063 = vunpack.c.l.b16 %v1031
    %v1064 = vunpack.c.l.b16 %v1032
    %v1065 = vunpack.c.l.b16 %v1033
    %v1066 = vunpack.c.l.b16 %v1034
    %v1067 = vunpack.c.l.b16 %v1035
    %v1068 = vunpack.c.l.b16 %v1036
    %v1069 = vunpack.c.l.b16 %v1037
    %v1070 = vunpack.c.l.b16 %v1038
    %v1071 = vunpack.c.l.b16 %v1039
    %v1072 = vunpack.c.l.b16 %v1040
    %v1073 = vunpack.c.l.b16 %v1041
    %v1074 = vunpack.c.l.b16 %v1042
    %v1075 = vunpack.c.l.b16 %v1043
    %v1076 = vunpack.c.l.b16 %v1044
    %v1077 = vpack.c.b16 %v1062, %v1061
    %v1078 = vpack.c.b16 %v1064, %v1063
    %v1079 = vpack.c.b16 %v1066, %v1065
    %v1080 = vpack.c.b16 %v1068, %v1067
    %v1081 = vpack.c.b16 %v1070, %v1069
    %v1082 = vpack.c.b16 %v1072, %v1071
    %v1083 = vpack.c.b16 %v1074, %v1073
    %v1084 = vpack.c.b16 %v1076, %v1075
    %1093 = vmatprep.subr.bf16.mxu0 0
    %1094 = vmatpush1.bf16.msra.mxu0 %v431
    %1095 = vmatprep.subr.bf16.mxu0 0
    %1096 = vmatpush1.bf16.msra.mxu0 %v430
    %1097 = vmatprep.subr.bf16.mxu0 0
    %1098 = vmatpush1.bf16.msra.mxu0 %v429
    %1099 = vmatprep.subr.bf16.mxu0 0
    %1100 = vmatpush1.bf16.msra.mxu0 %v428
    %1101 = vmatprep.subr.bf16.mxu0 0
    %1102 = vmatpush1.bf16.msra.mxu0 %v427
    %1103 = vmatprep.subr.bf16.mxu0 0
    %1104 = vmatpush1.bf16.msra.mxu0 %v426
    %1105 = vmatprep.subr.bf16.mxu0 0
    %1106 = vmatpush1.bf16.msra.mxu0 %v425
    %1107 = vmatprep.subr.bf16.mxu0 0
    %1108 = vmatpush1.bf16.msra.mxu0 %v424
    %1109 = vmatprep.subr.bf16.mxu0 0
    %1110 = vmatpush2.bf16.msra.mxu0 0
    %1111 = vmatprep.subr.bf16.mxu0 0
    %1112 = vmatpush2.bf16.msra.mxu0 0
    %1113 = vmatprep.subr.bf16.mxu0 0
    %1114 = vmatpush2.bf16.msra.mxu0 0
    %1115 = vmatprep.subr.bf16.mxu0 0
    %1116 = vmatpush2.bf16.msra.mxu0 0
    %1117 = vmatprep.subr.bf16.mxu0 0
    %1118 = vmatpush2.bf16.msra.mxu0 0
    %1119 = vmatprep.subr.bf16.mxu0 0
    %1120 = vmatpush2.bf16.msra.mxu0 0
    %1121 = vmatprep.subr.bf16.mxu0 0
    %1122 = vmatpush2.bf16.msra.mxu0 0
    %1123 = vmatprep.subr.bf16.mxu0 0
    %1124 = vmatpush2.bf16.msra.mxu0 0
    %1125 = vmatprep.mubr.bf16.mxu0 0
    %1126 = vmatmul.mubr.bf16.gmra.mxu0 %v1077
    %v1127 = vpop.f32.mrf.mxu0
    %v1128 = vadd.f32 0.0, %v1127
    %v1129 = vpop.f32.mrf.mxu0
    %v1130 = vpop.f32.mrf.mxu0
    %v1131 = vadd.f32 0.0, %v1130
    %v1132 = vpop.f32.mrf.mxu0
    %1133 = vmatprep.mubr.bf16.mxu0 0
    %1134 = vmatmul.mubr.bf16.gmra.mxu0 %v1078
    %v1135 = vpop.f32.mrf.mxu0
    %v1136 = vadd.f32 0.0, %v1135
    %v1137 = vpop.f32.mrf.mxu0
    %v1138 = vpop.f32.mrf.mxu0
    %v1139 = vadd.f32 0.0, %v1138
    %v1140 = vpop.f32.mrf.mxu0
    %1141 = vmatprep.mubr.bf16.mxu0 0
    %1142 = vmatmul.mubr.bf16.gmra.mxu0 %v1079
    %v1143 = vpop.f32.mrf.mxu0
    %v1144 = vadd.f32 0.0, %v1143
    %v1145 = vpop.f32.mrf.mxu0
    %v1146 = vpop.f32.mrf.mxu0
    %v1147 = vadd.f32 0.0, %v1146
    %v1148 = vpop.f32.mrf.mxu0
    %1149 = vmatprep.mubr.bf16.mxu0 0
    %1150 = vmatmul.mubr.bf16.gmra.mxu0 %v1080
    %v1151 = vpop.f32.mrf.mxu0
    %v1152 = vadd.f32 0.0, %v1151
    %v1153 = vpop.f32.mrf.mxu0
    %v1154 = vpop.f32.mrf.mxu0
    %v1155 = vadd.f32 0.0, %v1154
    %v1156 = vpop.f32.mrf.mxu0
    %1157 = vmatprep.mubr.bf16.mxu0 0
    %1158 = vmatmul.mubr.bf16.gmra.mxu0 %v1081
    %v1159 = vpop.f32.mrf.mxu0
    %v1160 = vadd.f32 0.0, %v1159
    %v1161 = vpop.f32.mrf.mxu0
    %v1162 = vpop.f32.mrf.mxu0
    %v1163 = vadd.f32 0.0, %v1162
    %v1164 = vpop.f32.mrf.mxu0
    %1165 = vmatprep.mubr.bf16.mxu0 0
    %1166 = vmatmul.mubr.bf16.gmra.mxu0 %v1082
    %v1167 = vpop.f32.mrf.mxu0
    %v1168 = vadd.f32 0.0, %v1167
    %v1169 = vpop.f32.mrf.mxu0
    %v1170 = vpop.f32.mrf.mxu0
    %v1171 = vadd.f32 0.0, %v1170
    %v1172 = vpop.f32.mrf.mxu0
    %1173 = vmatprep.mubr.bf16.mxu0 0
    %1174 = vmatmul.mubr.bf16.gmra.mxu0 %v1083
    %v1175 = vpop.f32.mrf.mxu0
    %v1176 = vadd.f32 0.0, %v1175
    %v1177 = vpop.f32.mrf.mxu0
    %v1178 = vpop.f32.mrf.mxu0
    %v1179 = vadd.f32 0.0, %v1178
    %v1180 = vpop.f32.mrf.mxu0
    %1181 = vmatprep.mubr.bf16.mxu0 0
    %1182 = vmatmul.mubr.bf16.gmra.mxu0 %v1084
    %v1183 = vpop.f32.mrf.mxu0
    %v1184 = vadd.f32 0.0, %v1183
    %v1185 = vpop.f32.mrf.mxu0
    %v1186 = vpop.f32.mrf.mxu0
    %v1187 = vadd.f32 0.0, %v1186
    %v1188 = vpop.f32.mrf.mxu0
    %1189 = vdwg.mxu0
    %v1190 = vld [vmem:[%s7 + $0x9] sm:$0x1]
    %v1191 = vlaneseq
    %v1192 = vshrl.u32 %v1191, 7
    %v1193 = vsub.s32 0, %v1192
    %v1194 = vrot.slane %v1190, %v1193
    %v1195 = vmul.f32 %v1128, %v1194
    %v1196 = vmul.f32 %v1131, %v1194
    %v1197 = vmul.f32 %v1136, %v1194
    %v1198 = vmul.f32 %v1139, %v1194
    %v1199 = vmul.f32 %v1144, %v1194
    %v1200 = vmul.f32 %v1147, %v1194
    %v1201 = vmul.f32 %v1152, %v1194
    %v1202 = vmul.f32 %v1155, %v1194
    %v1203 = vmul.f32 %v1160, %v1194
    %v1204 = vmul.f32 %v1163, %v1194
    %v1205 = vmul.f32 %v1168, %v1194
    %v1206 = vmul.f32 %v1171, %v1194
    %v1207 = vmul.f32 %v1176, %v1194
    %v1208 = vmul.f32 %v1179, %v1194
    %v1209 = vmul.f32 %v1184, %v1194
    %v1210 = vmul.f32 %v1187, %v1194
    %v1211 = vadd.f32 %v1012, %v1195
    %v1212 = vadd.f32 %v1013, %v1196
    %v1213 = vadd.f32 %v1014, %v1197
    %v1214 = vadd.f32 %v1015, %v1198
    %v1215 = vadd.f32 %v1016, %v1199
    %v1216 = vadd.f32 %v1017, %v1200
    %v1217 = vadd.f32 %v1018, %v1201
    %v1218 = vadd.f32 %v1019, %v1202
    %v1219 = vadd.f32 %v1020, %v1203
    %v1220 = vadd.f32 %v1021, %v1204
    %v1221 = vadd.f32 %v1022, %v1205
    %v1222 = vadd.f32 %v1023, %v1206
    %v1223 = vadd.f32 %v1024, %v1207
    %v1224 = vadd.f32 %v1025, %v1208
    %v1225 = vadd.f32 %v1026, %v1209
    %v1226 = vadd.f32 %v1027, %v1210
    %s1227 = scalar_lea.vmem [#allocation2], 256
    %v1228 = vld [vmem:[%s1227] sm:$0xf]
    %v1229 = vld [vmem:[%s1227 + $0x4] sm:$0xf]
    %v1230 = vld [vmem:[%s1227 + $0x8] sm:$0xf]
    %v1231 = vld [vmem:[%s1227 + $0xc] sm:$0xf]
    %v1232 = vld [vmem:[%s1227 + $0x10] sm:$0xf]
    %v1233 = vld [vmem:[%s1227 + $0x14] sm:$0xf]
    %v1234 = vld [vmem:[%s1227 + $0x18] sm:$0xf]
    %v1235 = vld [vmem:[%s1227 + $0x1c] sm:$0xf]
    %v1236 = vld [vmem:[%s1227 + $0x20] sm:$0xf]
    %v1237 = vld [vmem:[%s1227 + $0x24] sm:$0xf]
    %v1238 = vld [vmem:[%s1227 + $0x28] sm:$0xf]
    %v1239 = vld [vmem:[%s1227 + $0x2c] sm:$0xf]
    %v1240 = vld [vmem:[%s1227 + $0x30] sm:$0xf]
    %v1241 = vld [vmem:[%s1227 + $0x34] sm:$0xf]
    %v1242 = vld [vmem:[%s1227 + $0x38] sm:$0xf]
    %v1243 = vld [vmem:[%s1227 + $0x3c] sm:$0xf]
    %v1260 = vunpack.c.l.b16 %v1228
    %v1261 = vunpack.c.l.b16 %v1229
    %v1262 = vunpack.c.l.b16 %v1230
    %v1263 = vunpack.c.l.b16 %v1231
    %v1264 = vunpack.c.l.b16 %v1232
    %v1265 = vunpack.c.l.b16 %v1233
    %v1266 = vunpack.c.l.b16 %v1234
    %v1267 = vunpack.c.l.b16 %v1235
    %v1268 = vunpack.c.l.b16 %v1236
    %v1269 = vunpack.c.l.b16 %v1237
    %v1270 = vunpack.c.l.b16 %v1238
    %v1271 = vunpack.c.l.b16 %v1239
    %v1272 = vunpack.c.l.b16 %v1240
    %v1273 = vunpack.c.l.b16 %v1241
    %v1274 = vunpack.c.l.b16 %v1242
    %v1275 = vunpack.c.l.b16 %v1243
    %v1276 = vpack.c.b16 %v1261, %v1260
    %v1277 = vpack.c.b16 %v1263, %v1262
    %v1278 = vpack.c.b16 %v1265, %v1264
    %v1279 = vpack.c.b16 %v1267, %v1266
    %v1280 = vpack.c.b16 %v1269, %v1268
    %v1281 = vpack.c.b16 %v1271, %v1270
    %v1282 = vpack.c.b16 %v1273, %v1272
    %v1283 = vpack.c.b16 %v1275, %v1274
    %1292 = vmatprep.subr.bf16.mxu0 0
    %1293 = vmatpush1.bf16.msra.mxu0 %v431
    %1294 = vmatprep.subr.bf16.mxu0 0
    %1295 = vmatpush1.bf16.msra.mxu0 %v430
    %1296 = vmatprep.subr.bf16.mxu0 0
    %1297 = vmatpush1.bf16.msra.mxu0 %v429
    %1298 = vmatprep.subr.bf16.mxu0 0
    %1299 = vmatpush1.bf16.msra.mxu0 %v428
    %1300 = vmatprep.subr.bf16.mxu0 0
    %1301 = vmatpush1.bf16.msra.mxu0 %v427
    %1302 = vmatprep.subr.bf16.mxu0 0
    %1303 = vmatpush1.bf16.msra.mxu0 %v426
    %1304 = vmatprep.subr.bf16.mxu0 0
    %1305 = vmatpush1.bf16.msra.mxu0 %v425
    %1306 = vmatprep.subr.bf16.mxu0 0
    %1307 = vmatpush1.bf16.msra.mxu0 %v424
    %1308 = vmatprep.subr.bf16.mxu0 0
    %1309 = vmatpush2.bf16.msra.mxu0 0
    %1310 = vmatprep.subr.bf16.mxu0 0
    %1311 = vmatpush2.bf16.msra.mxu0 0
    %1312 = vmatprep.subr.bf16.mxu0 0
    %1313 = vmatpush2.bf16.msra.mxu0 0
    %1314 = vmatprep.subr.bf16.mxu0 0
    %1315 = vmatpush2.bf16.msra.mxu0 0
    %1316 = vmatprep.subr.bf16.mxu0 0
    %1317 = vmatpush2.bf16.msra.mxu0 0
    %1318 = vmatprep.subr.bf16.mxu0 0
    %1319 = vmatpush2.bf16.msra.mxu0 0
    %1320 = vmatprep.subr.bf16.mxu0 0
    %1321 = vmatpush2.bf16.msra.mxu0 0
    %1322 = vmatprep.subr.bf16.mxu0 0
    %1323 = vmatpush2.bf16.msra.mxu0 0
    %1324 = vmatprep.mubr.bf16.mxu0 0
    %1325 = vmatmul.mubr.bf16.gmra.mxu0 %v1276
    %v1326 = vpop.f32.mrf.mxu0
    %v1327 = vadd.f32 0.0, %v1326
    %v1328 = vpop.f32.mrf.mxu0
    %v1329 = vpop.f32.mrf.mxu0
    %v1330 = vadd.f32 0.0, %v1329
    %v1331 = vpop.f32.mrf.mxu0
    %1332 = vmatprep.mubr.bf16.mxu0 0
    %1333 = vmatmul.mubr.bf16.gmra.mxu0 %v1277
    %v1334 = vpop.f32.mrf.mxu0
    %v1335 = vadd.f32 0.0, %v1334
    %v1336 = vpop.f32.mrf.mxu0
    %v1337 = vpop.f32.mrf.mxu0
    %v1338 = vadd.f32 0.0, %v1337
    %v1339 = vpop.f32.mrf.mxu0
    %1340 = vmatprep.mubr.bf16.mxu0 0
    %1341 = vmatmul.mubr.bf16.gmra.mxu0 %v1278
    %v1342 = vpop.f32.mrf.mxu0
    %v1343 = vadd.f32 0.0, %v1342
    %v1344 = vpop.f32.mrf.mxu0
    %v1345 = vpop.f32.mrf.mxu0
    %v1346 = vadd.f32 0.0, %v1345
    %v1347 = vpop.f32.mrf.mxu0
    %1348 = vmatprep.mubr.bf16.mxu0 0
    %1349 = vmatmul.mubr.bf16.gmra.mxu0 %v1279
    %v1350 = vpop.f32.mrf.mxu0
    %v1351 = vadd.f32 0.0, %v1350
    %v1352 = vpop.f32.mrf.mxu0
    %v1353 = vpop.f32.mrf.mxu0
    %v1354 = vadd.f32 0.0, %v1353
    %v1355 = vpop.f32.mrf.mxu0
    %1356 = vmatprep.mubr.bf16.mxu0 0
    %1357 = vmatmul.mubr.bf16.gmra.mxu0 %v1280
    %v1358 = vpop.f32.mrf.mxu0
    %v1359 = vadd.f32 0.0, %v1358
    %v1360 = vpop.f32.mrf.mxu0
    %v1361 = vpop.f32.mrf.mxu0
    %v1362 = vadd.f32 0.0, %v1361
    %v1363 = vpop.f32.mrf.mxu0
    %1364 = vmatprep.mubr.bf16.mxu0 0
    %1365 = vmatmul.mubr.bf16.gmra.mxu0 %v1281
    %v1366 = vpop.f32.mrf.mxu0
    %v1367 = vadd.f32 0.0, %v1366
    %v1368 = vpop.f32.mrf.mxu0
    %v1369 = vpop.f32.mrf.mxu0
    %v1370 = vadd.f32 0.0, %v1369
    %v1371 = vpop.f32.mrf.mxu0
    %1372 = vmatprep.mubr.bf16.mxu0 0
    %1373 = vmatmul.mubr.bf16.gmra.mxu0 %v1282
    %v1374 = vpop.f32.mrf.mxu0
    %v1375 = vadd.f32 0.0, %v1374
    %v1376 = vpop.f32.mrf.mxu0
    %v1377 = vpop.f32.mrf.mxu0
    %v1378 = vadd.f32 0.0, %v1377
    %v1379 = vpop.f32.mrf.mxu0
    %1380 = vmatprep.mubr.bf16.mxu0 0
    %1381 = vmatmul.mubr.bf16.gmra.mxu0 %v1283
    %v1382 = vpop.f32.mrf.mxu0
    %v1383 = vadd.f32 0.0, %v1382
    %v1384 = vpop.f32.mrf.mxu0
    %v1385 = vpop.f32.mrf.mxu0
    %v1386 = vadd.f32 0.0, %v1385
    %v1387 = vpop.f32.mrf.mxu0
    %1388 = vdwg.mxu0
    %v1389 = vld [vmem:[%s7 + $0xa] sm:$0x1]
    %v1390 = vlaneseq
    %v1391 = vshrl.u32 %v1390, 7
    %v1392 = vsub.s32 0, %v1391
    %v1393 = vrot.slane %v1389, %v1392
    %v1394 = vmul.f32 %v1327, %v1393
    %v1395 = vmul.f32 %v1330, %v1393
    %v1396 = vmul.f32 %v1335, %v1393
    %v1397 = vmul.f32 %v1338, %v1393
    %v1398 = vmul.f32 %v1343, %v1393
    %v1399 = vmul.f32 %v1346, %v1393
    %v1400 = vmul.f32 %v1351, %v1393
    %v1401 = vmul.f32 %v1354, %v1393
    %v1402 = vmul.f32 %v1359, %v1393
    %v1403 = vmul.f32 %v1362, %v1393
    %v1404 = vmul.f32 %v1367, %v1393
    %v1405 = vmul.f32 %v1370, %v1393
    %v1406 = vmul.f32 %v1375, %v1393
    %v1407 = vmul.f32 %v1378, %v1393
    %v1408 = vmul.f32 %v1383, %v1393
    %v1409 = vmul.f32 %v1386, %v1393
    %v1410 = vadd.f32 %v1211, %v1394
    %v1411 = vadd.f32 %v1212, %v1395
    %v1412 = vadd.f32 %v1213, %v1396
    %v1413 = vadd.f32 %v1214, %v1397
    %v1414 = vadd.f32 %v1215, %v1398
    %v1415 = vadd.f32 %v1216, %v1399
    %v1416 = vadd.f32 %v1217, %v1400
    %v1417 = vadd.f32 %v1218, %v1401
    %v1418 = vadd.f32 %v1219, %v1402
    %v1419 = vadd.f32 %v1220, %v1403
    %v1420 = vadd.f32 %v1221, %v1404
    %v1421 = vadd.f32 %v1222, %v1405
    %v1422 = vadd.f32 %v1223, %v1406
    %v1423 = vadd.f32 %v1224, %v1407
    %v1424 = vadd.f32 %v1225, %v1408
    %v1425 = vadd.f32 %v1226, %v1409
    %s1426 = scalar_lea.vmem [#allocation2], 320
    %v1427 = vld [vmem:[%s1426] sm:$0xf]
    %v1428 = vld [vmem:[%s1426 + $0x4] sm:$0xf]
    %v1429 = vld [vmem:[%s1426 + $0x8] sm:$0xf]
    %v1430 = vld [vmem:[%s1426 + $0xc] sm:$0xf]
    %v1431 = vld [vmem:[%s1426 + $0x10] sm:$0xf]
    %v1432 = vld [vmem:[%s1426 + $0x14] sm:$0xf]
    %v1433 = vld [vmem:[%s1426 + $0x18] sm:$0xf]
    %v1434 = vld [vmem:[%s1426 + $0x1c] sm:$0xf]
    %v1435 = vld [vmem:[%s1426 + $0x20] sm:$0xf]
    %v1436 = vld [vmem:[%s1426 + $0x24] sm:$0xf]
    %v1437 = vld [vmem:[%s1426 + $0x28] sm:$0xf]
    %v1438 = vld [vmem:[%s1426 + $0x2c] sm:$0xf]
    %v1439 = vld [vmem:[%s1426 + $0x30] sm:$0xf]
    %v1440 = vld [vmem:[%s1426 + $0x34] sm:$0xf]
    %v1441 = vld [vmem:[%s1426 + $0x38] sm:$0xf]
    %v1442 = vld [vmem:[%s1426 + $0x3c] sm:$0xf]
    %v1459 = vunpack.c.l.b16 %v1427
    %v1460 = vunpack.c.l.b16 %v1428
    %v1461 = vunpack.c.l.b16 %v1429
    %v1462 = vunpack.c.l.b16 %v1430
    %v1463 = vunpack.c.l.b16 %v1431
    %v1464 = vunpack.c.l.b16 %v1432
    %v1465 = vunpack.c.l.b16 %v1433
    %v1466 = vunpack.c.l.b16 %v1434
    %v1467 = vunpack.c.l.b16 %v1435
    %v1468 = vunpack.c.l.b16 %v1436
    %v1469 = vunpack.c.l.b16 %v1437
    %v1470 = vunpack.c.l.b16 %v1438
    %v1471 = vunpack.c.l.b16 %v1439
    %v1472 = vunpack.c.l.b16 %v1440
    %v1473 = vunpack.c.l.b16 %v1441
    %v1474 = vunpack.c.l.b16 %v1442
    %v1475 = vpack.c.b16 %v1460, %v1459
    %v1476 = vpack.c.b16 %v1462, %v1461
    %v1477 = vpack.c.b16 %v1464, %v1463
    %v1478 = vpack.c.b16 %v1466, %v1465
    %v1479 = vpack.c.b16 %v1468, %v1467
    %v1480 = vpack.c.b16 %v1470, %v1469
    %v1481 = vpack.c.b16 %v1472, %v1471
    %v1482 = vpack.c.b16 %v1474, %v1473
    %1491 = vmatprep.subr.bf16.mxu0 0
    %1492 = vmatpush1.bf16.msra.mxu0 %v431
    %1493 = vmatprep.subr.bf16.mxu0 0
    %1494 = vmatpush1.bf16.msra.mxu0 %v430
    %1495 = vmatprep.subr.bf16.mxu0 0
    %1496 = vmatpush1.bf16.msra.mxu0 %v429
    %1497 = vmatprep.subr.bf16.mxu0 0
    %1498 = vmatpush1.bf16.msra.mxu0 %v428
    %1499 = vmatprep.subr.bf16.mxu0 0
    %1500 = vmatpush1.bf16.msra.mxu0 %v427
    %1501 = vmatprep.subr.bf16.mxu0 0
    %1502 = vmatpush1.bf16.msra.mxu0 %v426
    %1503 = vmatprep.subr.bf16.mxu0 0
    %1504 = vmatpush1.bf16.msra.mxu0 %v425
    %1505 = vmatprep.subr.bf16.mxu0 0
    %1506 = vmatpush1.bf16.msra.mxu0 %v424
    %1507 = vmatprep.subr.bf16.mxu0 0
    %1508 = vmatpush2.bf16.msra.mxu0 0
    %1509 = vmatprep.subr.bf16.mxu0 0
    %1510 = vmatpush2.bf16.msra.mxu0 0
    %1511 = vmatprep.subr.bf16.mxu0 0
    %1512 = vmatpush2.bf16.msra.mxu0 0
    %1513 = vmatprep.subr.bf16.mxu0 0
    %1514 = vmatpush2.bf16.msra.mxu0 0
    %1515 = vmatprep.subr.bf16.mxu0 0
    %1516 = vmatpush2.bf16.msra.mxu0 0
    %1517 = vmatprep.subr.bf16.mxu0 0
    %1518 = vmatpush2.bf16.msra.mxu0 0
    %1519 = vmatprep.subr.bf16.mxu0 0
    %1520 = vmatpush2.bf16.msra.mxu0 0
    %1521 = vmatprep.subr.bf16.mxu0 0
    %1522 = vmatpush2.bf16.msra.mxu0 0
    %1523 = vmatprep.mubr.bf16.mxu0 0
    %1524 = vmatmul.mubr.bf16.gmra.mxu0 %v1475
    %v1525 = vpop.f32.mrf.mxu0
    %v1526 = vadd.f32 0.0, %v1525
    %v1527 = vpop.f32.mrf.mxu0
    %v1528 = vpop.f32.mrf.mxu0
    %v1529 = vadd.f32 0.0, %v1528
    %v1530 = vpop.f32.mrf.mxu0
    %1531 = vmatprep.mubr.bf16.mxu0 0
    %1532 = vmatmul.mubr.bf16.gmra.mxu0 %v1476
    %v1533 = vpop.f32.mrf.mxu0
    %v1534 = vadd.f32 0.0, %v1533
    %v1535 = vpop.f32.mrf.mxu0
    %v1536 = vpop.f32.mrf.mxu0
    %v1537 = vadd.f32 0.0, %v1536
    %v1538 = vpop.f32.mrf.mxu0
    %1539 = vmatprep.mubr.bf16.mxu0 0
    %1540 = vmatmul.mubr.bf16.gmra.mxu0 %v1477
    %v1541 = vpop.f32.mrf.mxu0
    %v1542 = vadd.f32 0.0, %v1541
    %v1543 = vpop.f32.mrf.mxu0
    %v1544 = vpop.f32.mrf.mxu0
    %v1545 = vadd.f32 0.0, %v1544
    %v1546 = vpop.f32.mrf.mxu0
    %1547 = vmatprep.mubr.bf16.mxu0 0
    %1548 = vmatmul.mubr.bf16.gmra.mxu0 %v1478
    %v1549 = vpop.f32.mrf.mxu0
    %v1550 = vadd.f32 0.0, %v1549
    %v1551 = vpop.f32.mrf.mxu0
    %v1552 = vpop.f32.mrf.mxu0
    %v1553 = vadd.f32 0.0, %v1552
    %v1554 = vpop.f32.mrf.mxu0
    %1555 = vmatprep.mubr.bf16.mxu0 0
    %1556 = vmatmul.mubr.bf16.gmra.mxu0 %v1479
    %v1557 = vpop.f32.mrf.mxu0
    %v1558 = vadd.f32 0.0, %v1557
    %v1559 = vpop.f32.mrf.mxu0
    %v1560 = vpop.f32.mrf.mxu0
    %v1561 = vadd.f32 0.0, %v1560
    %v1562 = vpop.f32.mrf.mxu0
    %1563 = vmatprep.mubr.bf16.mxu0 0
    %1564 = vmatmul.mubr.bf16.gmra.mxu0 %v1480
    %v1565 = vpop.f32.mrf.mxu0
    %v1566 = vadd.f32 0.0, %v1565
    %v1567 = vpop.f32.mrf.mxu0
    %v1568 = vpop.f32.mrf.mxu0
    %v1569 = vadd.f32 0.0, %v1568
    %v1570 = vpop.f32.mrf.mxu0
    %1571 = vmatprep.mubr.bf16.mxu0 0
    %1572 = vmatmul.mubr.bf16.gmra.mxu0 %v1481
    %v1573 = vpop.f32.mrf.mxu0
    %v1574 = vadd.f32 0.0, %v1573
    %v1575 = vpop.f32.mrf.mxu0
    %v1576 = vpop.f32.mrf.mxu0
    %v1577 = vadd.f32 0.0, %v1576
    %v1578 = vpop.f32.mrf.mxu0
    %1579 = vmatprep.mubr.bf16.mxu0 0
    %1580 = vmatmul.mubr.bf16.gmra.mxu0 %v1482
    %v1581 = vpop.f32.mrf.mxu0
    %v1582 = vadd.f32 0.0, %v1581
    %v1583 = vpop.f32.mrf.mxu0
    %v1584 = vpop.f32.mrf.mxu0
    %v1585 = vadd.f32 0.0, %v1584
    %v1586 = vpop.f32.mrf.mxu0
    %1587 = vdwg.mxu0
    %v1588 = vld [vmem:[%s7 + $0xb] sm:$0x1]
    %v1589 = vlaneseq
    %v1590 = vshrl.u32 %v1589, 7
    %v1591 = vsub.s32 0, %v1590
    %v1592 = vrot.slane %v1588, %v1591
    %v1593 = vmul.f32 %v1526, %v1592
    %v1594 = vmul.f32 %v1529, %v1592
    %v1595 = vmul.f32 %v1534, %v1592
    %v1596 = vmul.f32 %v1537, %v1592
    %v1597 = vmul.f32 %v1542, %v1592
    %v1598 = vmul.f32 %v1545, %v1592
    %v1599 = vmul.f32 %v1550, %v1592
    %v1600 = vmul.f32 %v1553, %v1592
    %v1601 = vmul.f32 %v1558, %v1592
    %v1602 = vmul.f32 %v1561, %v1592
    %v1603 = vmul.f32 %v1566, %v1592
    %v1604 = vmul.f32 %v1569, %v1592
    %v1605 = vmul.f32 %v1574, %v1592
    %v1606 = vmul.f32 %v1577, %v1592
    %v1607 = vmul.f32 %v1582, %v1592
    %v1608 = vmul.f32 %v1585, %v1592
    %v1609 = vadd.f32 %v1410, %v1593
    %v1610 = vadd.f32 %v1411, %v1594
    %v1611 = vadd.f32 %v1412, %v1595
    %v1612 = vadd.f32 %v1413, %v1596
    %v1613 = vadd.f32 %v1414, %v1597
    %v1614 = vadd.f32 %v1415, %v1598
    %v1615 = vadd.f32 %v1416, %v1599
    %v1616 = vadd.f32 %v1417, %v1600
    %v1617 = vadd.f32 %v1418, %v1601
    %v1618 = vadd.f32 %v1419, %v1602
    %v1619 = vadd.f32 %v1420, %v1603
    %v1620 = vadd.f32 %v1421, %v1604
    %v1621 = vadd.f32 %v1422, %v1605
    %v1622 = vadd.f32 %v1423, %v1606
    %v1623 = vadd.f32 %v1424, %v1607
    %v1624 = vadd.f32 %v1425, %v1608
    %s1625 = scalar_lea.vmem [#allocation2], 384
    %v1626 = vld [vmem:[%s1625] sm:$0xf]
    %v1627 = vld [vmem:[%s1625 + $0x4] sm:$0xf]
    %v1628 = vld [vmem:[%s1625 + $0x8] sm:$0xf]
    %v1629 = vld [vmem:[%s1625 + $0xc] sm:$0xf]
    %v1630 = vld [vmem:[%s1625 + $0x10] sm:$0xf]
    %v1631 = vld [vmem:[%s1625 + $0x14] sm:$0xf]
    %v1632 = vld [vmem:[%s1625 + $0x18] sm:$0xf]
    %v1633 = vld [vmem:[%s1625 + $0x1c] sm:$0xf]
    %v1634 = vld [vmem:[%s1625 + $0x20] sm:$0xf]
    %v1635 = vld [vmem:[%s1625 + $0x24] sm:$0xf]
    %v1636 = vld [vmem:[%s1625 + $0x28] sm:$0xf]
    %v1637 = vld [vmem:[%s1625 + $0x2c] sm:$0xf]
    %v1638 = vld [vmem:[%s1625 + $0x30] sm:$0xf]
    %v1639 = vld [vmem:[%s1625 + $0x34] sm:$0xf]
    %v1640 = vld [vmem:[%s1625 + $0x38] sm:$0xf]
    %v1641 = vld [vmem:[%s1625 + $0x3c] sm:$0xf]
    %v1658 = vunpack.c.l.b16 %v1626
    %v1659 = vunpack.c.l.b16 %v1627
    %v1660 = vunpack.c.l.b16 %v1628
    %v1661 = vunpack.c.l.b16 %v1629
    %v1662 = vunpack.c.l.b16 %v1630
    %v1663 = vunpack.c.l.b16 %v1631
    %v1664 = vunpack.c.l.b16 %v1632
    %v1665 = vunpack.c.l.b16 %v1633
    %v1666 = vunpack.c.l.b16 %v1634
    %v1667 = vunpack.c.l.b16 %v1635
    %v1668 = vunpack.c.l.b16 %v1636
    %v1669 = vunpack.c.l.b16 %v1637
    %v1670 = vunpack.c.l.b16 %v1638
    %v1671 = vunpack.c.l.b16 %v1639
    %v1672 = vunpack.c.l.b16 %v1640
    %v1673 = vunpack.c.l.b16 %v1641
    %v1674 = vpack.c.b16 %v1659, %v1658
    %v1675 = vpack.c.b16 %v1661, %v1660
    %v1676 = vpack.c.b16 %v1663, %v1662
    %v1677 = vpack.c.b16 %v1665, %v1664
    %v1678 = vpack.c.b16 %v1667, %v1666
    %v1679 = vpack.c.b16 %v1669, %v1668
    %v1680 = vpack.c.b16 %v1671, %v1670
    %v1681 = vpack.c.b16 %v1673, %v1672
    %1690 = vmatprep.subr.bf16.mxu0 0
    %1691 = vmatpush1.bf16.msra.mxu0 %v431
    %1692 = vmatprep.subr.bf16.mxu0 0
    %1693 = vmatpush1.bf16.msra.mxu0 %v430
    %1694 = vmatprep.subr.bf16.mxu0 0
    %1695 = vmatpush1.bf16.msra.mxu0 %v429
    %1696 = vmatprep.subr.bf16.mxu0 0
    %1697 = vmatpush1.bf16.msra.mxu0 %v428
    %1698 = vmatprep.subr.bf16.mxu0 0
    %1699 = vmatpush1.bf16.msra.mxu0 %v427
    %1700 = vmatprep.subr.bf16.mxu0 0
    %1701 = vmatpush1.bf16.msra.mxu0 %v426
    %1702 = vmatprep.subr.bf16.mxu0 0
    %1703 = vmatpush1.bf16.msra.mxu0 %v425
    %1704 = vmatprep.subr.bf16.mxu0 0
    %1705 = vmatpush1.bf16.msra.mxu0 %v424
    %1706 = vmatprep.subr.bf16.mxu0 0
    %1707 = vmatpush2.bf16.msra.mxu0 0
    %1708 = vmatprep.subr.bf16.mxu0 0
    %1709 = vmatpush2.bf16.msra.mxu0 0
    %1710 = vmatprep.subr.bf16.mxu0 0
    %1711 = vmatpush2.bf16.msra.mxu0 0
    %1712 = vmatprep.subr.bf16.mxu0 0
    %1713 = vmatpush2.bf16.msra.mxu0 0
    %1714 = vmatprep.subr.bf16.mxu0 0
    %1715 = vmatpush2.bf16.msra.mxu0 0
    %1716 = vmatprep.subr.bf16.mxu0 0
    %1717 = vmatpush2.bf16.msra.mxu0 0
    %1718 = vmatprep.subr.bf16.mxu0 0
    %1719 = vmatpush2.bf16.msra.mxu0 0
    %1720 = vmatprep.subr.bf16.mxu0 0
    %1721 = vmatpush2.bf16.msra.mxu0 0
    %1722 = vmatprep.mubr.bf16.mxu0 0
    %1723 = vmatmul.mubr.bf16.gmra.mxu0 %v1674
    %v1724 = vpop.f32.mrf.mxu0
    %v1725 = vadd.f32 0.0, %v1724
    %v1726 = vpop.f32.mrf.mxu0
    %v1727 = vpop.f32.mrf.mxu0
    %v1728 = vadd.f32 0.0, %v1727
    %v1729 = vpop.f32.mrf.mxu0
    %1730 = vmatprep.mubr.bf16.mxu0 0
    %1731 = vmatmul.mubr.bf16.gmra.mxu0 %v1675
    %v1732 = vpop.f32.mrf.mxu0
    %v1733 = vadd.f32 0.0, %v1732
    %v1734 = vpop.f32.mrf.mxu0
    %v1735 = vpop.f32.mrf.mxu0
    %v1736 = vadd.f32 0.0, %v1735
    %v1737 = vpop.f32.mrf.mxu0
    %1738 = vmatprep.mubr.bf16.mxu0 0
    %1739 = vmatmul.mubr.bf16.gmra.mxu0 %v1676
    %v1740 = vpop.f32.mrf.mxu0
    %v1741 = vadd.f32 0.0, %v1740
    %v1742 = vpop.f32.mrf.mxu0
    %v1743 = vpop.f32.mrf.mxu0
    %v1744 = vadd.f32 0.0, %v1743
    %v1745 = vpop.f32.mrf.mxu0
    %1746 = vmatprep.mubr.bf16.mxu0 0
    %1747 = vmatmul.mubr.bf16.gmra.mxu0 %v1677
    %v1748 = vpop.f32.mrf.mxu0
    %v1749 = vadd.f32 0.0, %v1748
    %v1750 = vpop.f32.mrf.mxu0
    %v1751 = vpop.f32.mrf.mxu0
    %v1752 = vadd.f32 0.0, %v1751
    %v1753 = vpop.f32.mrf.mxu0
    %1754 = vmatprep.mubr.bf16.mxu0 0
    %1755 = vmatmul.mubr.bf16.gmra.mxu0 %v1678
    %v1756 = vpop.f32.mrf.mxu0
    %v1757 = vadd.f32 0.0, %v1756
    %v1758 = vpop.f32.mrf.mxu0
    %v1759 = vpop.f32.mrf.mxu0
    %v1760 = vadd.f32 0.0, %v1759
    %v1761 = vpop.f32.mrf.mxu0
    %1762 = vmatprep.mubr.bf16.mxu0 0
    %1763 = vmatmul.mubr.bf16.gmra.mxu0 %v1679
    %v1764 = vpop.f32.mrf.mxu0
    %v1765 = vadd.f32 0.0, %v1764
    %v1766 = vpop.f32.mrf.mxu0
    %v1767 = vpop.f32.mrf.mxu0
    %v1768 = vadd.f32 0.0, %v1767
    %v1769 = vpop.f32.mrf.mxu0
    %1770 = vmatprep.mubr.bf16.mxu0 0
    %1771 = vmatmul.mubr.bf16.gmra.mxu0 %v1680
    %v1772 = vpop.f32.mrf.mxu0
    %v1773 = vadd.f32 0.0, %v1772
    %v1774 = vpop.f32.mrf.mxu0
    %v1775 = vpop.f32.mrf.mxu0
    %v1776 = vadd.f32 0.0, %v1775
    %v1777 = vpop.f32.mrf.mxu0
    %1778 = vmatprep.mubr.bf16.mxu0 0
    %1779 = vmatmul.mubr.bf16.gmra.mxu0 %v1681
    %v1780 = vpop.f32.mrf.mxu0
    %v1781 = vadd.f32 0.0, %v1780
    %v1782 = vpop.f32.mrf.mxu0
    %v1783 = vpop.f32.mrf.mxu0
    %v1784 = vadd.f32 0.0, %v1783
    %v1785 = vpop.f32.mrf.mxu0
    %1786 = vdwg.mxu0
    %v1787 = vld [vmem:[%s7 + $0xc] sm:$0x1]
    %v1788 = vlaneseq
    %v1789 = vshrl.u32 %v1788, 7
    %v1790 = vsub.s32 0, %v1789
    %v1791 = vrot.slane %v1787, %v1790
    %v1792 = vmul.f32 %v1725, %v1791
    %v1793 = vmul.f32 %v1728, %v1791
    %v1794 = vmul.f32 %v1733, %v1791
    %v1795 = vmul.f32 %v1736, %v1791
    %v1796 = vmul.f32 %v1741, %v1791
    %v1797 = vmul.f32 %v1744, %v1791
    %v1798 = vmul.f32 %v1749, %v1791
    %v1799 = vmul.f32 %v1752, %v1791
    %v1800 = vmul.f32 %v1757, %v1791
    %v1801 = vmul.f32 %v1760, %v1791
    %v1802 = vmul.f32 %v1765, %v1791
    %v1803 = vmul.f32 %v1768, %v1791
    %v1804 = vmul.f32 %v1773, %v1791
    %v1805 = vmul.f32 %v1776, %v1791
    %v1806 = vmul.f32 %v1781, %v1791
    %v1807 = vmul.f32 %v1784, %v1791
    %v1808 = vadd.f32 %v1609, %v1792
    %v1809 = vadd.f32 %v1610, %v1793
    %v1810 = vadd.f32 %v1611, %v1794
    %v1811 = vadd.f32 %v1612, %v1795
    %v1812 = vadd.f32 %v1613, %v1796
    %v1813 = vadd.f32 %v1614, %v1797
    %v1814 = vadd.f32 %v1615, %v1798
    %v1815 = vadd.f32 %v1616, %v1799
    %v1816 = vadd.f32 %v1617, %v1800
    %v1817 = vadd.f32 %v1618, %v1801
    %v1818 = vadd.f32 %v1619, %v1802
    %v1819 = vadd.f32 %v1620, %v1803
    %v1820 = vadd.f32 %v1621, %v1804
    %v1821 = vadd.f32 %v1622, %v1805
    %v1822 = vadd.f32 %v1623, %v1806
    %v1823 = vadd.f32 %v1624, %v1807
    %s1824 = scalar_lea.vmem [#allocation2], 448
    %v1825 = vld [vmem:[%s1824] sm:$0xf]
    %v1826 = vld [vmem:[%s1824 + $0x4] sm:$0xf]
    %v1827 = vld [vmem:[%s1824 + $0x8] sm:$0xf]
    %v1828 = vld [vmem:[%s1824 + $0xc] sm:$0xf]
    %v1829 = vld [vmem:[%s1824 + $0x10] sm:$0xf]
    %v1830 = vld [vmem:[%s1824 + $0x14] sm:$0xf]
    %v1831 = vld [vmem:[%s1824 + $0x18] sm:$0xf]
    %v1832 = vld [vmem:[%s1824 + $0x1c] sm:$0xf]
    %v1833 = vld [vmem:[%s1824 + $0x20] sm:$0xf]
    %v1834 = vld [vmem:[%s1824 + $0x24] sm:$0xf]
    %v1835 = vld [vmem:[%s1824 + $0x28] sm:$0xf]
    %v1836 = vld [vmem:[%s1824 + $0x2c] sm:$0xf]
    %v1837 = vld [vmem:[%s1824 + $0x30] sm:$0xf]
    %v1838 = vld [vmem:[%s1824 + $0x34] sm:$0xf]
    %v1839 = vld [vmem:[%s1824 + $0x38] sm:$0xf]
    %v1840 = vld [vmem:[%s1824 + $0x3c] sm:$0xf]
    %v1857 = vunpack.c.l.b16 %v1825
    %v1858 = vunpack.c.l.b16 %v1826
    %v1859 = vunpack.c.l.b16 %v1827
    %v1860 = vunpack.c.l.b16 %v1828
    %v1861 = vunpack.c.l.b16 %v1829
    %v1862 = vunpack.c.l.b16 %v1830
    %v1863 = vunpack.c.l.b16 %v1831
    %v1864 = vunpack.c.l.b16 %v1832
    %v1865 = vunpack.c.l.b16 %v1833
    %v1866 = vunpack.c.l.b16 %v1834
    %v1867 = vunpack.c.l.b16 %v1835
    %v1868 = vunpack.c.l.b16 %v1836
    %v1869 = vunpack.c.l.b16 %v1837
    %v1870 = vunpack.c.l.b16 %v1838
    %v1871 = vunpack.c.l.b16 %v1839
    %v1872 = vunpack.c.l.b16 %v1840
    %v1873 = vpack.c.b16 %v1858, %v1857
    %v1874 = vpack.c.b16 %v1860, %v1859
    %v1875 = vpack.c.b16 %v1862, %v1861
    %v1876 = vpack.c.b16 %v1864, %v1863
    %v1877 = vpack.c.b16 %v1866, %v1865
    %v1878 = vpack.c.b16 %v1868, %v1867
    %v1879 = vpack.c.b16 %v1870, %v1869
    %v1880 = vpack.c.b16 %v1872, %v1871
    %1889 = vmatprep.subr.bf16.mxu0 0
    %1890 = vmatpush1.bf16.msra.mxu0 %v431
    %1891 = vmatprep.subr.bf16.mxu0 0
    %1892 = vmatpush1.bf16.msra.mxu0 %v430
    %1893 = vmatprep.subr.bf16.mxu0 0
    %1894 = vmatpush1.bf16.msra.mxu0 %v429
    %1895 = vmatprep.subr.bf16.mxu0 0
    %1896 = vmatpush1.bf16.msra.mxu0 %v428
    %1897 = vmatprep.subr.bf16.mxu0 0
    %1898 = vmatpush1.bf16.msra.mxu0 %v427
    %1899 = vmatprep.subr.bf16.mxu0 0
    %1900 = vmatpush1.bf16.msra.mxu0 %v426
    %1901 = vmatprep.subr.bf16.mxu0 0
    %1902 = vmatpush1.bf16.msra.mxu0 %v425
    %1903 = vmatprep.subr.bf16.mxu0 0
    %1904 = vmatpush1.bf16.msra.mxu0 %v424
    %1905 = vmatprep.subr.bf16.mxu0 0
    %1906 = vmatpush2.bf16.msra.mxu0 0
    %1907 = vmatprep.subr.bf16.mxu0 0
    %1908 = vmatpush2.bf16.msra.mxu0 0
    %1909 = vmatprep.subr.bf16.mxu0 0
    %1910 = vmatpush2.bf16.msra.mxu0 0
    %1911 = vmatprep.subr.bf16.mxu0 0
    %1912 = vmatpush2.bf16.msra.mxu0 0
    %1913 = vmatprep.subr.bf16.mxu0 0
    %1914 = vmatpush2.bf16.msra.mxu0 0
    %1915 = vmatprep.subr.bf16.mxu0 0
    %1916 = vmatpush2.bf16.msra.mxu0 0
    %1917 = vmatprep.subr.bf16.mxu0 0
    %1918 = vmatpush2.bf16.msra.mxu0 0
    %1919 = vmatprep.subr.bf16.mxu0 0
    %1920 = vmatpush2.bf16.msra.mxu0 0
    %1921 = vmatprep.mubr.bf16.mxu0 0
    %1922 = vmatmul.mubr.bf16.gmra.mxu0 %v1873
    %v1923 = vpop.f32.mrf.mxu0
    %v1924 = vadd.f32 0.0, %v1923
    %v1925 = vpop.f32.mrf.mxu0
    %v1926 = vpop.f32.mrf.mxu0
    %v1927 = vadd.f32 0.0, %v1926
    %v1928 = vpop.f32.mrf.mxu0
    %1929 = vmatprep.mubr.bf16.mxu0 0
    %1930 = vmatmul.mubr.bf16.gmra.mxu0 %v1874
    %v1931 = vpop.f32.mrf.mxu0
    %v1932 = vadd.f32 0.0, %v1931
    %v1933 = vpop.f32.mrf.mxu0
    %v1934 = vpop.f32.mrf.mxu0
    %v1935 = vadd.f32 0.0, %v1934
    %v1936 = vpop.f32.mrf.mxu0
    %1937 = vmatprep.mubr.bf16.mxu0 0
    %1938 = vmatmul.mubr.bf16.gmra.mxu0 %v1875
    %v1939 = vpop.f32.mrf.mxu0
    %v1940 = vadd.f32 0.0, %v1939
    %v1941 = vpop.f32.mrf.mxu0
    %v1942 = vpop.f32.mrf.mxu0
    %v1943 = vadd.f32 0.0, %v1942
    %v1944 = vpop.f32.mrf.mxu0
    %1945 = vmatprep.mubr.bf16.mxu0 0
    %1946 = vmatmul.mubr.bf16.gmra.mxu0 %v1876
    %v1947 = vpop.f32.mrf.mxu0
    %v1948 = vadd.f32 0.0, %v1947
    %v1949 = vpop.f32.mrf.mxu0
    %v1950 = vpop.f32.mrf.mxu0
    %v1951 = vadd.f32 0.0, %v1950
    %v1952 = vpop.f32.mrf.mxu0
    %1953 = vmatprep.mubr.bf16.mxu0 0
    %1954 = vmatmul.mubr.bf16.gmra.mxu0 %v1877
    %v1955 = vpop.f32.mrf.mxu0
    %v1956 = vadd.f32 0.0, %v1955
    %v1957 = vpop.f32.mrf.mxu0
    %v1958 = vpop.f32.mrf.mxu0
    %v1959 = vadd.f32 0.0, %v1958
    %v1960 = vpop.f32.mrf.mxu0
    %1961 = vmatprep.mubr.bf16.mxu0 0
    %1962 = vmatmul.mubr.bf16.gmra.mxu0 %v1878
    %v1963 = vpop.f32.mrf.mxu0
    %v1964 = vadd.f32 0.0, %v1963
    %v1965 = vpop.f32.mrf.mxu0
    %v1966 = vpop.f32.mrf.mxu0
    %v1967 = vadd.f32 0.0, %v1966
    %v1968 = vpop.f32.mrf.mxu0
    %1969 = vmatprep.mubr.bf16.mxu0 0
    %1970 = vmatmul.mubr.bf16.gmra.mxu0 %v1879
    %v1971 = vpop.f32.mrf.mxu0
    %v1972 = vadd.f32 0.0, %v1971
    %v1973 = vpop.f32.mrf.mxu0
    %v1974 = vpop.f32.mrf.mxu0
    %v1975 = vadd.f32 0.0, %v1974
    %v1976 = vpop.f32.mrf.mxu0
    %1977 = vmatprep.mubr.bf16.mxu0 0
    %1978 = vmatmul.mubr.bf16.gmra.mxu0 %v1880
    %v1979 = vpop.f32.mrf.mxu0
    %v1980 = vadd.f32 0.0, %v1979
    %v1981 = vpop.f32.mrf.mxu0
    %v1982 = vpop.f32.mrf.mxu0
    %v1983 = vadd.f32 0.0, %v1982
    %v1984 = vpop.f32.mrf.mxu0
    %1985 = vdwg.mxu0
    %v1986 = vld [vmem:[%s7 + $0xd] sm:$0x1]
    %v1987 = vlaneseq
    %v1988 = vshrl.u32 %v1987, 7
    %v1989 = vsub.s32 0, %v1988
    %v1990 = vrot.slane %v1986, %v1989
    %v1991 = vmul.f32 %v1924, %v1990
    %v1992 = vmul.f32 %v1927, %v1990
    %v1993 = vmul.f32 %v1932, %v1990
    %v1994 = vmul.f32 %v1935, %v1990
    %v1995 = vmul.f32 %v1940, %v1990
    %v1996 = vmul.f32 %v1943, %v1990
    %v1997 = vmul.f32 %v1948, %v1990
    %v1998 = vmul.f32 %v1951, %v1990
    %v1999 = vmul.f32 %v1956, %v1990
    %v2000 = vmul.f32 %v1959, %v1990
    %v2001 = vmul.f32 %v1964, %v1990
    %v2002 = vmul.f32 %v1967, %v1990
    %v2003 = vmul.f32 %v1972, %v1990
    %v2004 = vmul.f32 %v1975, %v1990
    %v2005 = vmul.f32 %v1980, %v1990
    %v2006 = vmul.f32 %v1983, %v1990
    %v2007 = vadd.f32 %v1808, %v1991
    %v2008 = vadd.f32 %v1809, %v1992
    %v2009 = vadd.f32 %v1810, %v1993
    %v2010 = vadd.f32 %v1811, %v1994
    %v2011 = vadd.f32 %v1812, %v1995
    %v2012 = vadd.f32 %v1813, %v1996
    %v2013 = vadd.f32 %v1814, %v1997
    %v2014 = vadd.f32 %v1815, %v1998
    %v2015 = vadd.f32 %v1816, %v1999
    %v2016 = vadd.f32 %v1817, %v2000
    %v2017 = vadd.f32 %v1818, %v2001
    %v2018 = vadd.f32 %v1819, %v2002
    %v2019 = vadd.f32 %v1820, %v2003
    %v2020 = vadd.f32 %v1821, %v2004
    %v2021 = vadd.f32 %v1822, %v2005
    %v2022 = vadd.f32 %v1823, %v2006
    %s2023 = scalar_lea.vmem [#allocation2], 512
    %v2024 = vld [vmem:[%s2023] sm:$0xf]
    %v2025 = vld [vmem:[%s2023 + $0x4] sm:$0xf]
    %v2026 = vld [vmem:[%s2023 + $0x8] sm:$0xf]
    %v2027 = vld [vmem:[%s2023 + $0xc] sm:$0xf]
    %v2028 = vld [vmem:[%s2023 + $0x10] sm:$0xf]
    %v2029 = vld [vmem:[%s2023 + $0x14] sm:$0xf]
    %v2030 = vld [vmem:[%s2023 + $0x18] sm:$0xf]
    %v2031 = vld [vmem:[%s2023 + $0x1c] sm:$0xf]
    %v2032 = vld [vmem:[%s2023 + $0x20] sm:$0xf]
    %v2033 = vld [vmem:[%s2023 + $0x24] sm:$0xf]
    %v2034 = vld [vmem:[%s2023 + $0x28] sm:$0xf]
    %v2035 = vld [vmem:[%s2023 + $0x2c] sm:$0xf]
    %v2036 = vld [vmem:[%s2023 + $0x30] sm:$0xf]
    %v2037 = vld [vmem:[%s2023 + $0x34] sm:$0xf]
    %v2038 = vld [vmem:[%s2023 + $0x38] sm:$0xf]
    %v2039 = vld [vmem:[%s2023 + $0x3c] sm:$0xf]
    %v2056 = vunpack.c.l.b16 %v2024
    %v2057 = vunpack.c.l.b16 %v2025
    %v2058 = vunpack.c.l.b16 %v2026
    %v2059 = vunpack.c.l.b16 %v2027
    %v2060 = vunpack.c.l.b16 %v2028
    %v2061 = vunpack.c.l.b16 %v2029
    %v2062 = vunpack.c.l.b16 %v2030
    %v2063 = vunpack.c.l.b16 %v2031
    %v2064 = vunpack.c.l.b16 %v2032
    %v2065 = vunpack.c.l.b16 %v2033
    %v2066 = vunpack.c.l.b16 %v2034
    %v2067 = vunpack.c.l.b16 %v2035
    %v2068 = vunpack.c.l.b16 %v2036
    %v2069 = vunpack.c.l.b16 %v2037
    %v2070 = vunpack.c.l.b16 %v2038
    %v2071 = vunpack.c.l.b16 %v2039
    %v2072 = vpack.c.b16 %v2057, %v2056
    %v2073 = vpack.c.b16 %v2059, %v2058
    %v2074 = vpack.c.b16 %v2061, %v2060
    %v2075 = vpack.c.b16 %v2063, %v2062
    %v2076 = vpack.c.b16 %v2065, %v2064
    %v2077 = vpack.c.b16 %v2067, %v2066
    %v2078 = vpack.c.b16 %v2069, %v2068
    %v2079 = vpack.c.b16 %v2071, %v2070
    %2088 = vmatprep.subr.bf16.mxu0 0
    %2089 = vmatpush1.bf16.msra.mxu0 %v431
    %2090 = vmatprep.subr.bf16.mxu0 0
    %2091 = vmatpush1.bf16.msra.mxu0 %v430
    %2092 = vmatprep.subr.bf16.mxu0 0
    %2093 = vmatpush1.bf16.msra.mxu0 %v429
    %2094 = vmatprep.subr.bf16.mxu0 0
    %2095 = vmatpush1.bf16.msra.mxu0 %v428
    %2096 = vmatprep.subr.bf16.mxu0 0
    %2097 = vmatpush1.bf16.msra.mxu0 %v427
    %2098 = vmatprep.subr.bf16.mxu0 0
    %2099 = vmatpush1.bf16.msra.mxu0 %v426
    %2100 = vmatprep.subr.bf16.mxu0 0
    %2101 = vmatpush1.bf16.msra.mxu0 %v425
    %2102 = vmatprep.subr.bf16.mxu0 0
    %2103 = vmatpush1.bf16.msra.mxu0 %v424
    %2104 = vmatprep.subr.bf16.mxu0 0
    %2105 = vmatpush2.bf16.msra.mxu0 0
    %2106 = vmatprep.subr.bf16.mxu0 0
    %2107 = vmatpush2.bf16.msra.mxu0 0
    %2108 = vmatprep.subr.bf16.mxu0 0
    %2109 = vmatpush2.bf16.msra.mxu0 0
    %2110 = vmatprep.subr.bf16.mxu0 0
    %2111 = vmatpush2.bf16.msra.mxu0 0
    %2112 = vmatprep.subr.bf16.mxu0 0
    %2113 = vmatpush2.bf16.msra.mxu0 0
    %2114 = vmatprep.subr.bf16.mxu0 0
    %2115 = vmatpush2.bf16.msra.mxu0 0
    %2116 = vmatprep.subr.bf16.mxu0 0
    %2117 = vmatpush2.bf16.msra.mxu0 0
    %2118 = vmatprep.subr.bf16.mxu0 0
    %2119 = vmatpush2.bf16.msra.mxu0 0
    %2120 = vmatprep.mubr.bf16.mxu0 0
    %2121 = vmatmul.mubr.bf16.gmra.mxu0 %v2072
    %v2122 = vpop.f32.mrf.mxu0
    %v2123 = vadd.f32 0.0, %v2122
    %v2124 = vpop.f32.mrf.mxu0
    %v2125 = vpop.f32.mrf.mxu0
    %v2126 = vadd.f32 0.0, %v2125
    %v2127 = vpop.f32.mrf.mxu0
    %2128 = vmatprep.mubr.bf16.mxu0 0
    %2129 = vmatmul.mubr.bf16.gmra.mxu0 %v2073
    %v2130 = vpop.f32.mrf.mxu0
    %v2131 = vadd.f32 0.0, %v2130
    %v2132 = vpop.f32.mrf.mxu0
    %v2133 = vpop.f32.mrf.mxu0
    %v2134 = vadd.f32 0.0, %v2133
    %v2135 = vpop.f32.mrf.mxu0
    %2136 = vmatprep.mubr.bf16.mxu0 0
    %2137 = vmatmul.mubr.bf16.gmra.mxu0 %v2074
    %v2138 = vpop.f32.mrf.mxu0
    %v2139 = vadd.f32 0.0, %v2138
    %v2140 = vpop.f32.mrf.mxu0
    %v2141 = vpop.f32.mrf.mxu0
    %v2142 = vadd.f32 0.0, %v2141
    %v2143 = vpop.f32.mrf.mxu0
    %2144 = vmatprep.mubr.bf16.mxu0 0
    %2145 = vmatmul.mubr.bf16.gmra.mxu0 %v2075
    %v2146 = vpop.f32.mrf.mxu0
    %v2147 = vadd.f32 0.0, %v2146
    %v2148 = vpop.f32.mrf.mxu0
    %v2149 = vpop.f32.mrf.mxu0
    %v2150 = vadd.f32 0.0, %v2149
    %v2151 = vpop.f32.mrf.mxu0
    %2152 = vmatprep.mubr.bf16.mxu0 0
    %2153 = vmatmul.mubr.bf16.gmra.mxu0 %v2076
    %v2154 = vpop.f32.mrf.mxu0
    %v2155 = vadd.f32 0.0, %v2154
    %v2156 = vpop.f32.mrf.mxu0
    %v2157 = vpop.f32.mrf.mxu0
    %v2158 = vadd.f32 0.0, %v2157
    %v2159 = vpop.f32.mrf.mxu0
    %2160 = vmatprep.mubr.bf16.mxu0 0
    %2161 = vmatmul.mubr.bf16.gmra.mxu0 %v2077
    %v2162 = vpop.f32.mrf.mxu0
    %v2163 = vadd.f32 0.0, %v2162
    %v2164 = vpop.f32.mrf.mxu0
    %v2165 = vpop.f32.mrf.mxu0
    %v2166 = vadd.f32 0.0, %v2165
    %v2167 = vpop.f32.mrf.mxu0
    %2168 = vmatprep.mubr.bf16.mxu0 0
    %2169 = vmatmul.mubr.bf16.gmra.mxu0 %v2078
    %v2170 = vpop.f32.mrf.mxu0
    %v2171 = vadd.f32 0.0, %v2170
    %v2172 = vpop.f32.mrf.mxu0
    %v2173 = vpop.f32.mrf.mxu0
    %v2174 = vadd.f32 0.0, %v2173
    %v2175 = vpop.f32.mrf.mxu0
    %2176 = vmatprep.mubr.bf16.mxu0 0
    %2177 = vmatmul.mubr.bf16.gmra.mxu0 %v2079
    %v2178 = vpop.f32.mrf.mxu0
    %v2179 = vadd.f32 0.0, %v2178
    %v2180 = vpop.f32.mrf.mxu0
    %v2181 = vpop.f32.mrf.mxu0
    %v2182 = vadd.f32 0.0, %v2181
    %v2183 = vpop.f32.mrf.mxu0
    %2184 = vdwg.mxu0
    %v2185 = vld [vmem:[%s7 + $0xe] sm:$0x1]
    %v2186 = vlaneseq
    %v2187 = vshrl.u32 %v2186, 7
    %v2188 = vsub.s32 0, %v2187
    %v2189 = vrot.slane %v2185, %v2188
    %v2190 = vmul.f32 %v2123, %v2189
    %v2191 = vmul.f32 %v2126, %v2189
    %v2192 = vmul.f32 %v2131, %v2189
    %v2193 = vmul.f32 %v2134, %v2189
    %v2194 = vmul.f32 %v2139, %v2189
    %v2195 = vmul.f32 %v2142, %v2189
    %v2196 = vmul.f32 %v2147, %v2189
    %v2197 = vmul.f32 %v2150, %v2189
    %v2198 = vmul.f32 %v2155, %v2189
    %v2199 = vmul.f32 %v2158, %v2189
    %v2200 = vmul.f32 %v2163, %v2189
    %v2201 = vmul.f32 %v2166, %v2189
    %v2202 = vmul.f32 %v2171, %v2189
    %v2203 = vmul.f32 %v2174, %v2189
    %v2204 = vmul.f32 %v2179, %v2189
    %v2205 = vmul.f32 %v2182, %v2189
    %v2206 = vadd.f32 %v2007, %v2190
    %v2207 = vadd.f32 %v2008, %v2191
    %v2208 = vadd.f32 %v2009, %v2192
    %v2209 = vadd.f32 %v2010, %v2193
    %v2210 = vadd.f32 %v2011, %v2194
    %v2211 = vadd.f32 %v2012, %v2195
    %v2212 = vadd.f32 %v2013, %v2196
    %v2213 = vadd.f32 %v2014, %v2197
    %v2214 = vadd.f32 %v2015, %v2198
    %v2215 = vadd.f32 %v2016, %v2199
    %v2216 = vadd.f32 %v2017, %v2200
    %v2217 = vadd.f32 %v2018, %v2201
    %v2218 = vadd.f32 %v2019, %v2202
    %v2219 = vadd.f32 %v2020, %v2203
    %v2220 = vadd.f32 %v2021, %v2204
    %v2221 = vadd.f32 %v2022, %v2205
    %v2222 = vld [vmem:[%s7 + $0x2] sm:$0x1]
    %v2223 = vld [vmem:[%s7 + $0x3] sm:$0x1]
    %v2224 = vsel %vm240, %v2206, 0.0
    %v2225 = vsel %vm240, %v2207, 0.0
    %v2226 = vadd.f32 %v2224, %v2225
    %v2227 = vsel %vm240, %v2208, 0.0
    %v2228 = vadd.f32 %v2226, %v2227
    %v2229 = vsel %vm240, %v2209, 0.0
    %v2230 = vadd.f32 %v2228, %v2229
    %v2231 = vsel %vm240, %v2210, 0.0
    %v2232 = vadd.f32 %v2230, %v2231
    %v2233 = vsel %vm240, %v2211, 0.0
    %v2234 = vadd.f32 %v2232, %v2233
    %v2235 = vsel %vm240, %v2212, 0.0
    %v2236 = vadd.f32 %v2234, %v2235
    %v2237 = vsel %vm240, %v2213, 0.0
    %v2238 = vadd.f32 %v2236, %v2237
    %v2239 = vsel %vm240, %v2214, 0.0
    %v2240 = vadd.f32 %v2238, %v2239
    %v2241 = vsel %vm240, %v2215, 0.0
    %v2242 = vadd.f32 %v2240, %v2241
    %v2243 = vsel %vm240, %v2216, 0.0
    %v2244 = vadd.f32 %v2242, %v2243
    %v2245 = vsel %vm240, %v2217, 0.0
    %v2246 = vadd.f32 %v2244, %v2245
    %v2247 = vsel %vm240, %v2218, 0.0
    %v2248 = vadd.f32 %v2246, %v2247
    %v2249 = vsel %vm240, %v2219, 0.0
    %v2250 = vadd.f32 %v2248, %v2249
    %v2251 = vsel %vm240, %v2220, 0.0
    %v2252 = vadd.f32 %v2250, %v2251
    %v2253 = vsel %vm240, %v2221, 0.0
    %v2254 = vadd.f32 %v2252, %v2253
    %v2255 = vrot.slane %v2254, 4
    %v2256 = vadd.f32 %v2254, %v2255
    %v2257 = vrot.slane %v2256, 2
    %v2258 = vadd.f32 %v2256, %v2257
    %v2259 = vrot.slane %v2258, 1
    %v2260 = vadd.f32 %v2258, %v2259
    %v2261 = vmul.f32 %v2260, %v278
    %v2262 = vsub.f32 %v2206, %v2261
    %v2263 = vsub.f32 %v2207, %v2261
    %v2264 = vsub.f32 %v2208, %v2261
    %v2265 = vsub.f32 %v2209, %v2261
    %v2266 = vsub.f32 %v2210, %v2261
    %v2267 = vsub.f32 %v2211, %v2261
    %v2268 = vsub.f32 %v2212, %v2261
    %v2269 = vsub.f32 %v2213, %v2261
    %v2270 = vsub.f32 %v2214, %v2261
    %v2271 = vsub.f32 %v2215, %v2261
    %v2272 = vsub.f32 %v2216, %v2261
    %v2273 = vsub.f32 %v2217, %v2261
    %v2274 = vsub.f32 %v2218, %v2261
    %v2275 = vsub.f32 %v2219, %v2261
    %v2276 = vsub.f32 %v2220, %v2261
    %v2277 = vsub.f32 %v2221, %v2261
    %v2278 = vmul.f32 %v2262, %v2262
    %v2279 = vmul.f32 %v2263, %v2263
    %v2280 = vmul.f32 %v2264, %v2264
    %v2281 = vmul.f32 %v2265, %v2265
    %v2282 = vmul.f32 %v2266, %v2266
    %v2283 = vmul.f32 %v2267, %v2267
    %v2284 = vmul.f32 %v2268, %v2268
    %v2285 = vmul.f32 %v2269, %v2269
    %v2286 = vmul.f32 %v2270, %v2270
    %v2287 = vmul.f32 %v2271, %v2271
    %v2288 = vmul.f32 %v2272, %v2272
    %v2289 = vmul.f32 %v2273, %v2273
    %v2290 = vmul.f32 %v2274, %v2274
    %v2291 = vmul.f32 %v2275, %v2275
    %v2292 = vmul.f32 %v2276, %v2276
    %v2293 = vmul.f32 %v2277, %v2277
    %v2294 = vsel %vm240, %v2278, 0.0
    %v2295 = vsel %vm240, %v2279, 0.0
    %v2296 = vadd.f32 %v2294, %v2295
    %v2297 = vsel %vm240, %v2280, 0.0
    %v2298 = vadd.f32 %v2296, %v2297
    %v2299 = vsel %vm240, %v2281, 0.0
    %v2300 = vadd.f32 %v2298, %v2299
    %v2301 = vsel %vm240, %v2282, 0.0
    %v2302 = vadd.f32 %v2300, %v2301
    %v2303 = vsel %vm240, %v2283, 0.0
    %v2304 = vadd.f32 %v2302, %v2303
    %v2305 = vsel %vm240, %v2284, 0.0
    %v2306 = vadd.f32 %v2304, %v2305
    %v2307 = vsel %vm240, %v2285, 0.0
    %v2308 = vadd.f32 %v2306, %v2307
    %v2309 = vsel %vm240, %v2286, 0.0
    %v2310 = vadd.f32 %v2308, %v2309
    %v2311 = vsel %vm240, %v2287, 0.0
    %v2312 = vadd.f32 %v2310, %v2311
    %v2313 = vsel %vm240, %v2288, 0.0
    %v2314 = vadd.f32 %v2312, %v2313
    %v2315 = vsel %vm240, %v2289, 0.0
    %v2316 = vadd.f32 %v2314, %v2315
    %v2317 = vsel %vm240, %v2290, 0.0
    %v2318 = vadd.f32 %v2316, %v2317
    %v2319 = vsel %vm240, %v2291, 0.0
    %v2320 = vadd.f32 %v2318, %v2319
    %v2321 = vsel %vm240, %v2292, 0.0
    %v2322 = vadd.f32 %v2320, %v2321
    %v2323 = vsel %vm240, %v2293, 0.0
    %v2324 = vadd.f32 %v2322, %v2323
    %v2325 = vrot.slane %v2324, 4
    %v2326 = vadd.f32 %v2324, %v2325
    %v2327 = vrot.slane %v2326, 2
    %v2328 = vadd.f32 %v2326, %v2327
    %v2329 = vrot.slane %v2328, 1
    %v2330 = vadd.f32 %v2328, %v2329
    %v2331 = vmul.f32 %v2330, %v278
    %v2332 = vadd.f32 %v2331, 1e-05
    %v2333 = vrsqrt.pop %v2332
    %v2334 = vmul.f32 %v2262, %v2333
    %v2335 = vmul.f32 %v2263, %v2333
    %v2336 = vmul.f32 %v2264, %v2333
    %v2337 = vmul.f32 %v2265, %v2333
    %v2338 = vmul.f32 %v2266, %v2333
    %v2339 = vmul.f32 %v2267, %v2333
    %v2340 = vmul.f32 %v2268, %v2333
    %v2341 = vmul.f32 %v2269, %v2333
    %v2342 = vmul.f32 %v2270, %v2333
    %v2343 = vmul.f32 %v2271, %v2333
    %v2344 = vmul.f32 %v2272, %v2333
    %v2345 = vmul.f32 %v2273, %v2333
    %v2346 = vmul.f32 %v2274, %v2333
    %v2347 = vmul.f32 %v2275, %v2333
    %v2348 = vmul.f32 %v2276, %v2333
    %v2349 = vmul.f32 %v2277, %v2333
    %v2350 = vlaneseq
    %v2351 = vshrl.u32 %v2350, 7
    %v2352 = vsub.s32 0, %v2351
    %v2353 = vrot.slane %v2222, %v2352
    %v2354 = vmul.f32 %v2334, %v2353
    %v2355 = vmul.f32 %v2335, %v2353
    %v2356 = vmul.f32 %v2336, %v2353
    %v2357 = vmul.f32 %v2337, %v2353
    %v2358 = vmul.f32 %v2338, %v2353
    %v2359 = vmul.f32 %v2339, %v2353
    %v2360 = vmul.f32 %v2340, %v2353
    %v2361 = vmul.f32 %v2341, %v2353
    %v2362 = vmul.f32 %v2342, %v2353
    %v2363 = vmul.f32 %v2343, %v2353
    %v2364 = vmul.f32 %v2344, %v2353
    %v2365 = vmul.f32 %v2345, %v2353
    %v2366 = vmul.f32 %v2346, %v2353
    %v2367 = vmul.f32 %v2347, %v2353
    %v2368 = vmul.f32 %v2348, %v2353
    %v2369 = vmul.f32 %v2349, %v2353
    %v2370 = vlaneseq
    %v2371 = vshrl.u32 %v2370, 7
    %v2372 = vsub.s32 0, %v2371
    %v2373 = vrot.slane %v2223, %v2372
    %v2374 = vadd.f32 %v2354, %v2373
    %v2375 = vadd.f32 %v2355, %v2373
    %v2376 = vadd.f32 %v2356, %v2373
    %v2377 = vadd.f32 %v2357, %v2373
    %v2378 = vadd.f32 %v2358, %v2373
    %v2379 = vadd.f32 %v2359, %v2373
    %v2380 = vadd.f32 %v2360, %v2373
    %v2381 = vadd.f32 %v2361, %v2373
    %v2382 = vadd.f32 %v2362, %v2373
    %v2383 = vadd.f32 %v2363, %v2373
    %v2384 = vadd.f32 %v2364, %v2373
    %v2385 = vadd.f32 %v2365, %v2373
    %v2386 = vadd.f32 %v2366, %v2373
    %v2387 = vadd.f32 %v2367, %v2373
    %v2388 = vadd.f32 %v2368, %v2373
    %v2389 = vadd.f32 %v2369, %v2373
    %v2390 = vmax.f32 %v2374, 0.0
    %v2391 = vmax.f32 %v2375, 0.0
    %v2392 = vmax.f32 %v2376, 0.0
    %v2393 = vmax.f32 %v2377, 0.0
    %v2394 = vmax.f32 %v2378, 0.0
    %v2395 = vmax.f32 %v2379, 0.0
    %v2396 = vmax.f32 %v2380, 0.0
    %v2397 = vmax.f32 %v2381, 0.0
    %v2398 = vmax.f32 %v2382, 0.0
    %v2399 = vmax.f32 %v2383, 0.0
    %v2400 = vmax.f32 %v2384, 0.0
    %v2401 = vmax.f32 %v2385, 0.0
    %v2402 = vmax.f32 %v2386, 0.0
    %v2403 = vmax.f32 %v2387, 0.0
    %v2404 = vmax.f32 %v2388, 0.0
    %v2405 = vmax.f32 %v2389, 0.0
    %v2406 = vpack.c.bf16 %v2391, %v2390
    %v2407 = vpack.c.bf16 %v2393, %v2392
    %v2408 = vpack.c.bf16 %v2395, %v2394
    %v2409 = vpack.c.bf16 %v2397, %v2396
    %v2410 = vpack.c.bf16 %v2399, %v2398
    %v2411 = vpack.c.bf16 %v2401, %v2400
    %v2412 = vpack.c.bf16 %v2403, %v2402
    %v2413 = vpack.c.bf16 %v2405, %v2404
    %v2414 = vld [vmem:[%s3] sm:$0xf]
    %v2415 = vld [vmem:[%s3 + $0x4] sm:$0xf]
    %v2416 = vld [vmem:[%s3 + $0x8] sm:$0xf]
    %v2417 = vld [vmem:[%s3 + $0xc] sm:$0xf]
    %v2422 = vunpack.c.l.b16 %v2414
    %v2423 = vunpack.c.l.b16 %v2415
    %v2424 = vunpack.c.l.b16 %v2416
    %v2425 = vunpack.c.l.b16 %v2417
    %v2426 = vpack.c.b16 %v2423, %v2422
    %v2427 = vpack.c.b16 %v2425, %v2424
    %v2431 = vsel %vm240, %v2406, 0
    %v2434 = vsel %vm240, %v2407, 0
    %v2437 = vsel %vm240, %v2408, 0
    %v2440 = vsel %vm240, %v2409, 0
    %v2443 = vsel %vm240, %v2410, 0
    %v2446 = vsel %vm240, %v2411, 0
    %v2449 = vsel %vm240, %v2412, 0
    %v2452 = vsel %vm240, %v2413, 0
    %2454 = vmatprep.subr.bf16.mxu0 0
    %2455 = vmatpush1.bf16.msra.mxu0 0
    %2456 = vmatprep.subr.bf16.mxu0 0
    %2457 = vmatpush1.bf16.msra.mxu0 0
    %2458 = vmatprep.subr.bf16.mxu0 0
    %2459 = vmatpush1.bf16.msra.mxu0 0
    %2460 = vmatprep.subr.bf16.mxu0 0
    %2461 = vmatpush1.bf16.msra.mxu0 0
    %2462 = vmatprep.subr.bf16.mxu0 0
    %2463 = vmatpush1.bf16.msra.mxu0 0
    %2464 = vmatprep.subr.bf16.mxu0 0
    %2465 = vmatpush1.bf16.msra.mxu0 0
    %2466 = vmatprep.subr.bf16.mxu0 0
    %2467 = vmatpush1.bf16.msra.mxu0 %v2427
    %2468 = vmatprep.subr.bf16.mxu0 0
    %2469 = vmatpush1.bf16.msra.mxu0 %v2426
    %2470 = vmatprep.subr.bf16.mxu0 0
    %2471 = vmatpush2.bf16.msra.mxu0 0
    %2472 = vmatprep.subr.bf16.mxu0 0
    %2473 = vmatpush2.bf16.msra.mxu0 0
    %2474 = vmatprep.subr.bf16.mxu0 0
    %2475 = vmatpush2.bf16.msra.mxu0 0
    %2476 = vmatprep.subr.bf16.mxu0 0
    %2477 = vmatpush2.bf16.msra.mxu0 0
    %2478 = vmatprep.subr.bf16.mxu0 0
    %2479 = vmatpush2.bf16.msra.mxu0 0
    %2480 = vmatprep.subr.bf16.mxu0 0
    %2481 = vmatpush2.bf16.msra.mxu0 0
    %2482 = vmatprep.subr.bf16.mxu0 0
    %2483 = vmatpush2.bf16.msra.mxu0 0
    %2484 = vmatprep.subr.bf16.mxu0 0
    %2485 = vmatpush2.bf16.msra.mxu0 0
    %2486 = vmatprep.mubr.bf16.mxu0 0
    %2487 = vmatmul.mubr.bf16.gmra.mxu0 %v2431
    %v2488 = vpop.f32.mrf.mxu0
    %v2489 = vadd.f32 0.0, %v2488
    %v2490 = vpop.f32.mrf.mxu0
    %v2491 = vpop.f32.mrf.mxu0
    %v2492 = vadd.f32 0.0, %v2491
    %v2493 = vpop.f32.mrf.mxu0
    %2494 = vmatprep.mubr.bf16.mxu0 0
    %2495 = vmatmul.mubr.bf16.gmra.mxu0 %v2434
    %v2496 = vpop.f32.mrf.mxu0
    %v2497 = vadd.f32 0.0, %v2496
    %v2498 = vpop.f32.mrf.mxu0
    %v2499 = vpop.f32.mrf.mxu0
    %v2500 = vadd.f32 0.0, %v2499
    %v2501 = vpop.f32.mrf.mxu0
    %2502 = vmatprep.mubr.bf16.mxu0 0
    %2503 = vmatmul.mubr.bf16.gmra.mxu0 %v2437
    %v2504 = vpop.f32.mrf.mxu0
    %v2505 = vadd.f32 0.0, %v2504
    %v2506 = vpop.f32.mrf.mxu0
    %v2507 = vpop.f32.mrf.mxu0
    %v2508 = vadd.f32 0.0, %v2507
    %v2509 = vpop.f32.mrf.mxu0
    %2510 = vmatprep.mubr.bf16.mxu0 0
    %2511 = vmatmul.mubr.bf16.gmra.mxu0 %v2440
    %v2512 = vpop.f32.mrf.mxu0
    %v2513 = vadd.f32 0.0, %v2512
    %v2514 = vpop.f32.mrf.mxu0
    %v2515 = vpop.f32.mrf.mxu0
    %v2516 = vadd.f32 0.0, %v2515
    %v2517 = vpop.f32.mrf.mxu0
    %2518 = vmatprep.mubr.bf16.mxu0 0
    %2519 = vmatmul.mubr.bf16.gmra.mxu0 %v2443
    %v2520 = vpop.f32.mrf.mxu0
    %v2521 = vadd.f32 0.0, %v2520
    %v2522 = vpop.f32.mrf.mxu0
    %v2523 = vpop.f32.mrf.mxu0
    %v2524 = vadd.f32 0.0, %v2523
    %v2525 = vpop.f32.mrf.mxu0
    %2526 = vmatprep.mubr.bf16.mxu0 0
    %2527 = vmatmul.mubr.bf16.gmra.mxu0 %v2446
    %v2528 = vpop.f32.mrf.mxu0
    %v2529 = vadd.f32 0.0, %v2528
    %v2530 = vpop.f32.mrf.mxu0
    %v2531 = vpop.f32.mrf.mxu0
    %v2532 = vadd.f32 0.0, %v2531
    %v2533 = vpop.f32.mrf.mxu0
    %2534 = vmatprep.mubr.bf16.mxu0 0
    %2535 = vmatmul.mubr.bf16.gmra.mxu0 %v2449
    %v2536 = vpop.f32.mrf.mxu0
    %v2537 = vadd.f32 0.0, %v2536
    %v2538 = vpop.f32.mrf.mxu0
    %v2539 = vpop.f32.mrf.mxu0
    %v2540 = vadd.f32 0.0, %v2539
    %v2541 = vpop.f32.mrf.mxu0
    %2542 = vmatprep.mubr.bf16.mxu0 0
    %2543 = vmatmul.mubr.bf16.gmra.mxu0 %v2452
    %v2544 = vpop.f32.mrf.mxu0
    %v2545 = vadd.f32 0.0, %v2544
    %v2546 = vpop.f32.mrf.mxu0
    %v2547 = vpop.f32.mrf.mxu0
    %v2548 = vadd.f32 0.0, %v2547
    %v2549 = vpop.f32.mrf.mxu0
    %2550 = vdwg.mxu0
    %v2551 = vld [vmem:[%s7 + $0x4] sm:$0x1]
    %v2552 = vld [vmem:[%s7 + $0x5] sm:$0x1]
    %v2553 = vsel %vm116, %v2489, 0.0
    %v2554 = vsel %vm116, %v2492, 0.0
    %v2555 = vadd.f32 %v2553, %v2554
    %v2556 = vsel %vm116, %v2497, 0.0
    %v2557 = vadd.f32 %v2555, %v2556
    %v2558 = vsel %vm116, %v2500, 0.0
    %v2559 = vadd.f32 %v2557, %v2558
    %v2560 = vsel %vm116, %v2505, 0.0
    %v2561 = vadd.f32 %v2559, %v2560
    %v2562 = vsel %vm116, %v2508, 0.0
    %v2563 = vadd.f32 %v2561, %v2562
    %v2564 = vsel %vm116, %v2513, 0.0
    %v2565 = vadd.f32 %v2563, %v2564
    %v2566 = vsel %vm116, %v2516, 0.0
    %v2567 = vadd.f32 %v2565, %v2566
    %v2568 = vsel %vm116, %v2521, 0.0
    %v2569 = vadd.f32 %v2567, %v2568
    %v2570 = vsel %vm116, %v2524, 0.0
    %v2571 = vadd.f32 %v2569, %v2570
    %v2572 = vsel %vm116, %v2529, 0.0
    %v2573 = vadd.f32 %v2571, %v2572
    %v2574 = vsel %vm116, %v2532, 0.0
    %v2575 = vadd.f32 %v2573, %v2574
    %v2576 = vsel %vm116, %v2537, 0.0
    %v2577 = vadd.f32 %v2575, %v2576
    %v2578 = vsel %vm116, %v2540, 0.0
    %v2579 = vadd.f32 %v2577, %v2578
    %v2580 = vsel %vm116, %v2545, 0.0
    %v2581 = vadd.f32 %v2579, %v2580
    %v2582 = vsel %vm116, %v2548, 0.0
    %v2583 = vadd.f32 %v2581, %v2582
    %v2584 = vrot.slane %v2583, 4
    %v2585 = vadd.f32 %v2583, %v2584
    %v2586 = vrot.slane %v2585, 2
    %v2587 = vadd.f32 %v2585, %v2586
    %v2588 = vrot.slane %v2587, 1
    %v2589 = vadd.f32 %v2587, %v2588
    %v2590 = vmul.f32 %v2589, %v278
    %v2591 = vsub.f32 %v2489, %v2590
    %v2592 = vsub.f32 %v2492, %v2590
    %v2593 = vsub.f32 %v2497, %v2590
    %v2594 = vsub.f32 %v2500, %v2590
    %v2595 = vsub.f32 %v2505, %v2590
    %v2596 = vsub.f32 %v2508, %v2590
    %v2597 = vsub.f32 %v2513, %v2590
    %v2598 = vsub.f32 %v2516, %v2590
    %v2599 = vsub.f32 %v2521, %v2590
    %v2600 = vsub.f32 %v2524, %v2590
    %v2601 = vsub.f32 %v2529, %v2590
    %v2602 = vsub.f32 %v2532, %v2590
    %v2603 = vsub.f32 %v2537, %v2590
    %v2604 = vsub.f32 %v2540, %v2590
    %v2605 = vsub.f32 %v2545, %v2590
    %v2606 = vsub.f32 %v2548, %v2590
    %v2607 = vmul.f32 %v2591, %v2591
    %v2608 = vmul.f32 %v2592, %v2592
    %v2609 = vmul.f32 %v2593, %v2593
    %v2610 = vmul.f32 %v2594, %v2594
    %v2611 = vmul.f32 %v2595, %v2595
    %v2612 = vmul.f32 %v2596, %v2596
    %v2613 = vmul.f32 %v2597, %v2597
    %v2614 = vmul.f32 %v2598, %v2598
    %v2615 = vmul.f32 %v2599, %v2599
    %v2616 = vmul.f32 %v2600, %v2600
    %v2617 = vmul.f32 %v2601, %v2601
    %v2618 = vmul.f32 %v2602, %v2602
    %v2619 = vmul.f32 %v2603, %v2603
    %v2620 = vmul.f32 %v2604, %v2604
    %v2621 = vmul.f32 %v2605, %v2605
    %v2622 = vmul.f32 %v2606, %v2606
    %v2623 = vsel %vm116, %v2607, 0.0
    %v2624 = vsel %vm116, %v2608, 0.0
    %v2625 = vadd.f32 %v2623, %v2624
    %v2626 = vsel %vm116, %v2609, 0.0
    %v2627 = vadd.f32 %v2625, %v2626
    %v2628 = vsel %vm116, %v2610, 0.0
    %v2629 = vadd.f32 %v2627, %v2628
    %v2630 = vsel %vm116, %v2611, 0.0
    %v2631 = vadd.f32 %v2629, %v2630
    %v2632 = vsel %vm116, %v2612, 0.0
    %v2633 = vadd.f32 %v2631, %v2632
    %v2634 = vsel %vm116, %v2613, 0.0
    %v2635 = vadd.f32 %v2633, %v2634
    %v2636 = vsel %vm116, %v2614, 0.0
    %v2637 = vadd.f32 %v2635, %v2636
    %v2638 = vsel %vm116, %v2615, 0.0
    %v2639 = vadd.f32 %v2637, %v2638
    %v2640 = vsel %vm116, %v2616, 0.0
    %v2641 = vadd.f32 %v2639, %v2640
    %v2642 = vsel %vm116, %v2617, 0.0
    %v2643 = vadd.f32 %v2641, %v2642
    %v2644 = vsel %vm116, %v2618, 0.0
    %v2645 = vadd.f32 %v2643, %v2644
    %v2646 = vsel %vm116, %v2619, 0.0
    %v2647 = vadd.f32 %v2645, %v2646
    %v2648 = vsel %vm116, %v2620, 0.0
    %v2649 = vadd.f32 %v2647, %v2648
    %v2650 = vsel %vm116, %v2621, 0.0
    %v2651 = vadd.f32 %v2649, %v2650
    %v2652 = vsel %vm116, %v2622, 0.0
    %v2653 = vadd.f32 %v2651, %v2652
    %v2654 = vrot.slane %v2653, 4
    %v2655 = vadd.f32 %v2653, %v2654
    %v2656 = vrot.slane %v2655, 2
    %v2657 = vadd.f32 %v2655, %v2656
    %v2658 = vrot.slane %v2657, 1
    %v2659 = vadd.f32 %v2657, %v2658
    %v2660 = vmul.f32 %v2659, %v278
    %v2661 = vadd.f32 %v2660, 1e-05
    %v2662 = vrsqrt.pop %v2661
    %v2663 = vmul.f32 %v2591, %v2662
    %v2664 = vmul.f32 %v2592, %v2662
    %v2665 = vmul.f32 %v2593, %v2662
    %v2666 = vmul.f32 %v2594, %v2662
    %v2667 = vmul.f32 %v2595, %v2662
    %v2668 = vmul.f32 %v2596, %v2662
    %v2669 = vmul.f32 %v2597, %v2662
    %v2670 = vmul.f32 %v2598, %v2662
    %v2671 = vmul.f32 %v2599, %v2662
    %v2672 = vmul.f32 %v2600, %v2662
    %v2673 = vmul.f32 %v2601, %v2662
    %v2674 = vmul.f32 %v2602, %v2662
    %v2675 = vmul.f32 %v2603, %v2662
    %v2676 = vmul.f32 %v2604, %v2662
    %v2677 = vmul.f32 %v2605, %v2662
    %v2678 = vmul.f32 %v2606, %v2662
    %v2679 = vlaneseq
    %v2680 = vshrl.u32 %v2679, 7
    %v2681 = vsub.s32 0, %v2680
    %v2682 = vrot.slane %v2551, %v2681
    %v2683 = vmul.f32 %v2663, %v2682
    %v2684 = vmul.f32 %v2664, %v2682
    %v2685 = vmul.f32 %v2665, %v2682
    %v2686 = vmul.f32 %v2666, %v2682
    %v2687 = vmul.f32 %v2667, %v2682
    %v2688 = vmul.f32 %v2668, %v2682
    %v2689 = vmul.f32 %v2669, %v2682
    %v2690 = vmul.f32 %v2670, %v2682
    %v2691 = vmul.f32 %v2671, %v2682
    %v2692 = vmul.f32 %v2672, %v2682
    %v2693 = vmul.f32 %v2673, %v2682
    %v2694 = vmul.f32 %v2674, %v2682
    %v2695 = vmul.f32 %v2675, %v2682
    %v2696 = vmul.f32 %v2676, %v2682
    %v2697 = vmul.f32 %v2677, %v2682
    %v2698 = vmul.f32 %v2678, %v2682
    %v2699 = vlaneseq
    %v2700 = vshrl.u32 %v2699, 7
    %v2701 = vsub.s32 0, %v2700
    %v2702 = vrot.slane %v2552, %v2701
    %v2703 = vadd.f32 %v2683, %v2702
    %v2704 = vadd.f32 %v2684, %v2702
    %v2705 = vadd.f32 %v2685, %v2702
    %v2706 = vadd.f32 %v2686, %v2702
    %v2707 = vadd.f32 %v2687, %v2702
    %v2708 = vadd.f32 %v2688, %v2702
    %v2709 = vadd.f32 %v2689, %v2702
    %v2710 = vadd.f32 %v2690, %v2702
    %v2711 = vadd.f32 %v2691, %v2702
    %v2712 = vadd.f32 %v2692, %v2702
    %v2713 = vadd.f32 %v2693, %v2702
    %v2714 = vadd.f32 %v2694, %v2702
    %v2715 = vadd.f32 %v2695, %v2702
    %v2716 = vadd.f32 %v2696, %v2702
    %v2717 = vadd.f32 %v2697, %v2702
    %v2718 = vadd.f32 %v2698, %v2702
    %v2719 = vmax.f32 %v2703, 0.0
    %v2720 = vmax.f32 %v2704, 0.0
    %v2721 = vmax.f32 %v2705, 0.0
    %v2722 = vmax.f32 %v2706, 0.0
    %v2723 = vmax.f32 %v2707, 0.0
    %v2724 = vmax.f32 %v2708, 0.0
    %v2725 = vmax.f32 %v2709, 0.0
    %v2726 = vmax.f32 %v2710, 0.0
    %v2727 = vmax.f32 %v2711, 0.0
    %v2728 = vmax.f32 %v2712, 0.0
    %v2729 = vmax.f32 %v2713, 0.0
    %v2730 = vmax.f32 %v2714, 0.0
    %v2731 = vmax.f32 %v2715, 0.0
    %v2732 = vmax.f32 %v2716, 0.0
    %v2733 = vmax.f32 %v2717, 0.0
    %v2734 = vmax.f32 %v2718, 0.0
    %v2735 = vsel %vm116, %v2719, 0.0
    %v2736 = vsel %vm116, %v2720, 0.0
    %v2737 = vadd.f32 %v2735, %v2736
    %v2738 = vsel %vm116, %v2721, 0.0
    %v2739 = vadd.f32 %v2737, %v2738
    %v2740 = vsel %vm116, %v2722, 0.0
    %v2741 = vadd.f32 %v2739, %v2740
    %v2742 = vsel %vm116, %v2723, 0.0
    %v2743 = vadd.f32 %v2741, %v2742
    %v2744 = vsel %vm116, %v2724, 0.0
    %v2745 = vadd.f32 %v2743, %v2744
    %v2746 = vsel %vm116, %v2725, 0.0
    %v2747 = vadd.f32 %v2745, %v2746
    %v2748 = vsel %vm116, %v2726, 0.0
    %v2749 = vadd.f32 %v2747, %v2748
    %v2750 = vrot.slane %v2749, 4
    %v2751 = vadd.f32 %v2749, %v2750
    %v2752 = vrot.slane %v2751, 2
    %v2753 = vadd.f32 %v2751, %v2752
    %v2754 = vrot.slane %v2753, 1
    %v2755 = vadd.f32 %v2753, %v2754
    %v2756 = vsel %vm116, %v2727, 0.0
    %v2757 = vsel %vm116, %v2728, 0.0
    %v2758 = vadd.f32 %v2756, %v2757
    %v2759 = vsel %vm116, %v2729, 0.0
    %v2760 = vadd.f32 %v2758, %v2759
    %v2761 = vsel %vm116, %v2730, 0.0
    %v2762 = vadd.f32 %v2760, %v2761
    %v2763 = vsel %vm116, %v2731, 0.0
    %v2764 = vadd.f32 %v2762, %v2763
    %v2765 = vsel %vm116, %v2732, 0.0
    %v2766 = vadd.f32 %v2764, %v2765
    %v2767 = vsel %vm116, %v2733, 0.0
    %v2768 = vadd.f32 %v2766, %v2767
    %v2769 = vsel %vm116, %v2734, 0.0
    %v2770 = vadd.f32 %v2768, %v2769
    %v2771 = vrot.slane %v2770, 4
    %v2772 = vadd.f32 %v2770, %v2771
    %v2773 = vrot.slane %v2772, 2
    %v2774 = vadd.f32 %v2772, %v2773
    %v2775 = vrot.slane %v2774, 1
    %v2776 = vadd.f32 %v2774, %v2775
    %v2777 = vrcp.pop 64.0
    %v2778 = vmul.f32 %v2755, %v2777
    %v2779 = vmul.f32 %v2776, %v2777
    %v2780 = vsel %vm116, %v2719, -inf
    %v2781 = vsel %vm116, %v2720, -inf
    %v2782 = vsel %vm116, %v2721, -inf
    %v2783 = vmax.f32 %v2780, %v2782
    %v2784 = vsel %vm116, %v2722, -inf
    %v2785 = vmax.f32 %v2781, %v2784
    %v2786 = vsel %vm116, %v2723, -inf
    %v2787 = vmax.f32 %v2783, %v2786
    %v2788 = vsel %vm116, %v2724, -inf
    %v2789 = vmax.f32 %v2785, %v2788
    %v2790 = vsel %vm116, %v2725, -inf
    %v2791 = vmax.f32 %v2787, %v2790
    %v2792 = vsel %vm116, %v2726, -inf
    %v2793 = vmax.f32 %v2789, %v2792
    %v2794 = vmax.f32 %v2791, %v2793
    %v2795 = vrot.slane %v2794, 4
    %v2796 = vmax.f32 %v2794, %v2795
    %v2797 = vrot.slane %v2796, 2
    %v2798 = vmax.f32 %v2796, %v2797
    %v2799 = vrot.slane %v2798, 1
    %v2800 = vmax.f32 %v2798, %v2799
    %v2801 = vsel %vm116, %v2727, -inf
    %v2802 = vsel %vm116, %v2728, -inf
    %v2803 = vsel %vm116, %v2729, -inf
    %v2804 = vmax.f32 %v2801, %v2803
    %v2805 = vsel %vm116, %v2730, -inf
    %v2806 = vmax.f32 %v2802, %v2805
    %v2807 = vsel %vm116, %v2731, -inf
    %v2808 = vmax.f32 %v2804, %v2807
    %v2809 = vsel %vm116, %v2732, -inf
    %v2810 = vmax.f32 %v2806, %v2809
    %v2811 = vsel %vm116, %v2733, -inf
    %v2812 = vmax.f32 %v2808, %v2811
    %v2813 = vsel %vm116, %v2734, -inf
    %v2814 = vmax.f32 %v2810, %v2813
    %v2815 = vmax.f32 %v2812, %v2814
    %v2816 = vrot.slane %v2815, 4
    %v2817 = vmax.f32 %v2815, %v2816
    %v2818 = vrot.slane %v2817, 2
    %v2819 = vmax.f32 %v2817, %v2818
    %v2820 = vrot.slane %v2819, 1
    %v2821 = vmax.f32 %v2819, %v2820
    %vm2824 = vcmask 1041409
    %v2825 = vsel %vm2824, %v2779, %v2778
    %vm2829 = vcmask 1043459
    %v2830 = vsel %vm2829, %v2821, %v2800
    %vm2832 = vcmask 1041408
    %v2833 = vsel %vm2832, %v2825, %v2830
    %v2834 = vpack.c.bf16 %v2833, %v2833
    %v2835 = vld [vmem:[%s4] sm:$0xf]
    %v2836 = vld [vmem:[%s4 + $0x4] sm:$0xf]
    %v2837 = vld [vmem:[%s4 + $0x8] sm:$0xf]
    %v2838 = vld [vmem:[%s4 + $0xc] sm:$0xf]
    %v2839 = vld [vmem:[%s4 + $0x10] sm:$0xf]
    %v2840 = vld [vmem:[%s4 + $0x14] sm:$0xf]
    %v2841 = vld [vmem:[%s4 + $0x18] sm:$0xf]
    %v2842 = vld [vmem:[%s4 + $0x1c] sm:$0xf]
    %v2851 = vunpack.c.l.b16 %v2835
    %v2852 = vunpack.c.l.b16 %v2836
    %v2853 = vunpack.c.l.b16 %v2837
    %v2854 = vunpack.c.l.b16 %v2838
    %v2855 = vunpack.c.l.b16 %v2839
    %v2856 = vunpack.c.l.b16 %v2840
    %v2857 = vunpack.c.l.b16 %v2841
    %v2858 = vunpack.c.l.b16 %v2842
    %v2859 = vpack.c.b16 %v2852, %v2851
    %v2860 = vpack.c.b16 %v2854, %v2853
    %v2861 = vpack.c.b16 %v2856, %v2855
    %v2862 = vpack.c.b16 %v2858, %v2857
    %v2868 = vsel %vm116, %v2834, 0
    %2870 = vmatprep.subr.bf16.mxu0 0
    %2871 = vmatpush1.bf16.msra.mxu0 0
    %2872 = vmatprep.subr.bf16.mxu0 0
    %2873 = vmatpush1.bf16.msra.mxu0 0
    %2874 = vmatprep.subr.bf16.mxu0 0
    %2875 = vmatpush1.bf16.msra.mxu0 0
    %2876 = vmatprep.subr.bf16.mxu0 0
    %2877 = vmatpush1.bf16.msra.mxu0 0
    %2878 = vmatprep.subr.bf16.mxu0 0
    %2879 = vmatpush1.bf16.msra.mxu0 %v2862
    %2880 = vmatprep.subr.bf16.mxu0 0
    %2881 = vmatpush1.bf16.msra.mxu0 %v2861
    %2882 = vmatprep.subr.bf16.mxu0 0
    %2883 = vmatpush1.bf16.msra.mxu0 %v2860
    %2884 = vmatprep.subr.bf16.mxu0 0
    %2885 = vmatpush1.bf16.msra.mxu0 %v2859
    %2886 = vmatprep.subr.bf16.mxu0 0
    %2887 = vmatpush2.bf16.msra.mxu0 0
    %2888 = vmatprep.subr.bf16.mxu0 0
    %2889 = vmatpush2.bf16.msra.mxu0 0
    %2890 = vmatprep.subr.bf16.mxu0 0
    %2891 = vmatpush2.bf16.msra.mxu0 0
    %2892 = vmatprep.subr.bf16.mxu0 0
    %2893 = vmatpush2.bf16.msra.mxu0 0
    %2894 = vmatprep.subr.bf16.mxu0 0
    %2895 = vmatpush2.bf16.msra.mxu0 0
    %2896 = vmatprep.subr.bf16.mxu0 0
    %2897 = vmatpush2.bf16.msra.mxu0 0
    %2898 = vmatprep.subr.bf16.mxu0 0
    %2899 = vmatpush2.bf16.msra.mxu0 0
    %2900 = vmatprep.subr.bf16.mxu0 0
    %2901 = vmatpush2.bf16.msra.mxu0 0
    %2902 = vmatprep.mubr.bf16.mxu0 0
    %2903 = vmatmul.mubr.bf16.gmra.mxu0 %v2868
    %v2904 = vpop.f32.mrf.mxu0
    %v2905 = vadd.f32 0.0, %v2904
    %v2906 = vpop.f32.mrf.mxu0
    %v2907 = vpop.f32.mrf.mxu0
    %v2908 = vpop.f32.mrf.mxu0
    %2909 = vdwg.mxu0
    %v2910 = vmax.f32 %v2905, 0.0
    %v2911 = vpack.c.bf16 %v2910, %v2910
    %v2912 = vld [vmem:[%s5] sm:$0x3]
    %vm2913 = vcmask 31744
    %v2915 = vsel %vm2913, %v2911, 0
    %v2918 = vsel %vm2832, %v2912, 0
    %2920 = vmatprep.subr.bf16.mxu0 0
    %2921 = vmatpush1.bf16.msra.mxu0 0
    %2922 = vmatprep.subr.bf16.mxu0 0
    %2923 = vmatpush1.bf16.msra.mxu0 0
    %2924 = vmatprep.subr.bf16.mxu0 0
    %2925 = vmatpush1.bf16.msra.mxu0 0
    %2926 = vmatprep.subr.bf16.mxu0 0
    %2927 = vmatpush1.bf16.msra.mxu0 0
    %2928 = vmatprep.subr.bf16.mxu0 0
    %2929 = vmatpush1.bf16.msra.mxu0 0
    %2930 = vmatprep.subr.bf16.mxu0 0
    %2931 = vmatpush1.bf16.msra.mxu0 0
    %2932 = vmatprep.subr.bf16.mxu0 0
    %2933 = vmatpush1.bf16.msra.mxu0 0
    %2934 = vmatprep.subr.bf16.mxu0 0
    %2935 = vmatpush1.bf16.msra.mxu0 %v2918
    %2936 = vmatprep.subr.bf16.mxu0 0
    %2937 = vmatpush2.bf16.msra.mxu0 0
    %2938 = vmatprep.subr.bf16.mxu0 0
    %2939 = vmatpush2.bf16.msra.mxu0 0
    %2940 = vmatprep.subr.bf16.mxu0 0
    %2941 = vmatpush2.bf16.msra.mxu0 0
    %2942 = vmatprep.subr.bf16.mxu0 0
    %2943 = vmatpush2.bf16.msra.mxu0 0
    %2944 = vmatprep.subr.bf16.mxu0 0
    %2945 = vmatpush2.bf16.msra.mxu0 0
    %2946 = vmatprep.subr.bf16.mxu0 0
    %2947 = vmatpush2.bf16.msra.mxu0 0
    %2948 = vmatprep.subr.bf16.mxu0 0
    %2949 = vmatpush2.bf16.msra.mxu0 0
    %2950 = vmatprep.subr.bf16.mxu0 0
    %2951 = vmatpush2.bf16.msra.mxu0 0
    %2952 = vmatprep.mubr.bf16.mxu0 0
    %2953 = vmatmul.mubr.bf16.gmra.mxu0 %v2915
    %v2954 = vpop.f32.mrf.mxu0
    %v2955 = vadd.f32 0.0, %v2954
    %v2956 = vpop.f32.mrf.mxu0
    %v2957 = vpop.f32.mrf.mxu0
    %v2958 = vpop.f32.mrf.mxu0
    %2959 = vdwg.mxu0
    %v2961 = vrot.slane %v2955, 2
    %v2963 = vadd.f32 %v2955, %v2961
    %v2964 = vsub.f32 0.0, %v2963
    %v2965 = vmul.f32 %v2964, 1.442695
    %v2966 = vpow.pop %v2965
    %v2967 = vadd.f32 %v2966, 1.0
    %v2968 = vrcp.pop %v2967
    %v2971 = vunpack.c.l.s4 1966171168
    %v2972 = vunpack.c.0.s8 %v2971
    %v2973 = vlaneseq
    %v2974 = vshrl.u32 %v2973, 7
    %v2975 = vsub.s32 %v2972, %v2974
    %v2976 = vrot.slane %v2968, %v2975
    %v2977 = vcombine.high %v2976, %v2976
    %v2979 = vunpack.c.l.s4 1966171168
    %v2980 = vunpack.c.0.s8 %v2979
    %v2981 = vlaneseq
    %v2982 = vshrl.u32 %v2981, 7
    %v2983 = vsub.s32 %v2980, %v2982
    %v2984 = vrot.slane %v2976, %v2983
    %v2986 = vunpack.c.l.s4 1966171168
    %v2987 = vunpack.c.0.s8 %v2986
    %v2988 = vlaneseq
    %v2989 = vshrl.u32 %v2988, 7
    %v2990 = vsub.s32 %v2987, %v2989
    %v2991 = vrot.slane %v2977, %v2990
    %v2992 = vlaneseq
    %v2993 = vshrl.u32 %v2992, 7
    %v2994 = vsub.s32 0, %v2993
    %v2995 = vrot.slane %v2984, %v2994
    %v2996 = vlaneseq
    %v2997 = vshrl.u32 %v2996, 7
    %v2998 = vsub.s32 0, %v2997
    %v2999 = vrot.slane %v2991, %v2998
    %v3002 = vmul.f32 %v2719, %v2995
    %v3003 = vmul.f32 %v2720, %v2995
    %v3004 = vmul.f32 %v2721, %v2995
    %v3005 = vmul.f32 %v2722, %v2995
    %v3006 = vmul.f32 %v2723, %v2995
    %v3007 = vmul.f32 %v2724, %v2995
    %v3008 = vmul.f32 %v2725, %v2995
    %v3009 = vmul.f32 %v2726, %v2995
    %v3010 = vmul.f32 %v2727, %v2999
    %v3011 = vmul.f32 %v2728, %v2999
    %v3012 = vmul.f32 %v2729, %v2999
    %v3013 = vmul.f32 %v2730, %v2999
    %v3014 = vmul.f32 %v2731, %v2999
    %v3015 = vmul.f32 %v2732, %v2999
    %v3016 = vmul.f32 %v2733, %v2999
    %v3017 = vmul.f32 %v2734, %v2999
    %v3018 = vsel %vm116, %v3002, -inf
    %3019 = vmax.xlane.f32.xlu0 %v3018
    %v3020 = vpop.xlane.xlu0 %3019
    %v3021 = vsel %vm116, %v3003, -inf
    %3022 = vmax.xlane.f32.xlu0 %v3021
    %v3023 = vpop.xlane.xlu0 %3022
    %v3024 = vsel %vm116, %v3004, -inf
    %3025 = vmax.xlane.f32.xlu0 %v3024
    %v3026 = vpop.xlane.xlu0 %3025
    %v3027 = vsel %vm116, %v3005, -inf
    %3028 = vmax.xlane.f32.xlu0 %v3027
    %v3029 = vpop.xlane.xlu0 %3028
    %v3030 = vsel %vm116, %v3006, -inf
    %3031 = vmax.xlane.f32.xlu0 %v3030
    %v3032 = vpop.xlane.xlu0 %3031
    %v3033 = vsel %vm116, %v3007, -inf
    %3034 = vmax.xlane.f32.xlu0 %v3033
    %v3035 = vpop.xlane.xlu0 %3034
    %v3036 = vsel %vm116, %v3008, -inf
    %3037 = vmax.xlane.f32.xlu0 %v3036
    %v3038 = vpop.xlane.xlu0 %3037
    %v3039 = vsel %vm116, %v3009, -inf
    %3040 = vmax.xlane.f32.xlu0 %v3039
    %v3041 = vpop.xlane.xlu0 %3040
    %v3042 = vsel %vm116, %v3010, -inf
    %3043 = vmax.xlane.f32.xlu0 %v3042
    %v3044 = vpop.xlane.xlu0 %3043
    %v3045 = vsel %vm116, %v3011, -inf
    %3046 = vmax.xlane.f32.xlu0 %v3045
    %v3047 = vpop.xlane.xlu0 %3046
    %v3048 = vsel %vm116, %v3012, -inf
    %3049 = vmax.xlane.f32.xlu0 %v3048
    %v3050 = vpop.xlane.xlu0 %3049
    %v3051 = vsel %vm116, %v3013, -inf
    %3052 = vmax.xlane.f32.xlu0 %v3051
    %v3053 = vpop.xlane.xlu0 %3052
    %v3054 = vsel %vm116, %v3014, -inf
    %3055 = vmax.xlane.f32.xlu0 %v3054
    %v3056 = vpop.xlane.xlu0 %3055
    %v3057 = vsel %vm116, %v3015, -inf
    %3058 = vmax.xlane.f32.xlu0 %v3057
    %v3059 = vpop.xlane.xlu0 %3058
    %v3060 = vsel %vm116, %v3016, -inf
    %3061 = vmax.xlane.f32.xlu0 %v3060
    %v3062 = vpop.xlane.xlu0 %3061
    %v3063 = vsel %vm116, %v3017, -inf
    %3064 = vmax.xlane.f32.xlu0 %v3063
    %v3065 = vpop.xlane.xlu0 %3064
    %v3066 = vsel %vm116, %v3002, 0.0
    %3067 = vadd.xlane.f32.xlu0 %v3066
    %v3068 = vpop.xlane.xlu0 %3067
    %v3069 = vsel %vm116, %v3003, 0.0
    %3070 = vadd.xlane.f32.xlu0 %v3069
    %v3071 = vpop.xlane.xlu0 %3070
    %v3072 = vsel %vm116, %v3004, 0.0
    %3073 = vadd.xlane.f32.xlu0 %v3072
    %v3074 = vpop.xlane.xlu0 %3073
    %v3075 = vsel %vm116, %v3005, 0.0
    %3076 = vadd.xlane.f32.xlu0 %v3075
    %v3077 = vpop.xlane.xlu0 %3076
    %v3078 = vsel %vm116, %v3006, 0.0
    %3079 = vadd.xlane.f32.xlu0 %v3078
    %v3080 = vpop.xlane.xlu0 %3079
    %v3081 = vsel %vm116, %v3007, 0.0
    %3082 = vadd.xlane.f32.xlu0 %v3081
    %v3083 = vpop.xlane.xlu0 %3082
    %v3084 = vsel %vm116, %v3008, 0.0
    %3085 = vadd.xlane.f32.xlu0 %v3084
    %v3086 = vpop.xlane.xlu0 %3085
    %v3087 = vsel %vm116, %v3009, 0.0
    %3088 = vadd.xlane.f32.xlu0 %v3087
    %v3089 = vpop.xlane.xlu0 %3088
    %v3090 = vsel %vm116, %v3010, 0.0
    %3091 = vadd.xlane.f32.xlu0 %v3090
    %v3092 = vpop.xlane.xlu0 %3091
    %v3093 = vsel %vm116, %v3011, 0.0
    %3094 = vadd.xlane.f32.xlu0 %v3093
    %v3095 = vpop.xlane.xlu0 %3094
    %v3096 = vsel %vm116, %v3012, 0.0
    %3097 = vadd.xlane.f32.xlu0 %v3096
    %v3098 = vpop.xlane.xlu0 %3097
    %v3099 = vsel %vm116, %v3013, 0.0
    %3100 = vadd.xlane.f32.xlu0 %v3099
    %v3101 = vpop.xlane.xlu0 %3100
    %v3102 = vsel %vm116, %v3014, 0.0
    %3103 = vadd.xlane.f32.xlu0 %v3102
    %v3104 = vpop.xlane.xlu0 %3103
    %v3105 = vsel %vm116, %v3015, 0.0
    %3106 = vadd.xlane.f32.xlu0 %v3105
    %v3107 = vpop.xlane.xlu0 %3106
    %v3108 = vsel %vm116, %v3016, 0.0
    %3109 = vadd.xlane.f32.xlu0 %v3108
    %v3110 = vpop.xlane.xlu0 %3109
    %v3111 = vsel %vm116, %v3017, 0.0
    %3112 = vadd.xlane.f32.xlu0 %v3111
    %v3113 = vpop.xlane.xlu0 %3112
    %v3114 = vmul.f32 %v3068, %v2777
    %v3115 = vmul.f32 %v3071, %v2777
    %v3116 = vmul.f32 %v3074, %v2777
    %v3117 = vmul.f32 %v3077, %v2777
    %v3118 = vmul.f32 %v3080, %v2777
    %v3119 = vmul.f32 %v3083, %v2777
    %v3120 = vmul.f32 %v3086, %v2777
    %v3121 = vmul.f32 %v3089, %v2777
    %v3122 = vmul.f32 %v3092, %v2777
    %v3123 = vmul.f32 %v3095, %v2777
    %v3124 = vmul.f32 %v3098, %v2777
    %v3125 = vmul.f32 %v3101, %v2777
    %v3126 = vmul.f32 %v3104, %v2777
    %v3127 = vmul.f32 %v3107, %v2777
    %v3128 = vmul.f32 %v3110, %v2777
    %v3129 = vmul.f32 %v3113, %v2777
    %v3146 = vlaneseq
    %v3147 = vand.u32 %v3146, 127
    %v3148 = vlaneseq
    %v3149 = vshrl.u32 %v3148, 7
    %v3150 = vsub.s32 %v3147, %v3149
    %v3151 = vrot.slane %v3020, %v3150
    %v3152 = vadd.s32 %v3147, 4294967288
    %v3153 = vlaneseq
    %v3154 = vshrl.u32 %v3153, 7
    %v3155 = vsub.s32 %v3152, %v3154
    %v3156 = vrot.slane %v3023, %v3155
    %vm3157 = vcmask 130112
    %v3158 = vsel %vm3157, %v3156, %v3151
    %v3159 = vadd.s32 %v3147, 4294967280
    %v3160 = vlaneseq
    %v3161 = vshrl.u32 %v3160, 7
    %v3162 = vsub.s32 %v3159, %v3161
    %v3163 = vrot.slane %v3026, %v3162
    %vm3164 = vcmask 195712
    %v3165 = vsel %vm3164, %v3163, %v3158
    %v3166 = vadd.s32 %v3147, 4294967272
    %v3167 = vlaneseq
    %v3168 = vshrl.u32 %v3167, 7
    %v3169 = vsub.s32 %v3166, %v3168
    %v3170 = vrot.slane %v3029, %v3169
    %vm3171 = vcmask 261312
    %v3172 = vsel %vm3171, %v3170, %v3165
    %v3173 = vadd.s32 %v3147, 4294967264
    %v3174 = vlaneseq
    %v3175 = vshrl.u32 %v3174, 7
    %v3176 = vsub.s32 %v3173, %v3175
    %v3177 = vrot.slane %v3032, %v3176
    %vm3178 = vcmask 326912
    %v3179 = vsel %vm3178, %v3177, %v3172
    %v3180 = vadd.s32 %v3147, 4294967256
    %v3181 = vlaneseq
    %v3182 = vshrl.u32 %v3181, 7
    %v3183 = vsub.s32 %v3180, %v3182
    %v3184 = vrot.slane %v3035, %v3183
    %vm3185 = vcmask 392512
    %v3186 = vsel %vm3185, %v3184, %v3179
    %v3187 = vadd.s32 %v3147, 4294967248
    %v3188 = vlaneseq
    %v3189 = vshrl.u32 %v3188, 7
    %v3190 = vsub.s32 %v3187, %v3189
    %v3191 = vrot.slane %v3038, %v3190
    %vm3192 = vcmask 458112
    %v3193 = vsel %vm3192, %v3191, %v3186
    %v3194 = vadd.s32 %v3147, 4294967240
    %v3195 = vlaneseq
    %v3196 = vshrl.u32 %v3195, 7
    %v3197 = vsub.s32 %v3194, %v3196
    %v3198 = vrot.slane %v3041, %v3197
    %vm3199 = vcmask 523712
    %v3200 = vsel %vm3199, %v3198, %v3193
    %v3201 = vlaneseq
    %v3202 = vshrl.u32 %v3201, 7
    %v3203 = vsub.s32 %v3147, %v3202
    %v3204 = vrot.slane %v3044, %v3203
    %v3205 = vlaneseq
    %v3206 = vshrl.u32 %v3205, 7
    %v3207 = vsub.s32 %v3152, %v3206
    %v3208 = vrot.slane %v3047, %v3207
    %v3209 = vsel %vm3157, %v3208, %v3204
    %v3210 = vlaneseq
    %v3211 = vshrl.u32 %v3210, 7
    %v3212 = vsub.s32 %v3159, %v3211
    %v3213 = vrot.slane %v3050, %v3212
    %v3214 = vsel %vm3164, %v3213, %v3209
    %v3215 = vlaneseq
    %v3216 = vshrl.u32 %v3215, 7
    %v3217 = vsub.s32 %v3166, %v3216
    %v3218 = vrot.slane %v3053, %v3217
    %v3219 = vsel %vm3171, %v3218, %v3214
    %v3220 = vlaneseq
    %v3221 = vshrl.u32 %v3220, 7
    %v3222 = vsub.s32 %v3173, %v3221
    %v3223 = vrot.slane %v3056, %v3222
    %v3224 = vsel %vm3178, %v3223, %v3219
    %v3225 = vlaneseq
    %v3226 = vshrl.u32 %v3225, 7
    %v3227 = vsub.s32 %v3180, %v3226
    %v3228 = vrot.slane %v3059, %v3227
    %v3229 = vsel %vm3185, %v3228, %v3224
    %v3230 = vlaneseq
    %v3231 = vshrl.u32 %v3230, 7
    %v3232 = vsub.s32 %v3187, %v3231
    %v3233 = vrot.slane %v3062, %v3232
    %v3234 = vsel %vm3192, %v3233, %v3229
    %v3235 = vlaneseq
    %v3236 = vshrl.u32 %v3235, 7
    %v3237 = vsub.s32 %v3194, %v3236
    %v3238 = vrot.slane %v3065, %v3237
    %v3239 = vsel %vm3199, %v3238, %v3234
    %v3240 = vsel %vm2824, %v3239, %v3200
    %v3258 = vadd.s32 %v3147, 4294967232
    %v3259 = vlaneseq
    %v3260 = vshrl.u32 %v3259, 7
    %v3261 = vsub.s32 %v3258, %v3260
    %v3262 = vrot.slane %v3114, %v3261
    %v3263 = vadd.s32 %v3147, 4294967224
    %v3264 = vlaneseq
    %v3265 = vshrl.u32 %v3264, 7
    %v3266 = vsub.s32 %v3263, %v3265
    %v3267 = vrot.slane %v3115, %v3266
    %vm3268 = vcmask 654912
    %v3269 = vsel %vm3268, %v3267, %v3262
    %v3270 = vadd.s32 %v3147, 4294967216
    %v3271 = vlaneseq
    %v3272 = vshrl.u32 %v3271, 7
    %v3273 = vsub.s32 %v3270, %v3272
    %v3274 = vrot.slane %v3116, %v3273
    %vm3275 = vcmask 720512
    %v3276 = vsel %vm3275, %v3274, %v3269
    %v3277 = vadd.s32 %v3147, 4294967208
    %v3278 = vlaneseq
    %v3279 = vshrl.u32 %v3278, 7
    %v3280 = vsub.s32 %v3277, %v3279
    %v3281 = vrot.slane %v3117, %v3280
    %vm3282 = vcmask 786112
    %v3283 = vsel %vm3282, %v3281, %v3276
    %v3284 = vadd.s32 %v3147, 4294967200
    %v3285 = vlaneseq
    %v3286 = vshrl.u32 %v3285, 7
    %v3287 = vsub.s32 %v3284, %v3286
    %v3288 = vrot.slane %v3118, %v3287
    %vm3289 = vcmask 851712
    %v3290 = vsel %vm3289, %v3288, %v3283
    %v3291 = vadd.s32 %v3147, 4294967192
    %v3292 = vlaneseq
    %v3293 = vshrl.u32 %v3292, 7
    %v3294 = vsub.s32 %v3291, %v3293
    %v3295 = vrot.slane %v3119, %v3294
    %vm3296 = vcmask 917312
    %v3297 = vsel %vm3296, %v3295, %v3290
    %v3298 = vadd.s32 %v3147, 4294967184
    %v3299 = vlaneseq
    %v3300 = vshrl.u32 %v3299, 7
    %v3301 = vsub.s32 %v3298, %v3300
    %v3302 = vrot.slane %v3120, %v3301
    %vm3303 = vcmask 982912
    %v3304 = vsel %vm3303, %v3302, %v3297
    %v3305 = vadd.s32 %v3147, 4294967176
    %v3306 = vlaneseq
    %v3307 = vshrl.u32 %v3306, 7
    %v3308 = vsub.s32 %v3305, %v3307
    %v3309 = vrot.slane %v3121, %v3308
    %vm3310 = vcmask 1048512
    %v3311 = vsel %vm3310, %v3309, %v3304
    %v3312 = vlaneseq
    %v3313 = vshrl.u32 %v3312, 7
    %v3314 = vsub.s32 %v3258, %v3313
    %v3315 = vrot.slane %v3122, %v3314
    %v3316 = vlaneseq
    %v3317 = vshrl.u32 %v3316, 7
    %v3318 = vsub.s32 %v3263, %v3317
    %v3319 = vrot.slane %v3123, %v3318
    %v3320 = vsel %vm3268, %v3319, %v3315
    %v3321 = vlaneseq
    %v3322 = vshrl.u32 %v3321, 7
    %v3323 = vsub.s32 %v3270, %v3322
    %v3324 = vrot.slane %v3124, %v3323
    %v3325 = vsel %vm3275, %v3324, %v3320
    %v3326 = vlaneseq
    %v3327 = vshrl.u32 %v3326, 7
    %v3328 = vsub.s32 %v3277, %v3327
    %v3329 = vrot.slane %v3125, %v3328
    %v3330 = vsel %vm3282, %v3329, %v3325
    %v3331 = vlaneseq
    %v3332 = vshrl.u32 %v3331, 7
    %v3333 = vsub.s32 %v3284, %v3332
    %v3334 = vrot.slane %v3126, %v3333
    %v3335 = vsel %vm3289, %v3334, %v3330
    %v3336 = vlaneseq
    %v3337 = vshrl.u32 %v3336, 7
    %v3338 = vsub.s32 %v3291, %v3337
    %v3339 = vrot.slane %v3127, %v3338
    %v3340 = vsel %vm3296, %v3339, %v3335
    %v3341 = vlaneseq
    %v3342 = vshrl.u32 %v3341, 7
    %v3343 = vsub.s32 %v3298, %v3342
    %v3344 = vrot.slane %v3128, %v3343
    %v3345 = vsel %vm3303, %v3344, %v3340
    %v3346 = vlaneseq
    %v3347 = vshrl.u32 %v3346, 7
    %v3348 = vsub.s32 %v3305, %v3347
    %v3349 = vrot.slane %v3129, %v3348
    %v3350 = vsel %vm3310, %v3349, %v3345
    %v3351 = vsel %vm2824, %v3350, %v3311
    %v3353 = vsel %vm116, %v3240, %v3351
    %v3354 = vpack.c.bf16 %v3353, %v3353
    %v3355 = vld [vmem:[%s6] sm:$0xf]
    %v3356 = vld [vmem:[%s6 + $0x4] sm:$0xf]
    %v3357 = vld [vmem:[%s6 + $0x8] sm:$0xf]
    %v3358 = vld [vmem:[%s6 + $0xc] sm:$0xf]
    %v3359 = vld [vmem:[%s6 + $0x10] sm:$0xf]
    %v3360 = vld [vmem:[%s6 + $0x14] sm:$0xf]
    %v3361 = vld [vmem:[%s6 + $0x18] sm:$0xf]
    %v3362 = vld [vmem:[%s6 + $0x1c] sm:$0xf]
    %v3363 = vld [vmem:[%s6 + $0x20] sm:$0xf]
    %v3364 = vld [vmem:[%s6 + $0x24] sm:$0xf]
    %v3365 = vld [vmem:[%s6 + $0x28] sm:$0xf]
    %v3366 = vld [vmem:[%s6 + $0x2c] sm:$0xf]
    %v3367 = vld [vmem:[%s6 + $0x30] sm:$0xf]
    %v3368 = vld [vmem:[%s6 + $0x34] sm:$0xf]
    %v3369 = vld [vmem:[%s6 + $0x38] sm:$0xf]
    %v3370 = vld [vmem:[%s6 + $0x3c] sm:$0xf]
    %v3387 = vunpack.c.l.b16 %v3355
    %v3388 = vunpack.c.l.b16 %v3356
    %v3389 = vunpack.c.l.b16 %v3357
    %v3390 = vunpack.c.l.b16 %v3358
    %v3391 = vunpack.c.l.b16 %v3359
    %v3392 = vunpack.c.l.b16 %v3360
    %v3393 = vunpack.c.l.b16 %v3361
    %v3394 = vunpack.c.l.b16 %v3362
    %v3395 = vunpack.c.l.b16 %v3363
    %v3396 = vunpack.c.l.b16 %v3364
    %v3397 = vunpack.c.l.b16 %v3365
    %v3398 = vunpack.c.l.b16 %v3366
    %v3399 = vunpack.c.l.b16 %v3367
    %v3400 = vunpack.c.l.b16 %v3368
    %v3401 = vunpack.c.l.b16 %v3369
    %v3402 = vunpack.c.l.b16 %v3370
    %v3403 = vpack.c.b16 %v3388, %v3387
    %v3404 = vpack.c.b16 %v3390, %v3389
    %v3405 = vpack.c.b16 %v3392, %v3391
    %v3406 = vpack.c.b16 %v3394, %v3393
    %v3407 = vpack.c.b16 %v3396, %v3395
    %v3408 = vpack.c.b16 %v3398, %v3397
    %v3409 = vpack.c.b16 %v3400, %v3399
    %v3410 = vpack.c.b16 %v3402, %v3401
    %3419 = vmatprep.subr.bf16.mxu0 0
    %3420 = vmatpush1.bf16.msra.mxu0 %v3410
    %3421 = vmatprep.subr.bf16.mxu0 0
    %3422 = vmatpush1.bf16.msra.mxu0 %v3409
    %3423 = vmatprep.subr.bf16.mxu0 0
    %3424 = vmatpush1.bf16.msra.mxu0 %v3408
    %3425 = vmatprep.subr.bf16.mxu0 0
    %3426 = vmatpush1.bf16.msra.mxu0 %v3407
    %3427 = vmatprep.subr.bf16.mxu0 0
    %3428 = vmatpush1.bf16.msra.mxu0 %v3406
    %3429 = vmatprep.subr.bf16.mxu0 0
    %3430 = vmatpush1.bf16.msra.mxu0 %v3405
    %3431 = vmatprep.subr.bf16.mxu0 0
    %3432 = vmatpush1.bf16.msra.mxu0 %v3404
    %3433 = vmatprep.subr.bf16.mxu0 0
    %3434 = vmatpush1.bf16.msra.mxu0 %v3403
    %3435 = vmatprep.subr.bf16.mxu0 0
    %3436 = vmatpush2.bf16.msra.mxu0 0
    %3437 = vmatprep.subr.bf16.mxu0 0
    %3438 = vmatpush2.bf16.msra.mxu0 0
    %3439 = vmatprep.subr.bf16.mxu0 0
    %3440 = vmatpush2.bf16.msra.mxu0 0
    %3441 = vmatprep.subr.bf16.mxu0 0
    %3442 = vmatpush2.bf16.msra.mxu0 0
    %3443 = vmatprep.subr.bf16.mxu0 0
    %3444 = vmatpush2.bf16.msra.mxu0 0
    %3445 = vmatprep.subr.bf16.mxu0 0
    %3446 = vmatpush2.bf16.msra.mxu0 0
    %3447 = vmatprep.subr.bf16.mxu0 0
    %3448 = vmatpush2.bf16.msra.mxu0 0
    %3449 = vmatprep.subr.bf16.mxu0 0
    %3450 = vmatpush2.bf16.msra.mxu0 0
    %3451 = vmatprep.mubr.bf16.mxu0 0
    %3452 = vmatmul.mubr.bf16.gmra.mxu0 %v3354
    %v3453 = vpop.f32.mrf.mxu0
    %v3454 = vadd.f32 0.0, %v3453
    %v3455 = vpop.f32.mrf.mxu0
    %v3456 = vpop.f32.mrf.mxu0
    %v3457 = vpop.f32.mrf.mxu0
    %3458 = vdwg.mxu0
    %vm3459 = vcmask 517120
    %v3460 = vsel %vm3459, %v3454, 0.0
    %3461 = vadd.xlane.f32.xlu0 %v3460
    %v3462 = vpop.xlane.xlu0 %3461
    %v3463 = vrot.slane %v3462, 4
    %v3464 = vadd.f32 %v3462, %v3463
    %v3465 = vrot.slane %v3464, 2
    %v3466 = vadd.f32 %v3464, %v3465
    %v3467 = vrot.slane %v3466, 1
    %v3468 = vadd.f32 %v3466, %v3467
    %s3469 = vtos %v3468
    %v3470 = vstv %s3469
    %v3471 = vmul.f32 %v3470, %v278
    %v3472 = vsub.f32 %v3454, %v3471
    %v3473 = vmul.f32 %v3472, %v3472
    %v3474 = vsel %vm3459, %v3473, 0.0
    %3475 = vadd.xlane.f32.xlu0 %v3474
    %v3476 = vpop.xlane.xlu0 %3475
    %v3477 = vrot.slane %v3476, 4
    %v3478 = vadd.f32 %v3476, %v3477
    %v3479 = vrot.slane %v3478, 2
    %v3480 = vadd.f32 %v3478, %v3479
    %v3481 = vrot.slane %v3480, 1
    %v3482 = vadd.f32 %v3480, %v3481
    %s3483 = vtos %v3482
    %v3484 = vstv %s3483
    %v3485 = vmul.f32 %v3484, %v278
    %v3486 = vadd.f32 %v3485, 1e-05
    %v3487 = vrsqrt.pop %v3486
    %v3488 = vmul.f32 %v3472, %v3487
    %s3489 = sld [smem:[#allocation5]]
    %v3490 = vstv %s3489
    %v3491 = vmul.f32 %v3488, %v3490
    %s3492 = sld [smem:[#allocation5 + $0x1]]
    %v3493 = vstv %s3492
    %v3494 = vadd.f32 %v3491, %v3493
    %v3495 = vsub.f32 0.0, %v3494
    %v3496 = vmul.f32 %v3495, 1.442695
    %v3497 = vpow.pop %v3496
    %v3498 = vadd.f32 %v3497, 1.0
    %v3499 = vrcp.pop %v3498
    %v3500 = vlaneseq
    %v3501 = vshrl.u32 %v3500, 7
    %v3502 = vsub.s32 0, %v3501
    %v3503 = vrot.slane %v3499, %v3502
    %3505 = vbcast.lane.b32.xlu0 %v3503, 256
    %v3506 = vpop.permute.xlu0 %3505
    %s3508 = sor.u32 256, 8
    %3509 = vbcast.lane.b32.xlu0 %v3503, %s3508
    %v3510 = vpop.permute.xlu0 %3509
    %s3512 = sor.u32 256, 16
    %3513 = vbcast.lane.b32.xlu0 %v3503, %s3512
    %v3514 = vpop.permute.xlu0 %3513
    %s3516 = sor.u32 256, 24
    %3517 = vbcast.lane.b32.xlu0 %v3503, %s3516
    %v3518 = vpop.permute.xlu0 %3517
    %s3520 = sor.u32 256, 32
    %3521 = vbcast.lane.b32.xlu0 %v3503, %s3520
    %v3522 = vpop.permute.xlu0 %3521
    %s3524 = sor.u32 256, 40
    %3525 = vbcast.lane.b32.xlu0 %v3503, %s3524
    %v3526 = vpop.permute.xlu0 %3525
    %s3528 = sor.u32 256, 48
    %3529 = vbcast.lane.b32.xlu0 %v3503, %s3528
    %v3530 = vpop.permute.xlu0 %3529
    %s3532 = sor.u32 256, 56
    %3533 = vbcast.lane.b32.xlu0 %v3503, %s3532
    %v3534 = vpop.permute.xlu0 %3533
    %v3535 = vlaneseq
    %v3536 = vshrl.u32 %v3535, 7
    %v3537 = vsub.s32 1, %v3536
    %v3538 = vrot.slane %v3499, %v3537
    %3540 = vbcast.lane.b32.xlu0 %v3538, 256
    %v3541 = vpop.permute.xlu0 %3540
    %s3543 = sor.u32 256, 8
    %3544 = vbcast.lane.b32.xlu0 %v3538, %s3543
    %v3545 = vpop.permute.xlu0 %3544
    %s3547 = sor.u32 256, 16
    %3548 = vbcast.lane.b32.xlu0 %v3538, %s3547
    %v3549 = vpop.permute.xlu0 %3548
    %s3551 = sor.u32 256, 24
    %3552 = vbcast.lane.b32.xlu0 %v3538, %s3551
    %v3553 = vpop.permute.xlu0 %3552
    %s3555 = sor.u32 256, 32
    %3556 = vbcast.lane.b32.xlu0 %v3538, %s3555
    %v3557 = vpop.permute.xlu0 %3556
    %s3559 = sor.u32 256, 40
    %3560 = vbcast.lane.b32.xlu0 %v3538, %s3559
    %v3561 = vpop.permute.xlu0 %3560
    %s3563 = sor.u32 256, 48
    %3564 = vbcast.lane.b32.xlu0 %v3538, %s3563
    %v3565 = vpop.permute.xlu0 %3564
    %s3567 = sor.u32 256, 56
    %3568 = vbcast.lane.b32.xlu0 %v3538, %s3567
    %v3569 = vpop.permute.xlu0 %3568
    %v3570 = vmul.f32 %v3002, %v3506
    %v3571 = vmul.f32 %v3003, %v3510
    %v3572 = vmul.f32 %v3004, %v3514
    %v3573 = vmul.f32 %v3005, %v3518
    %v3574 = vmul.f32 %v3006, %v3522
    %v3575 = vmul.f32 %v3007, %v3526
    %v3576 = vmul.f32 %v3008, %v3530
    %v3577 = vmul.f32 %v3009, %v3534
    %v3578 = vmul.f32 %v3010, %v3541
    %v3579 = vmul.f32 %v3011, %v3545
    %v3580 = vmul.f32 %v3012, %v3549
    %v3581 = vmul.f32 %v3013, %v3553
    %v3582 = vmul.f32 %v3014, %v3557
    %v3583 = vmul.f32 %v3015, %v3561
    %v3584 = vmul.f32 %v3016, %v3565
    %v3585 = vmul.f32 %v3017, %v3569
    %v3586 = vadd.f32 %v3570, %v60
    %v3587 = vadd.f32 %v3571, %v61
    %v3588 = vadd.f32 %v3572, %v62
    %v3589 = vadd.f32 %v3573, %v63
    %v3590 = vadd.f32 %v3574, %v64
    %v3591 = vadd.f32 %v3575, %v65
    %v3592 = vadd.f32 %v3576, %v66
    %v3593 = vadd.f32 %v3577, %v67
    %v3594 = vadd.f32 %v3578, %v68
    %v3595 = vadd.f32 %v3579, %v69
    %v3596 = vadd.f32 %v3580, %v70
    %v3597 = vadd.f32 %v3581, %v71
    %v3598 = vadd.f32 %v3582, %v72
    %v3599 = vadd.f32 %v3583, %v73
    %v3600 = vadd.f32 %v3584, %v74
    %v3601 = vadd.f32 %v3585, %v75
    %3602 = vst.msk [vmem:[%s9] sm:$0xff] %vm116, %v3586
    %3603 = vst.msk [vmem:[%s9 + $0x8] sm:$0xff] %vm116, %v3587
    %3604 = vst.msk [vmem:[%s9 + $0x10] sm:$0xff] %vm116, %v3588
    %3605 = vst.msk [vmem:[%s9 + $0x18] sm:$0xff] %vm116, %v3589
    %3606 = vst.msk [vmem:[%s9 + $0x20] sm:$0xff] %vm116, %v3590
    %3607 = vst.msk [vmem:[%s9 + $0x28] sm:$0xff] %vm116, %v3591
    %3608 = vst.msk [vmem:[%s9 + $0x30] sm:$0xff] %vm116, %v3592
    %3609 = vst.msk [vmem:[%s9 + $0x38] sm:$0xff] %vm116, %v3593
    %3610 = vst.msk [vmem:[%s9 + $0x40] sm:$0xff] %vm116, %v3594
    %3611 = vst.msk [vmem:[%s9 + $0x48] sm:$0xff] %vm116, %v3595
    %3612 = vst.msk [vmem:[%s9 + $0x50] sm:$0xff] %vm116, %v3596
    %3613 = vst.msk [vmem:[%s9 + $0x58] sm:$0xff] %vm116, %v3597
    %3614 = vst.msk [vmem:[%s9 + $0x60] sm:$0xff] %vm116, %v3598
    %3615 = vst.msk [vmem:[%s9 + $0x68] sm:$0xff] %vm116, %v3599
    %3616 = vst.msk [vmem:[%s9 + $0x70] sm:$0xff] %vm116, %v3600
    %3617 = vst.msk [vmem:[%s9 + $0x78] sm:$0xff] %vm116, %v3601
    // Predicated region
    $region46: #{tpu_custom_call.1} parent=1 // pred_check
      _
    $region47: #{tpu_custom_call.1} parent=1 // pred_check_branch
      %3619 = sbr.rel (0) target = $region49
    $region48: #{tpu_custom_call.1} parent=1 // pred_region
      _
    $region49: #{tpu_custom_call.1} parent=1 // pred_fallthru
      _
    // Predicated region
    $region50: #{tpu_custom_call.1} parent=1 // pred_check
      _
    $region51: #{tpu_custom_call.1} parent=1 // pred_check_branch
      %3621 = sbr.rel (0) target = $region53
    $region52: #{tpu_custom_call.1} parent=1 // pred_region
      _
    $region53: #{tpu_custom_call.1} parent=1 // pred_fallthru
      _
    %3622 = vsyncpa [#allocation3], 1
    %3623 = vsyncpa [#allocation4], 1

</llo_original>
